<compile_context>
chip_gen: v5e
topology: v5e:2x2
jax: 0.10.0
libtpu: 0.0.40
codegen_flags: <defaults>
</compile_context>

<pallas_src>
import jax
import jax.numpy as jnp
from jax.experimental import pallas as pl
from jax.experimental.pallas import tpu as pltpu

INPUT_SIZE = 1
HIDDEN = 50           # H
NUM_LAYERS = 2
OUTPUT_SIZE = 432     # future_steps

GP = 128              # per-gate lane-padded width
NG = 4                # gates
GW = NG * GP          # 512 = padded 4H
OUT_PAD = 512         # 432 padded up to a lane-dense multiple of 128
L1_OFF = 64           # lane offset of layer-1 state/weights inside each 128-lane block

VMEM_LIMIT_BYTES = 32 * 1024 * 1024   # explicit (v7x default scoped = 32 MiB)

# Gate layout within GW is [i | f | o | g] so the three sigmoids are one
# contiguous lane slice.  PyTorch stacks gates as [i, f, g, o]:
_PT_GATE_FOR_BLOCK = (0, 1, 3, 2)     # block b holds PyTorch gate _PT_GATE_FOR_BLOCK[b]


def _gate_update(gates, c):
    """gates: (B, GW) lane blocks [i|f|o|g]; c: (B, GP).  All f32.

    Padded lanes carry exact zeros in `gates`'s valid data and in `c`, so
    padded h/c lanes stay exactly zero (sigmoid(0)*0 + sigmoid(0)*tanh(0))."""
    ifo = jax.nn.sigmoid(gates[:, :3 * GP])     # one wide EUP issue for i, f, o
    g = jnp.tanh(gates[:, 3 * GP:])
    i = ifo[:, 0 * GP:1 * GP]
    f = ifo[:, 1 * GP:2 * GP]
    o = ifo[:, 2 * GP:3 * GP]
    c_new = f * c + i * g
    h_new = o * jnp.tanh(c_new)
    return h_new, c_new


def _lstm_fc_kernel(x_ref,      # (T, B, 1)      time-major input, f32
                    wih0_ref,   # (1, 1, GW)     layer-0 input weights (I=1), f32
                    b0_ref,     # (1, 1, GW)     b_ih0 + b_hh0, f32
                    wbig_ref,   # (GP, 2*GW)     fused recurrent weights, bf16
                    b1_ref,     # (1, GW)        b_ih1 + b_hh1 (lane offset 64), f32
                    fcw_ref,    # (GP, OUT_PAD)  fc weight (rows 64:114 valid), bf16
                    fcb_ref,    # (1, OUT_PAD)   f32
                    out_ref,    # (B, OUT_PAD)   f32
                    xg_ref):    # scratch (T, B, GW) f32: precomputed layer-0 gate inputs
    T, B, _ = x_ref.shape

    # Layer-0 input contribution for every timestep (I == 1 -> VPU broadcast
    # multiply), kept off the recurrence critical path.
    xg_ref[...] = x_ref[...].astype(jnp.float32) * wih0_ref[...] + b0_ref[...]

    # Hoist the layer-1 bias broadcast once (JAX does not CSE broadcast_in_dim).
    b1 = jnp.broadcast_to(b1_ref[...], (B, GW))

    zeros = jnp.zeros((B, GP), jnp.float32)
    c0, h1, c1 = zeros, zeros, zeros

    # k = 0: both states are zero, so the recurrent matmul contributes nothing.
    h0, c0 = _gate_update(xg_ref[0], c0)            # layer 0, t = 0

    # Wavefront over the two layers; T small & static -> fully unrolled.
    # TODO(synk): switch to lax.fori_loop(..., unroll=2..4) if T grows past ~32.
    for k in range(1, T + 1):
        # h0 occupies lanes 0:50, h1 occupies lanes 64:114 (padded lanes are
        # exact zeros), so one VPU add merges them and K stays at 128.
        h_merged = (h0 + h1).astype(jnp.bfloat16)
        big = jnp.dot(h_merged, wbig_ref[...],
                      preferred_element_type=jnp.float32)       # (B, 2*GW) f32
        if k < T:                                   # layer 0, timestep k
            h0, c0 = _gate_update(big[:, :GW] + xg_ref[k], c0)
        h1, c1 = _gate_update(big[:, GW:] + b1, c1)  # layer 1, timestep k-1

    # fc(h1[T-1]) -> lane-dense padded output (wrapper slices back to 432).
    out_ref[...] = (jnp.dot(h1.astype(jnp.bfloat16), fcw_ref[...],
                            preferred_element_type=jnp.float32) + fcb_ref[...])


def lstm_model_forward(x, packed, *, slice_output=True):
    """x: (B, T, I) float32 (batch-first, as in the PyTorch module)."""
    B, T, _ = x.shape
    x_tm = jnp.transpose(x, (1, 0, 2)).astype(jnp.float32)        # (T, B, I)

    vmem = pl.BlockSpec(memory_space=pltpu.MemorySpace.VMEM)
    weight_args = (packed["wih0"], packed["b0"], packed["wbig"], packed["b1"],
                   packed["fcw"], packed["fcb"])

    use_grid = (B > 8) and (B % 8 == 0)
    if use_grid:
        # Batch grid in blocks of 8 rows: fills the f32 LHS sublanes per
        # instance and lets v7x shard the axis across both TensorCores.
        b_blk = 8
        out = pl.pallas_call(
            _lstm_fc_kernel,
            out_shape=jax.ShapeDtypeStruct((B, OUT_PAD), jnp.float32),
            grid=(B // b_blk,),
            in_specs=[pl.BlockSpec((T, b_blk, INPUT_SIZE), lambda i: (0, i, 0))]
                     + [vmem] * 6,
            out_specs=pl.BlockSpec((b_blk, OUT_PAD), lambda i: (i, 0)),
            scratch_shapes=[pltpu.VMEM((T, b_blk, GW), jnp.float32)],
            compiler_params=pltpu.CompilerParams(
                dimension_semantics=("parallel",),
                vmem_limit_bytes=VMEM_LIMIT_BYTES),
        )(x_tm, *weight_args)
    else:
        out = pl.pallas_call(
            _lstm_fc_kernel,
            out_shape=jax.ShapeDtypeStruct((B, OUT_PAD), jnp.float32),
            in_specs=[vmem] * 7,
            out_specs=vmem,
            scratch_shapes=[pltpu.VMEM((T, B, GW), jnp.float32)],
            compiler_params=pltpu.CompilerParams(
                vmem_limit_bytes=VMEM_LIMIT_BYTES),
        )(x_tm, *weight_args)

    # The kernel's store is lane-dense (512); consumers that can fuse the
    # 432-slice downstream should call with slice_output=False.
    return out[:, :OUTPUT_SIZE] if slice_output else out


# ----------------------------------------------------------------------------
# Parameter construction (raw PyTorch layout) and repacking for the kernel.
# ----------------------------------------------------------------------------
def init_params(key):
    """Raw PyTorch-shaped params: LSTM/Linear init U(-k, k), k = 1/sqrt(H)."""
    ks = jax.random.split(key, 10)
    k = 1.0 / jnp.sqrt(jnp.float32(HIDDEN))

    def u(kk, shape):
        return jax.random.uniform(kk, shape, jnp.float32, -k, k)

    return dict(
        w_ih0=u(ks[0], (4 * HIDDEN, INPUT_SIZE)),
        w_hh0=u(ks[1], (4 * HIDDEN, HIDDEN)),
        b_ih0=u(ks[2], (4 * HIDDEN,)),
        b_hh0=u(ks[3], (4 * HIDDEN,)),
        w_ih1=u(ks[4], (4 * HIDDEN, HIDDEN)),
        w_hh1=u(ks[5], (4 * HIDDEN, HIDDEN)),
        b_ih1=u(ks[6], (4 * HIDDEN,)),
        b_hh1=u(ks[7], (4 * HIDDEN,)),
        fc_w=u(ks[8], (OUTPUT_SIZE, HIDDEN)),
        fc_b=u(ks[9], (OUTPUT_SIZE,)),
    )


def _gate_pad_cols(w, lane_off=0):
    """(4H, K) gate-stacked PyTorch weight -> (K, GW), transposed, each gate in
    its own 128-lane block at lane offset `lane_off`; other lanes exactly 0."""
    K = w.shape[1]
    out = jnp.zeros((K, GW), jnp.float32)
    for b, g in enumerate(_PT_GATE_FOR_BLOCK):
        out = out.at[:, b * GP + lane_off: b * GP + lane_off + HIDDEN].set(
            w[g * HIDDEN:(g + 1) * HIDDEN, :].T)
    return out


def _gate_pad_vec(vec, lane_off=0):
    out = jnp.zeros((GW,), jnp.float32)
    for b, g in enumerate(_PT_GATE_FOR_BLOCK):
        out = out.at[b * GP + lane_off: b * GP + lane_off + HIDDEN].set(
            vec[g * HIDDEN:(g + 1) * HIDDEN])
    return out


def pack_params(p):
    """Repack raw params into the kernel's lane-aligned, zero-padded layout.

    Layer-0 state lives in lanes 0:50, layer-1 state in lanes 64:114 of the
    shared 128-lane state vector; layer-1 weight columns / biases / fc rows are
    therefore packed at lane offset L1_OFF.  MXU weights are cast to bf16.
    """
    wih0 = _gate_pad_cols(p["w_ih0"]).reshape(1, 1, GW)            # K = I = 1
    b0 = _gate_pad_vec(p["b_ih0"] + p["b_hh0"]).reshape(1, 1, GW)

    whh0 = _gate_pad_cols(p["w_hh0"])                # (H, GW) gate lanes at 0
    wih1 = _gate_pad_cols(p["w_ih1"], L1_OFF)        # (H, GW) gate lanes at 64
    whh1 = _gate_pad_cols(p["w_hh1"], L1_OFF)        # (H, GW) gate lanes at 64

    wbig = jnp.zeros((GP, 2 * GW), jnp.float32)
    wbig = wbig.at[0:HIDDEN, :GW].set(whh0)                    # h0 rows -> layer-0 gates
    wbig = wbig.at[0:HIDDEN, GW:].set(wih1)                    # h0 rows -> layer-1 gates
    wbig = wbig.at[L1_OFF:L1_OFF + HIDDEN, GW:].set(whh1)      # h1 rows -> layer-1 gates
    wbig = wbig.astype(jnp.bfloat16)

    b1 = _gate_pad_vec(p["b_ih1"] + p["b_hh1"], L1_OFF).reshape(1, GW)

    fcw = (jnp.zeros((GP, OUT_PAD), jnp.float32)
           .at[L1_OFF:L1_OFF + HIDDEN, :OUTPUT_SIZE].set(p["fc_w"].T)
           .astype(jnp.bfloat16))
    fcb = jnp.zeros((1, OUT_PAD), jnp.float32).at[0, :OUTPUT_SIZE].set(p["fc_b"])

    return dict(wih0=wih0, b0=b0, wbig=wbig, b1=b1, fcw=fcw, fcb=fcb)


# ----------------------------------------------------------------------------
# Pure-JAX reference of the PyTorch forward (for correctness check).
# ----------------------------------------------------------------------------
def reference_forward(x, p):
    B, T, _ = x.shape
    H = HIDDEN

    def cell(x_t, h, c, w_ih, w_hh, b_ih, b_hh):
        g = x_t @ w_ih.T + h @ w_hh.T + b_ih + b_hh
        i = jax.nn.sigmoid(g[:, :H])
        f = jax.nn.sigmoid(g[:, H:2 * H])
        gg = jnp.tanh(g[:, 2 * H:3 * H])
        o = jax.nn.sigmoid(g[:, 3 * H:])
        c = f * c + i * gg
        return o * jnp.tanh(c), c

    h0 = c0 = h1 = c1 = jnp.zeros((B, H), jnp.float32)
    for t in range(T):
        h0, c0 = cell(x[:, t, :], h0, c0, p["w_ih0"], p["w_hh0"], p["b_ih0"], p["b_hh0"])
        h1, c1 = cell(h0, h1, c1, p["w_ih1"], p["w_hh1"], p["b_ih1"], p["b_hh1"])
    return h1 @ p["fc_w"].T + p["fc_b"]


if __name__ == "__main__":
    key = jax.random.PRNGKey(0)
    k_x, k_p = jax.random.split(key)

    B, T = 2, 8
    x = jax.random.normal(k_x, (B, T, INPUT_SIZE), jnp.float32)
    params = init_params(k_p)
    packed = pack_params(params)

    out = lstm_model_forward(x, packed)
    out = jax.block_until_ready(out)

    ref = reference_forward(x, params)
    assert out.shape == (B, OUTPUT_SIZE), out.shape
    # bf16 MXU operands (h and weights) -> slightly looser tolerance vs f32 ref.
    assert jnp.allclose(out, ref, atol=2e-2, rtol=1e-2), "mismatch vs reference"

    print("KERNEL_OK")
</pallas_src>

<mosaic_0001>
module attributes {stable_mosaic.version = 11 : i64} {
  func.func @_lstm_fc_kernel(%arg0: memref<8x2x1xf32, #tpu.memory_space<vmem>>, %arg1: memref<1x1x512xf32, #tpu.memory_space<vmem>>, %arg2: memref<1x1x512xf32, #tpu.memory_space<vmem>>, %arg3: memref<128x1024xbf16, #tpu.memory_space<vmem>>, %arg4: memref<1x512xf32, #tpu.memory_space<vmem>>, %arg5: memref<128x512xbf16, #tpu.memory_space<vmem>>, %arg6: memref<1x512xf32, #tpu.memory_space<vmem>>, %arg7: memref<2x512xf32, #tpu.memory_space<vmem>>, %arg8: memref<8x2x512xf32, #tpu.memory_space<vmem>>) attributes {dimension_semantics = [], scalar_prefetch = 0 : i64, scratch_operands = 1 : i64, tpu.core_type = #tpu.core_type<tc>} {
    %c0 = arith.constant 0 : index
    %c0_0 = arith.constant 0 : index
    %c0_1 = arith.constant 0 : index
    %0 = vector.load %arg0[%c0, %c0_0, %c0_1] : memref<8x2x1xf32, #tpu.memory_space<vmem>>, vector<8x2x1xf32>
    %c0_2 = arith.constant 0 : index
    %c0_3 = arith.constant 0 : index
    %c0_4 = arith.constant 0 : index
    %1 = vector.load %arg1[%c0_2, %c0_3, %c0_4] : memref<1x1x512xf32, #tpu.memory_space<vmem>>, vector<1x1x512xf32>
    %2 = vector.broadcast %0 : vector<8x2x1xf32> to vector<8x2x512xf32>
    %3 = vector.broadcast %1 : vector<1x1x512xf32> to vector<8x2x512xf32>
    %4 = arith.mulf %2, %3 : vector<8x2x512xf32>
    %c0_5 = arith.constant 0 : index
    %c0_6 = arith.constant 0 : index
    %c0_7 = arith.constant 0 : index
    %5 = vector.load %arg2[%c0_5, %c0_6, %c0_7] : memref<1x1x512xf32, #tpu.memory_space<vmem>>, vector<1x1x512xf32>
    %6 = vector.broadcast %5 : vector<1x1x512xf32> to vector<8x2x512xf32>
    %7 = arith.addf %4, %6 : vector<8x2x512xf32>
    %c0_8 = arith.constant 0 : index
    %c0_9 = arith.constant 0 : index
    %c0_10 = arith.constant 0 : index
    %8 = vector.load %arg8[%c0_8, %c0_9, %c0_10] : memref<8x2x512xf32, #tpu.memory_space<vmem>>, vector<8x2x512xf32>
    tpu.vector_store %arg8[%c0_8, %c0_9, %c0_10], %7 {strides = array<i32>} : memref<8x2x512xf32, #tpu.memory_space<vmem>>, vector<8x2x512xf32>,
    %c0_11 = arith.constant 0 : index
    %c0_12 = arith.constant 0 : index
    %9 = vector.load %arg4[%c0_11, %c0_12] : memref<1x512xf32, #tpu.memory_space<vmem>>, vector<1x512xf32>
    %10 = vector.shape_cast %9 : vector<1x512xf32> to vector<1x512xf32>
    %11 = vector.broadcast %10 : vector<1x512xf32> to vector<2x512xf32>
    %cst = arith.constant 0.000000e+00 : f32
    %12 = vector.broadcast %cst : f32 to vector<2x128xf32>
    %c0_13 = arith.constant 0 : index
    %c0_14 = arith.constant 0 : index
    %c0_15 = arith.constant 0 : index
    %13 = vector.load %arg8[%c0_13, %c0_14, %c0_15] : memref<8x2x512xf32, #tpu.memory_space<vmem>>, vector<1x2x512xf32>
    %14 = vector.shape_cast %13 : vector<1x2x512xf32> to vector<2x512xf32>
    %15 = vector.extract_strided_slice %14 {offsets = [0, 0], sizes = [2, 384], strides = [1, 1]} : vector<2x512xf32> to vector<2x384xf32>
    %16 = arith.negf %15 : vector<2x384xf32>
    %17 = math.exp %16 : vector<2x384xf32>
    %cst_16 = arith.constant 1.000000e+00 : f32
    %18 = vector.broadcast %cst_16 : f32 to vector<2x384xf32>
    %19 = arith.addf %18, %17 : vector<2x384xf32>
    %20 = arith.divf %18, %19 : vector<2x384xf32>
    %21 = vector.extract_strided_slice %14 {offsets = [0, 384], sizes = [2, 128], strides = [1, 1]} : vector<2x512xf32> to vector<2x128xf32>
    %22 = math.tanh %21 : vector<2x128xf32>
    %23 = vector.extract_strided_slice %20 {offsets = [0, 0], sizes = [2, 128], strides = [1, 1]} : vector<2x384xf32> to vector<2x128xf32>
    %24 = vector.extract_strided_slice %20 {offsets = [0, 128], sizes = [2, 128], strides = [1, 1]} : vector<2x384xf32> to vector<2x128xf32>
    %25 = vector.extract_strided_slice %20 {offsets = [0, 256], sizes = [2, 128], strides = [1, 1]} : vector<2x384xf32> to vector<2x128xf32>
    %26 = arith.mulf %24, %12 : vector<2x128xf32>
    %27 = arith.mulf %23, %22 : vector<2x128xf32>
    %28 = arith.addf %26, %27 : vector<2x128xf32>
    %29 = math.tanh %28 : vector<2x128xf32>
    %30 = arith.mulf %25, %29 : vector<2x128xf32>
    %31 = arith.addf %30, %12 : vector<2x128xf32>
    %32 = arith.truncf %31 : vector<2x128xf32> to vector<2x128xbf16>
    %c0_17 = arith.constant 0 : index
    %c0_18 = arith.constant 0 : index
    %33 = vector.load %arg3[%c0_17, %c0_18] : memref<128x1024xbf16, #tpu.memory_space<vmem>>, vector<128x1024xbf16>
    %cst_19 = arith.constant dense<0.000000e+00> : vector<2x1024xf32>
    %34 = tpu.matmul %32, %33, %cst_19 {dimension_numbers = #tpu.dot_dimension_numbers<[1], [0], [0], [1], [0, 0, 1, 1], [], []>} : vector<2x128xbf16>, vector<128x1024xbf16>, vector<2x1024xf32> -> vector<2x1024xf32>
    %35 = vector.extract_strided_slice %34 {offsets = [0, 0], sizes = [2, 512], strides = [1, 1]} : vector<2x1024xf32> to vector<2x512xf32>
    %c1 = arith.constant 1 : index
    %c0_20 = arith.constant 0 : index
    %c0_21 = arith.constant 0 : index
    %36 = vector.load %arg8[%c1, %c0_20, %c0_21] : memref<8x2x512xf32, #tpu.memory_space<vmem>>, vector<1x2x512xf32>
    %37 = vector.shape_cast %36 : vector<1x2x512xf32> to vector<2x512xf32>
    %38 = arith.addf %35, %37 : vector<2x512xf32>
    %39 = vector.extract_strided_slice %38 {offsets = [0, 0], sizes = [2, 384], strides = [1, 1]} : vector<2x512xf32> to vector<2x384xf32>
    %40 = arith.negf %39 : vector<2x384xf32>
    %41 = math.exp %40 : vector<2x384xf32>
    %cst_22 = arith.constant 1.000000e+00 : f32
    %42 = vector.broadcast %cst_22 : f32 to vector<2x384xf32>
    %43 = arith.addf %42, %41 : vector<2x384xf32>
    %44 = arith.divf %42, %43 : vector<2x384xf32>
    %45 = vector.extract_strided_slice %38 {offsets = [0, 384], sizes = [2, 128], strides = [1, 1]} : vector<2x512xf32> to vector<2x128xf32>
    %46 = math.tanh %45 : vector<2x128xf32>
    %47 = vector.extract_strided_slice %44 {offsets = [0, 0], sizes = [2, 128], strides = [1, 1]} : vector<2x384xf32> to vector<2x128xf32>
    %48 = vector.extract_strided_slice %44 {offsets = [0, 128], sizes = [2, 128], strides = [1, 1]} : vector<2x384xf32> to vector<2x128xf32>
    %49 = vector.extract_strided_slice %44 {offsets = [0, 256], sizes = [2, 128], strides = [1, 1]} : vector<2x384xf32> to vector<2x128xf32>
    %50 = arith.mulf %48, %28 : vector<2x128xf32>
    %51 = arith.mulf %47, %46 : vector<2x128xf32>
    %52 = arith.addf %50, %51 : vector<2x128xf32>
    %53 = math.tanh %52 : vector<2x128xf32>
    %54 = arith.mulf %49, %53 : vector<2x128xf32>
    %55 = vector.extract_strided_slice %34 {offsets = [0, 512], sizes = [2, 512], strides = [1, 1]} : vector<2x1024xf32> to vector<2x512xf32>
    %56 = arith.addf %55, %11 : vector<2x512xf32>
    %57 = vector.extract_strided_slice %56 {offsets = [0, 0], sizes = [2, 384], strides = [1, 1]} : vector<2x512xf32> to vector<2x384xf32>
    %58 = arith.negf %57 : vector<2x384xf32>
    %59 = math.exp %58 : vector<2x384xf32>
    %cst_23 = arith.constant 1.000000e+00 : f32
    %60 = vector.broadcast %cst_23 : f32 to vector<2x384xf32>
    %61 = arith.addf %60, %59 : vector<2x384xf32>
    %62 = arith.divf %60, %61 : vector<2x384xf32>
    %63 = vector.extract_strided_slice %56 {offsets = [0, 384], sizes = [2, 128], strides = [1, 1]} : vector<2x512xf32> to vector<2x128xf32>
    %64 = math.tanh %63 : vector<2x128xf32>
    %65 = vector.extract_strided_slice %62 {offsets = [0, 0], sizes = [2, 128], strides = [1, 1]} : vector<2x384xf32> to vector<2x128xf32>
    %66 = vector.extract_strided_slice %62 {offsets = [0, 128], sizes = [2, 128], strides = [1, 1]} : vector<2x384xf32> to vector<2x128xf32>
    %67 = vector.extract_strided_slice %62 {offsets = [0, 256], sizes = [2, 128], strides = [1, 1]} : vector<2x384xf32> to vector<2x128xf32>
    %68 = arith.mulf %66, %12 : vector<2x128xf32>
    %69 = arith.mulf %65, %64 : vector<2x128xf32>
    %70 = arith.addf %68, %69 : vector<2x128xf32>
    %71 = math.tanh %70 : vector<2x128xf32>
    %72 = arith.mulf %67, %71 : vector<2x128xf32>
    %73 = arith.addf %54, %72 : vector<2x128xf32>
    %74 = arith.truncf %73 : vector<2x128xf32> to vector<2x128xbf16>
    %c0_24 = arith.constant 0 : index
    %c0_25 = arith.constant 0 : index
    %75 = vector.load %arg3[%c0_24, %c0_25] : memref<128x1024xbf16, #tpu.memory_space<vmem>>, vector<128x1024xbf16>
    %cst_26 = arith.constant dense<0.000000e+00> : vector<2x1024xf32>
    %76 = tpu.matmul %74, %75, %cst_26 {dimension_numbers = #tpu.dot_dimension_numbers<[1], [0], [0], [1], [0, 0, 1, 1], [], []>} : vector<2x128xbf16>, vector<128x1024xbf16>, vector<2x1024xf32> -> vector<2x1024xf32>
    %77 = vector.extract_strided_slice %76 {offsets = [0, 0], sizes = [2, 512], strides = [1, 1]} : vector<2x1024xf32> to vector<2x512xf32>
    %c2 = arith.constant 2 : index
    %c0_27 = arith.constant 0 : index
    %c0_28 = arith.constant 0 : index
    %78 = vector.load %arg8[%c2, %c0_27, %c0_28] : memref<8x2x512xf32, #tpu.memory_space<vmem>>, vector<1x2x512xf32>
    %79 = vector.shape_cast %78 : vector<1x2x512xf32> to vector<2x512xf32>
    %80 = arith.addf %77, %79 : vector<2x512xf32>
    %81 = vector.extract_strided_slice %80 {offsets = [0, 0], sizes = [2, 384], strides = [1, 1]} : vector<2x512xf32> to vector<2x384xf32>
    %82 = arith.negf %81 : vector<2x384xf32>
    %83 = math.exp %82 : vector<2x384xf32>
    %cst_29 = arith.constant 1.000000e+00 : f32
    %84 = vector.broadcast %cst_29 : f32 to vector<2x384xf32>
    %85 = arith.addf %84, %83 : vector<2x384xf32>
    %86 = arith.divf %84, %85 : vector<2x384xf32>
    %87 = vector.extract_strided_slice %80 {offsets = [0, 384], sizes = [2, 128], strides = [1, 1]} : vector<2x512xf32> to vector<2x128xf32>
    %88 = math.tanh %87 : vector<2x128xf32>
    %89 = vector.extract_strided_slice %86 {offsets = [0, 0], sizes = [2, 128], strides = [1, 1]} : vector<2x384xf32> to vector<2x128xf32>
    %90 = vector.extract_strided_slice %86 {offsets = [0, 128], sizes = [2, 128], strides = [1, 1]} : vector<2x384xf32> to vector<2x128xf32>
    %91 = vector.extract_strided_slice %86 {offsets = [0, 256], sizes = [2, 128], strides = [1, 1]} : vector<2x384xf32> to vector<2x128xf32>
    %92 = arith.mulf %90, %52 : vector<2x128xf32>
    %93 = arith.mulf %89, %88 : vector<2x128xf32>
    %94 = arith.addf %92, %93 : vector<2x128xf32>
    %95 = math.tanh %94 : vector<2x128xf32>
    %96 = arith.mulf %91, %95 : vector<2x128xf32>
    %97 = vector.extract_strided_slice %76 {offsets = [0, 512], sizes = [2, 512], strides = [1, 1]} : vector<2x1024xf32> to vector<2x512xf32>
    %98 = arith.addf %97, %11 : vector<2x512xf32>
    %99 = vector.extract_strided_slice %98 {offsets = [0, 0], sizes = [2, 384], strides = [1, 1]} : vector<2x512xf32> to vector<2x384xf32>
    %100 = arith.negf %99 : vector<2x384xf32>
    %101 = math.exp %100 : vector<2x384xf32>
    %cst_30 = arith.constant 1.000000e+00 : f32
    %102 = vector.broadcast %cst_30 : f32 to vector<2x384xf32>
    %103 = arith.addf %102, %101 : vector<2x384xf32>
    %104 = arith.divf %102, %103 : vector<2x384xf32>
    %105 = vector.extract_strided_slice %98 {offsets = [0, 384], sizes = [2, 128], strides = [1, 1]} : vector<2x512xf32> to vector<2x128xf32>
    %106 = math.tanh %105 : vector<2x128xf32>
    %107 = vector.extract_strided_slice %104 {offsets = [0, 0], sizes = [2, 128], strides = [1, 1]} : vector<2x384xf32> to vector<2x128xf32>
    %108 = vector.extract_strided_slice %104 {offsets = [0, 128], sizes = [2, 128], strides = [1, 1]} : vector<2x384xf32> to vector<2x128xf32>
    %109 = vector.extract_strided_slice %104 {offsets = [0, 256], sizes = [2, 128], strides = [1, 1]} : vector<2x384xf32> to vector<2x128xf32>
    %110 = arith.mulf %108, %70 : vector<2x128xf32>
    %111 = arith.mulf %107, %106 : vector<2x128xf32>
    %112 = arith.addf %110, %111 : vector<2x128xf32>
    %113 = math.tanh %112 : vector<2x128xf32>
    %114 = arith.mulf %109, %113 : vector<2x128xf32>
    %115 = arith.addf %96, %114 : vector<2x128xf32>
    %116 = arith.truncf %115 : vector<2x128xf32> to vector<2x128xbf16>
    %c0_31 = arith.constant 0 : index
    %c0_32 = arith.constant 0 : index
    %117 = vector.load %arg3[%c0_31, %c0_32] : memref<128x1024xbf16, #tpu.memory_space<vmem>>, vector<128x1024xbf16>
    %cst_33 = arith.constant dense<0.000000e+00> : vector<2x1024xf32>
    %118 = tpu.matmul %116, %117, %cst_33 {dimension_numbers = #tpu.dot_dimension_numbers<[1], [0], [0], [1], [0, 0, 1, 1], [], []>} : vector<2x128xbf16>, vector<128x1024xbf16>, vector<2x1024xf32> -> vector<2x1024xf32>
    %119 = vector.extract_strided_slice %118 {offsets = [0, 0], sizes = [2, 512], strides = [1, 1]} : vector<2x1024xf32> to vector<2x512xf32>
    %c3 = arith.constant 3 : index
    %c0_34 = arith.constant 0 : index
    %c0_35 = arith.constant 0 : index
    %120 = vector.load %arg8[%c3, %c0_34, %c0_35] : memref<8x2x512xf32, #tpu.memory_space<vmem>>, vector<1x2x512xf32>
    %121 = vector.shape_cast %120 : vector<1x2x512xf32> to vector<2x512xf32>
    %122 = arith.addf %119, %121 : vector<2x512xf32>
    %123 = vector.extract_strided_slice %122 {offsets = [0, 0], sizes = [2, 384], strides = [1, 1]} : vector<2x512xf32> to vector<2x384xf32>
    %124 = arith.negf %123 : vector<2x384xf32>
    %125 = math.exp %124 : vector<2x384xf32>
    %cst_36 = arith.constant 1.000000e+00 : f32
    %126 = vector.broadcast %cst_36 : f32 to vector<2x384xf32>
    %127 = arith.addf %126, %125 : vector<2x384xf32>
    %128 = arith.divf %126, %127 : vector<2x384xf32>
    %129 = vector.extract_strided_slice %122 {offsets = [0, 384], sizes = [2, 128], strides = [1, 1]} : vector<2x512xf32> to vector<2x128xf32>
    %130 = math.tanh %129 : vector<2x128xf32>
    %131 = vector.extract_strided_slice %128 {offsets = [0, 0], sizes = [2, 128], strides = [1, 1]} : vector<2x384xf32> to vector<2x128xf32>
    %132 = vector.extract_strided_slice %128 {offsets = [0, 128], sizes = [2, 128], strides = [1, 1]} : vector<2x384xf32> to vector<2x128xf32>
    %133 = vector.extract_strided_slice %128 {offsets = [0, 256], sizes = [2, 128], strides = [1, 1]} : vector<2x384xf32> to vector<2x128xf32>
    %134 = arith.mulf %132, %94 : vector<2x128xf32>
    %135 = arith.mulf %131, %130 : vector<2x128xf32>
    %136 = arith.addf %134, %135 : vector<2x128xf32>
    %137 = math.tanh %136 : vector<2x128xf32>
    %138 = arith.mulf %133, %137 : vector<2x128xf32>
    %139 = vector.extract_strided_slice %118 {offsets = [0, 512], sizes = [2, 512], strides = [1, 1]} : vector<2x1024xf32> to vector<2x512xf32>
    %140 = arith.addf %139, %11 : vector<2x512xf32>
    %141 = vector.extract_strided_slice %140 {offsets = [0, 0], sizes = [2, 384], strides = [1, 1]} : vector<2x512xf32> to vector<2x384xf32>
    %142 = arith.negf %141 : vector<2x384xf32>
    %143 = math.exp %142 : vector<2x384xf32>
    %cst_37 = arith.constant 1.000000e+00 : f32
    %144 = vector.broadcast %cst_37 : f32 to vector<2x384xf32>
    %145 = arith.addf %144, %143 : vector<2x384xf32>
    %146 = arith.divf %144, %145 : vector<2x384xf32>
    %147 = vector.extract_strided_slice %140 {offsets = [0, 384], sizes = [2, 128], strides = [1, 1]} : vector<2x512xf32> to vector<2x128xf32>
    %148 = math.tanh %147 : vector<2x128xf32>
    %149 = vector.extract_strided_slice %146 {offsets = [0, 0], sizes = [2, 128], strides = [1, 1]} : vector<2x384xf32> to vector<2x128xf32>
    %150 = vector.extract_strided_slice %146 {offsets = [0, 128], sizes = [2, 128], strides = [1, 1]} : vector<2x384xf32> to vector<2x128xf32>
    %151 = vector.extract_strided_slice %146 {offsets = [0, 256], sizes = [2, 128], strides = [1, 1]} : vector<2x384xf32> to vector<2x128xf32>
    %152 = arith.mulf %150, %112 : vector<2x128xf32>
    %153 = arith.mulf %149, %148 : vector<2x128xf32>
    %154 = arith.addf %152, %153 : vector<2x128xf32>
    %155 = math.tanh %154 : vector<2x128xf32>
    %156 = arith.mulf %151, %155 : vector<2x128xf32>
    %157 = arith.addf %138, %156 : vector<2x128xf32>
    %158 = arith.truncf %157 : vector<2x128xf32> to vector<2x128xbf16>
    %c0_38 = arith.constant 0 : index
    %c0_39 = arith.constant 0 : index
    %159 = vector.load %arg3[%c0_38, %c0_39] : memref<128x1024xbf16, #tpu.memory_space<vmem>>, vector<128x1024xbf16>
    %cst_40 = arith.constant dense<0.000000e+00> : vector<2x1024xf32>
    %160 = tpu.matmul %158, %159, %cst_40 {dimension_numbers = #tpu.dot_dimension_numbers<[1], [0], [0], [1], [0, 0, 1, 1], [], []>} : vector<2x128xbf16>, vector<128x1024xbf16>, vector<2x1024xf32> -> vector<2x1024xf32>
    %161 = vector.extract_strided_slice %160 {offsets = [0, 0], sizes = [2, 512], strides = [1, 1]} : vector<2x1024xf32> to vector<2x512xf32>
    %c4 = arith.constant 4 : index
    %c0_41 = arith.constant 0 : index
    %c0_42 = arith.constant 0 : index
    %162 = vector.load %arg8[%c4, %c0_41, %c0_42] : memref<8x2x512xf32, #tpu.memory_space<vmem>>, vector<1x2x512xf32>
    %163 = vector.shape_cast %162 : vector<1x2x512xf32> to vector<2x512xf32>
    %164 = arith.addf %161, %163 : vector<2x512xf32>
    %165 = vector.extract_strided_slice %164 {offsets = [0, 0], sizes = [2, 384], strides = [1, 1]} : vector<2x512xf32> to vector<2x384xf32>
    %166 = arith.negf %165 : vector<2x384xf32>
    %167 = math.exp %166 : vector<2x384xf32>
    %cst_43 = arith.constant 1.000000e+00 : f32
    %168 = vector.broadcast %cst_43 : f32 to vector<2x384xf32>
    %169 = arith.addf %168, %167 : vector<2x384xf32>
    %170 = arith.divf %168, %169 : vector<2x384xf32>
    %171 = vector.extract_strided_slice %164 {offsets = [0, 384], sizes = [2, 128], strides = [1, 1]} : vector<2x512xf32> to vector<2x128xf32>
    %172 = math.tanh %171 : vector<2x128xf32>
    %173 = vector.extract_strided_slice %170 {offsets = [0, 0], sizes = [2, 128], strides = [1, 1]} : vector<2x384xf32> to vector<2x128xf32>
    %174 = vector.extract_strided_slice %170 {offsets = [0, 128], sizes = [2, 128], strides = [1, 1]} : vector<2x384xf32> to vector<2x128xf32>
    %175 = vector.extract_strided_slice %170 {offsets = [0, 256], sizes = [2, 128], strides = [1, 1]} : vector<2x384xf32> to vector<2x128xf32>
    %176 = arith.mulf %174, %136 : vector<2x128xf32>
    %177 = arith.mulf %173, %172 : vector<2x128xf32>
    %178 = arith.addf %176, %177 : vector<2x128xf32>
    %179 = math.tanh %178 : vector<2x128xf32>
    %180 = arith.mulf %175, %179 : vector<2x128xf32>
    %181 = vector.extract_strided_slice %160 {offsets = [0, 512], sizes = [2, 512], strides = [1, 1]} : vector<2x1024xf32> to vector<2x512xf32>
    %182 = arith.addf %181, %11 : vector<2x512xf32>
    %183 = vector.extract_strided_slice %182 {offsets = [0, 0], sizes = [2, 384], strides = [1, 1]} : vector<2x512xf32> to vector<2x384xf32>
    %184 = arith.negf %183 : vector<2x384xf32>
    %185 = math.exp %184 : vector<2x384xf32>
    %cst_44 = arith.constant 1.000000e+00 : f32
    %186 = vector.broadcast %cst_44 : f32 to vector<2x384xf32>
    %187 = arith.addf %186, %185 : vector<2x384xf32>
    %188 = arith.divf %186, %187 : vector<2x384xf32>
    %189 = vector.extract_strided_slice %182 {offsets = [0, 384], sizes = [2, 128], strides = [1, 1]} : vector<2x512xf32> to vector<2x128xf32>
    %190 = math.tanh %189 : vector<2x128xf32>
    %191 = vector.extract_strided_slice %188 {offsets = [0, 0], sizes = [2, 128], strides = [1, 1]} : vector<2x384xf32> to vector<2x128xf32>
    %192 = vector.extract_strided_slice %188 {offsets = [0, 128], sizes = [2, 128], strides = [1, 1]} : vector<2x384xf32> to vector<2x128xf32>
    %193 = vector.extract_strided_slice %188 {offsets = [0, 256], sizes = [2, 128], strides = [1, 1]} : vector<2x384xf32> to vector<2x128xf32>
    %194 = arith.mulf %192, %154 : vector<2x128xf32>
    %195 = arith.mulf %191, %190 : vector<2x128xf32>
    %196 = arith.addf %194, %195 : vector<2x128xf32>
    %197 = math.tanh %196 : vector<2x128xf32>
    %198 = arith.mulf %193, %197 : vector<2x128xf32>
    %199 = arith.addf %180, %198 : vector<2x128xf32>
    %200 = arith.truncf %199 : vector<2x128xf32> to vector<2x128xbf16>
    %c0_45 = arith.constant 0 : index
    %c0_46 = arith.constant 0 : index
    %201 = vector.load %arg3[%c0_45, %c0_46] : memref<128x1024xbf16, #tpu.memory_space<vmem>>, vector<128x1024xbf16>
    %cst_47 = arith.constant dense<0.000000e+00> : vector<2x1024xf32>
    %202 = tpu.matmul %200, %201, %cst_47 {dimension_numbers = #tpu.dot_dimension_numbers<[1], [0], [0], [1], [0, 0, 1, 1], [], []>} : vector<2x128xbf16>, vector<128x1024xbf16>, vector<2x1024xf32> -> vector<2x1024xf32>
    %203 = vector.extract_strided_slice %202 {offsets = [0, 0], sizes = [2, 512], strides = [1, 1]} : vector<2x1024xf32> to vector<2x512xf32>
    %c5 = arith.constant 5 : index
    %c0_48 = arith.constant 0 : index
    %c0_49 = arith.constant 0 : index
    %204 = vector.load %arg8[%c5, %c0_48, %c0_49] : memref<8x2x512xf32, #tpu.memory_space<vmem>>, vector<1x2x512xf32>
    %205 = vector.shape_cast %204 : vector<1x2x512xf32> to vector<2x512xf32>
    %206 = arith.addf %203, %205 : vector<2x512xf32>
    %207 = vector.extract_strided_slice %206 {offsets = [0, 0], sizes = [2, 384], strides = [1, 1]} : vector<2x512xf32> to vector<2x384xf32>
    %208 = arith.negf %207 : vector<2x384xf32>
    %209 = math.exp %208 : vector<2x384xf32>
    %cst_50 = arith.constant 1.000000e+00 : f32
    %210 = vector.broadcast %cst_50 : f32 to vector<2x384xf32>
    %211 = arith.addf %210, %209 : vector<2x384xf32>
    %212 = arith.divf %210, %211 : vector<2x384xf32>
    %213 = vector.extract_strided_slice %206 {offsets = [0, 384], sizes = [2, 128], strides = [1, 1]} : vector<2x512xf32> to vector<2x128xf32>
    %214 = math.tanh %213 : vector<2x128xf32>
    %215 = vector.extract_strided_slice %212 {offsets = [0, 0], sizes = [2, 128], strides = [1, 1]} : vector<2x384xf32> to vector<2x128xf32>
    %216 = vector.extract_strided_slice %212 {offsets = [0, 128], sizes = [2, 128], strides = [1, 1]} : vector<2x384xf32> to vector<2x128xf32>
    %217 = vector.extract_strided_slice %212 {offsets = [0, 256], sizes = [2, 128], strides = [1, 1]} : vector<2x384xf32> to vector<2x128xf32>
    %218 = arith.mulf %216, %178 : vector<2x128xf32>
    %219 = arith.mulf %215, %214 : vector<2x128xf32>
    %220 = arith.addf %218, %219 : vector<2x128xf32>
    %221 = math.tanh %220 : vector<2x128xf32>
    %222 = arith.mulf %217, %221 : vector<2x128xf32>
    %223 = vector.extract_strided_slice %202 {offsets = [0, 512], sizes = [2, 512], strides = [1, 1]} : vector<2x1024xf32> to vector<2x512xf32>
    %224 = arith.addf %223, %11 : vector<2x512xf32>
    %225 = vector.extract_strided_slice %224 {offsets = [0, 0], sizes = [2, 384], strides = [1, 1]} : vector<2x512xf32> to vector<2x384xf32>
    %226 = arith.negf %225 : vector<2x384xf32>
    %227 = math.exp %226 : vector<2x384xf32>
    %cst_51 = arith.constant 1.000000e+00 : f32
    %228 = vector.broadcast %cst_51 : f32 to vector<2x384xf32>
    %229 = arith.addf %228, %227 : vector<2x384xf32>
    %230 = arith.divf %228, %229 : vector<2x384xf32>
    %231 = vector.extract_strided_slice %224 {offsets = [0, 384], sizes = [2, 128], strides = [1, 1]} : vector<2x512xf32> to vector<2x128xf32>
    %232 = math.tanh %231 : vector<2x128xf32>
    %233 = vector.extract_strided_slice %230 {offsets = [0, 0], sizes = [2, 128], strides = [1, 1]} : vector<2x384xf32> to vector<2x128xf32>
    %234 = vector.extract_strided_slice %230 {offsets = [0, 128], sizes = [2, 128], strides = [1, 1]} : vector<2x384xf32> to vector<2x128xf32>
    %235 = vector.extract_strided_slice %230 {offsets = [0, 256], sizes = [2, 128], strides = [1, 1]} : vector<2x384xf32> to vector<2x128xf32>
    %236 = arith.mulf %234, %196 : vector<2x128xf32>
    %237 = arith.mulf %233, %232 : vector<2x128xf32>
    %238 = arith.addf %236, %237 : vector<2x128xf32>
    %239 = math.tanh %238 : vector<2x128xf32>
    %240 = arith.mulf %235, %239 : vector<2x128xf32>
    %241 = arith.addf %222, %240 : vector<2x128xf32>
    %242 = arith.truncf %241 : vector<2x128xf32> to vector<2x128xbf16>
    %c0_52 = arith.constant 0 : index
    %c0_53 = arith.constant 0 : index
    %243 = vector.load %arg3[%c0_52, %c0_53] : memref<128x1024xbf16, #tpu.memory_space<vmem>>, vector<128x1024xbf16>
    %cst_54 = arith.constant dense<0.000000e+00> : vector<2x1024xf32>
    %244 = tpu.matmul %242, %243, %cst_54 {dimension_numbers = #tpu.dot_dimension_numbers<[1], [0], [0], [1], [0, 0, 1, 1], [], []>} : vector<2x128xbf16>, vector<128x1024xbf16>, vector<2x1024xf32> -> vector<2x1024xf32>
    %245 = vector.extract_strided_slice %244 {offsets = [0, 0], sizes = [2, 512], strides = [1, 1]} : vector<2x1024xf32> to vector<2x512xf32>
    %c6 = arith.constant 6 : index
    %c0_55 = arith.constant 0 : index
    %c0_56 = arith.constant 0 : index
    %246 = vector.load %arg8[%c6, %c0_55, %c0_56] : memref<8x2x512xf32, #tpu.memory_space<vmem>>, vector<1x2x512xf32>
    %247 = vector.shape_cast %246 : vector<1x2x512xf32> to vector<2x512xf32>
    %248 = arith.addf %245, %247 : vector<2x512xf32>
    %249 = vector.extract_strided_slice %248 {offsets = [0, 0], sizes = [2, 384], strides = [1, 1]} : vector<2x512xf32> to vector<2x384xf32>
    %250 = arith.negf %249 : vector<2x384xf32>
    %251 = math.exp %250 : vector<2x384xf32>
    %cst_57 = arith.constant 1.000000e+00 : f32
    %252 = vector.broadcast %cst_57 : f32 to vector<2x384xf32>
    %253 = arith.addf %252, %251 : vector<2x384xf32>
    %254 = arith.divf %252, %253 : vector<2x384xf32>
    %255 = vector.extract_strided_slice %248 {offsets = [0, 384], sizes = [2, 128], strides = [1, 1]} : vector<2x512xf32> to vector<2x128xf32>
    %256 = math.tanh %255 : vector<2x128xf32>
    %257 = vector.extract_strided_slice %254 {offsets = [0, 0], sizes = [2, 128], strides = [1, 1]} : vector<2x384xf32> to vector<2x128xf32>
    %258 = vector.extract_strided_slice %254 {offsets = [0, 128], sizes = [2, 128], strides = [1, 1]} : vector<2x384xf32> to vector<2x128xf32>
    %259 = vector.extract_strided_slice %254 {offsets = [0, 256], sizes = [2, 128], strides = [1, 1]} : vector<2x384xf32> to vector<2x128xf32>
    %260 = arith.mulf %258, %220 : vector<2x128xf32>
    %261 = arith.mulf %257, %256 : vector<2x128xf32>
    %262 = arith.addf %260, %261 : vector<2x128xf32>
    %263 = math.tanh %262 : vector<2x128xf32>
    %264 = arith.mulf %259, %263 : vector<2x128xf32>
    %265 = vector.extract_strided_slice %244 {offsets = [0, 512], sizes = [2, 512], strides = [1, 1]} : vector<2x1024xf32> to vector<2x512xf32>
    %266 = arith.addf %265, %11 : vector<2x512xf32>
    %267 = vector.extract_strided_slice %266 {offsets = [0, 0], sizes = [2, 384], strides = [1, 1]} : vector<2x512xf32> to vector<2x384xf32>
    %268 = arith.negf %267 : vector<2x384xf32>
    %269 = math.exp %268 : vector<2x384xf32>
    %cst_58 = arith.constant 1.000000e+00 : f32
    %270 = vector.broadcast %cst_58 : f32 to vector<2x384xf32>
    %271 = arith.addf %270, %269 : vector<2x384xf32>
    %272 = arith.divf %270, %271 : vector<2x384xf32>
    %273 = vector.extract_strided_slice %266 {offsets = [0, 384], sizes = [2, 128], strides = [1, 1]} : vector<2x512xf32> to vector<2x128xf32>
    %274 = math.tanh %273 : vector<2x128xf32>
    %275 = vector.extract_strided_slice %272 {offsets = [0, 0], sizes = [2, 128], strides = [1, 1]} : vector<2x384xf32> to vector<2x128xf32>
    %276 = vector.extract_strided_slice %272 {offsets = [0, 128], sizes = [2, 128], strides = [1, 1]} : vector<2x384xf32> to vector<2x128xf32>
    %277 = vector.extract_strided_slice %272 {offsets = [0, 256], sizes = [2, 128], strides = [1, 1]} : vector<2x384xf32> to vector<2x128xf32>
    %278 = arith.mulf %276, %238 : vector<2x128xf32>
    %279 = arith.mulf %275, %274 : vector<2x128xf32>
    %280 = arith.addf %278, %279 : vector<2x128xf32>
    %281 = math.tanh %280 : vector<2x128xf32>
    %282 = arith.mulf %277, %281 : vector<2x128xf32>
    %283 = arith.addf %264, %282 : vector<2x128xf32>
    %284 = arith.truncf %283 : vector<2x128xf32> to vector<2x128xbf16>
    %c0_59 = arith.constant 0 : index
    %c0_60 = arith.constant 0 : index
    %285 = vector.load %arg3[%c0_59, %c0_60] : memref<128x1024xbf16, #tpu.memory_space<vmem>>, vector<128x1024xbf16>
    %cst_61 = arith.constant dense<0.000000e+00> : vector<2x1024xf32>
    %286 = tpu.matmul %284, %285, %cst_61 {dimension_numbers = #tpu.dot_dimension_numbers<[1], [0], [0], [1], [0, 0, 1, 1], [], []>} : vector<2x128xbf16>, vector<128x1024xbf16>, vector<2x1024xf32> -> vector<2x1024xf32>
    %287 = vector.extract_strided_slice %286 {offsets = [0, 0], sizes = [2, 512], strides = [1, 1]} : vector<2x1024xf32> to vector<2x512xf32>
    %c7 = arith.constant 7 : index
    %c0_62 = arith.constant 0 : index
    %c0_63 = arith.constant 0 : index
    %288 = vector.load %arg8[%c7, %c0_62, %c0_63] : memref<8x2x512xf32, #tpu.memory_space<vmem>>, vector<1x2x512xf32>
    %289 = vector.shape_cast %288 : vector<1x2x512xf32> to vector<2x512xf32>
    %290 = arith.addf %287, %289 : vector<2x512xf32>
    %291 = vector.extract_strided_slice %290 {offsets = [0, 0], sizes = [2, 384], strides = [1, 1]} : vector<2x512xf32> to vector<2x384xf32>
    %292 = arith.negf %291 : vector<2x384xf32>
    %293 = math.exp %292 : vector<2x384xf32>
    %cst_64 = arith.constant 1.000000e+00 : f32
    %294 = vector.broadcast %cst_64 : f32 to vector<2x384xf32>
    %295 = arith.addf %294, %293 : vector<2x384xf32>
    %296 = arith.divf %294, %295 : vector<2x384xf32>
    %297 = vector.extract_strided_slice %290 {offsets = [0, 384], sizes = [2, 128], strides = [1, 1]} : vector<2x512xf32> to vector<2x128xf32>
    %298 = math.tanh %297 : vector<2x128xf32>
    %299 = vector.extract_strided_slice %296 {offsets = [0, 0], sizes = [2, 128], strides = [1, 1]} : vector<2x384xf32> to vector<2x128xf32>
    %300 = vector.extract_strided_slice %296 {offsets = [0, 128], sizes = [2, 128], strides = [1, 1]} : vector<2x384xf32> to vector<2x128xf32>
    %301 = vector.extract_strided_slice %296 {offsets = [0, 256], sizes = [2, 128], strides = [1, 1]} : vector<2x384xf32> to vector<2x128xf32>
    %302 = arith.mulf %300, %262 : vector<2x128xf32>
    %303 = arith.mulf %299, %298 : vector<2x128xf32>
    %304 = arith.addf %302, %303 : vector<2x128xf32>
    %305 = math.tanh %304 : vector<2x128xf32>
    %306 = arith.mulf %301, %305 : vector<2x128xf32>
    %307 = vector.extract_strided_slice %286 {offsets = [0, 512], sizes = [2, 512], strides = [1, 1]} : vector<2x1024xf32> to vector<2x512xf32>
    %308 = arith.addf %307, %11 : vector<2x512xf32>
    %309 = vector.extract_strided_slice %308 {offsets = [0, 0], sizes = [2, 384], strides = [1, 1]} : vector<2x512xf32> to vector<2x384xf32>
    %310 = arith.negf %309 : vector<2x384xf32>
    %311 = math.exp %310 : vector<2x384xf32>
    %cst_65 = arith.constant 1.000000e+00 : f32
    %312 = vector.broadcast %cst_65 : f32 to vector<2x384xf32>
    %313 = arith.addf %312, %311 : vector<2x384xf32>
    %314 = arith.divf %312, %313 : vector<2x384xf32>
    %315 = vector.extract_strided_slice %308 {offsets = [0, 384], sizes = [2, 128], strides = [1, 1]} : vector<2x512xf32> to vector<2x128xf32>
    %316 = math.tanh %315 : vector<2x128xf32>
    %317 = vector.extract_strided_slice %314 {offsets = [0, 0], sizes = [2, 128], strides = [1, 1]} : vector<2x384xf32> to vector<2x128xf32>
    %318 = vector.extract_strided_slice %314 {offsets = [0, 128], sizes = [2, 128], strides = [1, 1]} : vector<2x384xf32> to vector<2x128xf32>
    %319 = vector.extract_strided_slice %314 {offsets = [0, 256], sizes = [2, 128], strides = [1, 1]} : vector<2x384xf32> to vector<2x128xf32>
    %320 = arith.mulf %318, %280 : vector<2x128xf32>
    %321 = arith.mulf %317, %316 : vector<2x128xf32>
    %322 = arith.addf %320, %321 : vector<2x128xf32>
    %323 = math.tanh %322 : vector<2x128xf32>
    %324 = arith.mulf %319, %323 : vector<2x128xf32>
    %325 = arith.addf %306, %324 : vector<2x128xf32>
    %326 = arith.truncf %325 : vector<2x128xf32> to vector<2x128xbf16>
    %c0_66 = arith.constant 0 : index
    %c0_67 = arith.constant 0 : index
    %327 = vector.load %arg3[%c0_66, %c0_67] : memref<128x1024xbf16, #tpu.memory_space<vmem>>, vector<128x1024xbf16>
    %cst_68 = arith.constant dense<0.000000e+00> : vector<2x1024xf32>
    %328 = tpu.matmul %326, %327, %cst_68 {dimension_numbers = #tpu.dot_dimension_numbers<[1], [0], [0], [1], [0, 0, 1, 1], [], []>} : vector<2x128xbf16>, vector<128x1024xbf16>, vector<2x1024xf32> -> vector<2x1024xf32>
    %329 = vector.extract_strided_slice %328 {offsets = [0, 512], sizes = [2, 512], strides = [1, 1]} : vector<2x1024xf32> to vector<2x512xf32>
    %330 = arith.addf %329, %11 : vector<2x512xf32>
    %331 = vector.extract_strided_slice %330 {offsets = [0, 0], sizes = [2, 384], strides = [1, 1]} : vector<2x512xf32> to vector<2x384xf32>
    %332 = arith.negf %331 : vector<2x384xf32>
    %333 = math.exp %332 : vector<2x384xf32>
    %cst_69 = arith.constant 1.000000e+00 : f32
    %334 = vector.broadcast %cst_69 : f32 to vector<2x384xf32>
    %335 = arith.addf %334, %333 : vector<2x384xf32>
    %336 = arith.divf %334, %335 : vector<2x384xf32>
    %337 = vector.extract_strided_slice %330 {offsets = [0, 384], sizes = [2, 128], strides = [1, 1]} : vector<2x512xf32> to vector<2x128xf32>
    %338 = math.tanh %337 : vector<2x128xf32>
    %339 = vector.extract_strided_slice %336 {offsets = [0, 0], sizes = [2, 128], strides = [1, 1]} : vector<2x384xf32> to vector<2x128xf32>
    %340 = vector.extract_strided_slice %336 {offsets = [0, 128], sizes = [2, 128], strides = [1, 1]} : vector<2x384xf32> to vector<2x128xf32>
    %341 = vector.extract_strided_slice %336 {offsets = [0, 256], sizes = [2, 128], strides = [1, 1]} : vector<2x384xf32> to vector<2x128xf32>
    %342 = arith.mulf %340, %322 : vector<2x128xf32>
    %343 = arith.mulf %339, %338 : vector<2x128xf32>
    %344 = arith.addf %342, %343 : vector<2x128xf32>
    %345 = math.tanh %344 : vector<2x128xf32>
    %346 = arith.mulf %341, %345 : vector<2x128xf32>
    %347 = arith.truncf %346 : vector<2x128xf32> to vector<2x128xbf16>
    %c0_70 = arith.constant 0 : index
    %c0_71 = arith.constant 0 : index
    %348 = vector.load %arg5[%c0_70, %c0_71] : memref<128x512xbf16, #tpu.memory_space<vmem>>, vector<128x512xbf16>
    %cst_72 = arith.constant dense<0.000000e+00> : vector<2x512xf32>
    %349 = tpu.matmul %347, %348, %cst_72 {dimension_numbers = #tpu.dot_dimension_numbers<[1], [0], [0], [1], [0, 0, 1, 1], [], []>} : vector<2x128xbf16>, vector<128x512xbf16>, vector<2x512xf32> -> vector<2x512xf32>
    %c0_73 = arith.constant 0 : index
    %c0_74 = arith.constant 0 : index
    %350 = vector.load %arg6[%c0_73, %c0_74] : memref<1x512xf32, #tpu.memory_space<vmem>>, vector<1x512xf32>
    %351 = vector.broadcast %350 : vector<1x512xf32> to vector<2x512xf32>
    %352 = arith.addf %349, %351 : vector<2x512xf32>
    %c0_75 = arith.constant 0 : index
    %c0_76 = arith.constant 0 : index
    %353 = vector.load %arg7[%c0_75, %c0_76] : memref<2x512xf32, #tpu.memory_space<vmem>>, vector<2x512xf32>
    tpu.vector_store %arg7[%c0_75, %c0_76], %352 {strides = array<i32>} : memref<2x512xf32, #tpu.memory_space<vmem>>, vector<2x512xf32>,
    return
  }
}

</mosaic_0001>

<llo_original>
// kernel: tpu_custom_call.1
$region0: #{tpu_custom_call.1}
  #allocation0 [shape = 'u32[]', space=smem, size = 0x4, offset = 0x4, fixed_abs, tag = 'smem constant byte address 0x4 - core index']
  #allocation1 [shape = 'u32[72,128]{1,0:T(1,128)}', space=vmem, size = 0x9000, scoped, tag = 'internal scratch']
  #allocation2 [shape = 'f32[8,2,512]{2,1,0:T(2,128)}', space=vmem, size = 0x8000, scoped, tag = 'scratch operand']
  %s0 = inlined_call_operand.vmem [shape: f32[8,2,1], index: 0, kind: input, shape index: {}]
  %s1 = inlined_call_operand.vmem [shape: f32[1,1,512], index: 1, kind: input, shape index: {}]
  %s2 = inlined_call_operand.vmem [shape: f32[1,1,512], index: 2, kind: input, shape index: {}]
  %s3 = inlined_call_operand.hbm [shape: bf16[128,1024], index: 3, kind: input, shape index: {}]
  %s4 = inlined_call_operand.vmem [shape: f32[1,512], index: 4, kind: input, shape index: {}]
  %s5 = inlined_call_operand.hbm [shape: bf16[128,512], index: 5, kind: input, shape index: {}]
  %s6 = inlined_call_operand.vmem [shape: f32[1,512], index: 6, kind: input, shape index: {}]
  %s7 = inlined_call_operand.hbm [shape: f32[2,512], index: 7, kind: output, shape index: {}]
  %s8 = sld [smem:[#allocation0]]
  $region46: #{tpu_custom_call.1} parent=0
    _
  %s10 = ssub.s32 1, %s8
  %s11 = scalar_select 0, %s10, %s8
  $region1: #{tpu_custom_call.1} parent=0
    #allocation3 [shape = 'u8[262144]{0}', space=vmem, size = 0x40000, scoped, tag = 'input window, operand 3, single buffered']
    #allocation4 [shape = 's32[1]{0}', space=sflag, size = 0x4, scoped, tag = 'scoped memory for tpu_custom_call.1']
    #allocation5 [shape = 's32[1]{0}', space=sflag, size = 0x4, scoped, tag = 'scoped memory for tpu_custom_call.1']
    #allocation6 [shape = 'u8[131072]{0}', space=vmem, size = 0x20000, scoped, tag = 'input window, operand 5, single buffered']
    #allocation7 [shape = 's32[1]{0}', space=sflag, size = 0x4, scoped, tag = 'scoped memory for tpu_custom_call.1']
    #allocation8 [shape = 'u8[4096]{0}', space=vmem, size = 0x1000, scoped, tag = 'output window, operand 0, single buffered']
    %12 = vsyncpa [#allocation4], 0
    %13 = vsyncpa [#allocation7], 0
    %14 = vsyncpa [#allocation5], 0
    // Predicated region
    $region2: #{tpu_custom_call.1} parent=1 // pred_check
      _
    $region3: #{tpu_custom_call.1} parent=1 // pred_check_branch
      %16 = sbr.rel (0) target = $region5
    $region4: #{tpu_custom_call.1} parent=1 // pred_region
      _
    $region5: #{tpu_custom_call.1} parent=1 // pred_fallthru
      _
    // Predicated region
    $region6: #{tpu_custom_call.1} parent=1 // pred_check
      _
    $region7: #{tpu_custom_call.1} parent=1 // pred_check_branch
      %18 = sbr.rel (0) target = $region9
    $region8: #{tpu_custom_call.1} parent=1 // pred_region
      _
    $region9: #{tpu_custom_call.1} parent=1 // pred_fallthru
      _
    // Predicated region
    $region10: #{tpu_custom_call.1} parent=1 // pred_check
      _
    $region11: #{tpu_custom_call.1} parent=1 // pred_check_branch
      %20 = sbr.rel (0) target = $region13
    $region12: #{tpu_custom_call.1} parent=1 // pred_region
      _
    $region13: #{tpu_custom_call.1} parent=1 // pred_fallthru
      _
    // Predicated region
    $region14: #{tpu_custom_call.1} parent=1 // pred_check
      _
    $region15: #{tpu_custom_call.1} parent=1 // pred_check_branch
      %22 = sbr.rel (0) target = $region17
    $region16: #{tpu_custom_call.1} parent=1 // pred_region
      %24 = vsyncadd [#allocation4], 0
      %s25 = sshll.u32 %s3, 4
      %s26 = int_to_ptr.hbm [resolvable:$true] %s25
      %s27 = sshll.u32 [#allocation3], 4
      %s28 = int_to_ptr.vmem [resolvable:$true] %s27
      %33 = dma.hbm_to_vmem [thread:$0]  %s26, 8192, %s28, [#allocation4], 512, 512, 32
    $region17: #{tpu_custom_call.1} parent=1 // pred_fallthru
      _
    // Predicated region
    $region18: #{tpu_custom_call.1} parent=1 // pred_check
      _
    $region19: #{tpu_custom_call.1} parent=1 // pred_check_branch
      %35 = sbr.rel (0) target = $region21
    $region20: #{tpu_custom_call.1} parent=1 // pred_region
      _
    $region21: #{tpu_custom_call.1} parent=1 // pred_fallthru
      _
    // Predicated region
    $region22: #{tpu_custom_call.1} parent=1 // pred_check
      _
    $region23: #{tpu_custom_call.1} parent=1 // pred_check_branch
      %37 = sbr.rel (0) target = $region25
    $region24: #{tpu_custom_call.1} parent=1 // pred_region
      %39 = vsyncadd [#allocation7], 0
      %s40 = sshll.u32 %s5, 4
      %s41 = int_to_ptr.hbm [resolvable:$true] %s40
      %s42 = sshll.u32 [#allocation6], 4
      %s43 = int_to_ptr.vmem [resolvable:$true] %s42
      %48 = dma.hbm_to_vmem [thread:$0]  %s41, 4096, %s43, [#allocation7], 256, 256, 16
    $region25: #{tpu_custom_call.1} parent=1 // pred_fallthru
      _
    // Predicated region
    $region26: #{tpu_custom_call.1} parent=1 // pred_check
      _
    $region27: #{tpu_custom_call.1} parent=1 // pred_check_branch
      %50 = sbr.rel (0) target = $region29
    $region28: #{tpu_custom_call.1} parent=1 // pred_region
      _
    $region29: #{tpu_custom_call.1} parent=1 // pred_fallthru
      _
    // Predicated region
    $region30: #{tpu_custom_call.1} parent=1 // pred_check
      _
    $region31: #{tpu_custom_call.1} parent=1 // pred_check_branch
      %52 = sbr.rel (0) target = $region33
    $region32: #{tpu_custom_call.1} parent=1 // pred_region
      %54 = dma.done [#allocation4], 8192
    $region33: #{tpu_custom_call.1} parent=1 // pred_fallthru
      _
    // Predicated region
    $region34: #{tpu_custom_call.1} parent=1 // pred_check
      _
    $region35: #{tpu_custom_call.1} parent=1 // pred_check_branch
      %56 = sbr.rel (0) target = $region37
    $region36: #{tpu_custom_call.1} parent=1 // pred_region
      %58 = dma.done [#allocation7], 4096
    $region37: #{tpu_custom_call.1} parent=1 // pred_fallthru
      _
    %v59 = vld [vmem:[%s0] sm:$0x3]
    %v60 = vld [vmem:[%s0 + $0x2] sm:$0x3]
    %v61 = vld [vmem:[%s0 + $0x4] sm:$0x3]
    %v62 = vld [vmem:[%s0 + $0x6] sm:$0x3]
    %v63 = vld [vmem:[%s0 + $0x8] sm:$0x3]
    %v64 = vld [vmem:[%s0 + $0xa] sm:$0x3]
    %v65 = vld [vmem:[%s0 + $0xc] sm:$0x3]
    %v66 = vld [vmem:[%s0 + $0xe] sm:$0x3]
    %v67 = vld [vmem:[%s1] sm:$0xf]
    %69 = vset.pattern.permute.xlu0 0
    %70 = vperm.xlu0 %69, %v59
    %v71 = vpop.permute.xlu0 %70
    %74 = vset.pattern.permute.xlu0 0
    %75 = vperm.xlu0 %74, %v60
    %v76 = vpop.permute.xlu0 %75
    %79 = vset.pattern.permute.xlu0 0
    %80 = vperm.xlu0 %79, %v61
    %v81 = vpop.permute.xlu0 %80
    %84 = vset.pattern.permute.xlu0 0
    %85 = vperm.xlu0 %84, %v62
    %v86 = vpop.permute.xlu0 %85
    %89 = vset.pattern.permute.xlu0 0
    %90 = vperm.xlu0 %89, %v63
    %v91 = vpop.permute.xlu0 %90
    %94 = vset.pattern.permute.xlu0 0
    %95 = vperm.xlu0 %94, %v64
    %v96 = vpop.permute.xlu0 %95
    %99 = vset.pattern.permute.xlu0 0
    %100 = vperm.xlu0 %99, %v65
    %v101 = vpop.permute.xlu0 %100
    %104 = vset.pattern.permute.xlu0 0
    %105 = vperm.xlu0 %104, %v66
    %v106 = vpop.permute.xlu0 %105
    %v109 = vperm.slane %v67, 0
    %v110 = vperm.slane %v67, 1
    %v111 = vperm.slane %v67, 2
    %v112 = vperm.slane %v67, 3
    %v117 = vmul.f32 %v71, %v109
    %v118 = vmul.f32 %v71, %v110
    %v119 = vmul.f32 %v71, %v111
    %v120 = vmul.f32 %v71, %v112
    %v121 = vmul.f32 %v76, %v109
    %v122 = vmul.f32 %v76, %v110
    %v123 = vmul.f32 %v76, %v111
    %v124 = vmul.f32 %v76, %v112
    %v125 = vmul.f32 %v81, %v109
    %v126 = vmul.f32 %v81, %v110
    %v127 = vmul.f32 %v81, %v111
    %v128 = vmul.f32 %v81, %v112
    %v129 = vmul.f32 %v86, %v109
    %v130 = vmul.f32 %v86, %v110
    %v131 = vmul.f32 %v86, %v111
    %v132 = vmul.f32 %v86, %v112
    %v133 = vmul.f32 %v91, %v109
    %v134 = vmul.f32 %v91, %v110
    %v135 = vmul.f32 %v91, %v111
    %v136 = vmul.f32 %v91, %v112
    %v137 = vmul.f32 %v96, %v109
    %v138 = vmul.f32 %v96, %v110
    %v139 = vmul.f32 %v96, %v111
    %v140 = vmul.f32 %v96, %v112
    %v141 = vmul.f32 %v101, %v109
    %v142 = vmul.f32 %v101, %v110
    %v143 = vmul.f32 %v101, %v111
    %v144 = vmul.f32 %v101, %v112
    %v145 = vmul.f32 %v106, %v109
    %v146 = vmul.f32 %v106, %v110
    %v147 = vmul.f32 %v106, %v111
    %v148 = vmul.f32 %v106, %v112
    %v149 = vld [vmem:[%s2] sm:$0xf]
    %v151 = vperm.slane %v149, 0
    %v152 = vperm.slane %v149, 1
    %v153 = vperm.slane %v149, 2
    %v154 = vperm.slane %v149, 3
    %v159 = vadd.f32 %v117, %v151
    %v160 = vadd.f32 %v118, %v152
    %v161 = vadd.f32 %v119, %v153
    %v162 = vadd.f32 %v120, %v154
    %v163 = vadd.f32 %v121, %v151
    %v164 = vadd.f32 %v122, %v152
    %v165 = vadd.f32 %v123, %v153
    %v166 = vadd.f32 %v124, %v154
    %v167 = vadd.f32 %v125, %v151
    %v168 = vadd.f32 %v126, %v152
    %v169 = vadd.f32 %v127, %v153
    %v170 = vadd.f32 %v128, %v154
    %v171 = vadd.f32 %v129, %v151
    %v172 = vadd.f32 %v130, %v152
    %v173 = vadd.f32 %v131, %v153
    %v174 = vadd.f32 %v132, %v154
    %v175 = vadd.f32 %v133, %v151
    %v176 = vadd.f32 %v134, %v152
    %v177 = vadd.f32 %v135, %v153
    %v178 = vadd.f32 %v136, %v154
    %v179 = vadd.f32 %v137, %v151
    %v180 = vadd.f32 %v138, %v152
    %v181 = vadd.f32 %v139, %v153
    %v182 = vadd.f32 %v140, %v154
    %v183 = vadd.f32 %v141, %v151
    %v184 = vadd.f32 %v142, %v152
    %v185 = vadd.f32 %v143, %v153
    %v186 = vadd.f32 %v144, %v154
    %v187 = vadd.f32 %v145, %v151
    %v188 = vadd.f32 %v146, %v152
    %v189 = vadd.f32 %v147, %v153
    %v190 = vadd.f32 %v148, %v154
    %v223 = vrot.slane %v160, 6
    %v224 = vrot.slane %v161, 4
    %v225 = vrot.slane %v162, 2
    %v226 = vrot.slane %v164, 6
    %v227 = vrot.slane %v165, 4
    %v228 = vrot.slane %v166, 2
    %v229 = vrot.slane %v168, 6
    %v230 = vrot.slane %v169, 4
    %v231 = vrot.slane %v170, 2
    %v232 = vrot.slane %v172, 6
    %v233 = vrot.slane %v173, 4
    %v234 = vrot.slane %v174, 2
    %v235 = vrot.slane %v176, 6
    %v236 = vrot.slane %v177, 4
    %v237 = vrot.slane %v178, 2
    %v238 = vrot.slane %v180, 6
    %v239 = vrot.slane %v181, 4
    %v240 = vrot.slane %v182, 2
    %v241 = vrot.slane %v184, 6
    %v242 = vrot.slane %v185, 4
    %v243 = vrot.slane %v186, 2
    %v244 = vrot.slane %v188, 6
    %v245 = vrot.slane %v189, 4
    %v246 = vrot.slane %v190, 2
    %vm247 = vcmask 1041408
    %v248 = vsel %vm247, %v159, %v223
    %vm249 = vcmask 1045508
    %v250 = vsel %vm249, %v224, %v225
    %vm251 = vcmask 1043456
    %v252 = vsel %vm251, %v248, %v250
    %v253 = vsel %vm247, %v163, %v226
    %v254 = vsel %vm249, %v227, %v228
    %v255 = vsel %vm251, %v253, %v254
    %v256 = vsel %vm247, %v167, %v229
    %v257 = vsel %vm249, %v230, %v231
    %v258 = vsel %vm251, %v256, %v257
    %v259 = vsel %vm247, %v171, %v232
    %v260 = vsel %vm249, %v233, %v234
    %v261 = vsel %vm251, %v259, %v260
    %v262 = vsel %vm247, %v175, %v235
    %v263 = vsel %vm249, %v236, %v237
    %v264 = vsel %vm251, %v262, %v263
    %v265 = vsel %vm247, %v179, %v238
    %v266 = vsel %vm249, %v239, %v240
    %v267 = vsel %vm251, %v265, %v266
    %v268 = vsel %vm247, %v183, %v241
    %v269 = vsel %vm249, %v242, %v243
    %v270 = vsel %vm251, %v268, %v269
    %v271 = vsel %vm247, %v187, %v244
    %v272 = vsel %vm249, %v245, %v246
    %v273 = vsel %vm251, %v271, %v272
    %282 = vst [vmem:[#allocation2] sm:$0xff] %v252
    %283 = vst [vmem:[#allocation2 + $0x8] sm:$0xff] %v255
    %284 = vst [vmem:[#allocation2 + $0x10] sm:$0xff] %v258
    %285 = vst [vmem:[#allocation2 + $0x18] sm:$0xff] %v261
    %286 = vst [vmem:[#allocation2 + $0x20] sm:$0xff] %v264
    %287 = vst [vmem:[#allocation2 + $0x28] sm:$0xff] %v267
    %288 = vst [vmem:[#allocation2 + $0x30] sm:$0xff] %v270
    %289 = vst [vmem:[#allocation2 + $0x38] sm:$0xff] %v273
    %v290 = vld [vmem:[%s4] sm:$0xf]
    %v292 = vperm.slane %v290, 0
    %v293 = vperm.slane %v290, 1
    %v294 = vperm.slane %v290, 2
    %v295 = vperm.slane %v290, 3
    %v300 = vld [vmem:[#allocation2] sm:$0xff]
    %v301 = vxor.u32 %v300, 2147483648
    %v302 = vmul.f32 %v301, 1.442695
    %v303 = vpow.pop %v302
    %v304 = vadd.f32 %v303, 1.0
    %v305 = vrcp.pop %v304
    %v306 = vmul.f32 %v304, %v305
    %v307 = vsub.f32 1.0, %v306
    %v308 = vmul.f32 %v305, %v307
    %v309 = vadd.f32 %v305, %v308
    %vm310 = vweird.f32 %v304
    %vm311 = vweird.f32 %v305
    %vm312 = vmor %vm310, %vm311
    %v313 = vsel %vm312, %v305, %v309
    %v314 = vand.u32 2147483647, %v304
    %vm315 = vcmp.eq.f32.partialorder %v314, 8.507059e+37
    %v316 = vand.u32 %v304, 2147483648
    %v317 = vor.u32 1.1754944e-38, %v316
    %v318 = vsel %vm315, %v317, %v313
    %v319 = vmul.f32 1.0, %v318
    %v321 = vrot.slane %v300, 6
    %v323 = vtanh.pop %v321
    %v325 = vrot.slane %v319, 2
    %v327 = vmul.f32 %v325, 0.0
    %v328 = vmul.f32 %v319, %v323
    %v329 = vadd.f32 %v327, %v328
    %v330 = vtanh.pop %v329
    %v331 = vrot.slane %v319, 4
    %v333 = vmul.f32 %v331, %v330
    %v334 = vadd.f32 %v333, 0.0
    %v335 = vpack.c.bf16 %v334, %v334
    %v336 = vld [vmem:[#allocation3] sm:$0xff]
    %v337 = vld [vmem:[#allocation3 + $0x8] sm:$0xff]
    %v338 = vld [vmem:[#allocation3 + $0x10] sm:$0xff]
    %v339 = vld [vmem:[#allocation3 + $0x18] sm:$0xff]
    %v340 = vld [vmem:[#allocation3 + $0x20] sm:$0xff]
    %v341 = vld [vmem:[#allocation3 + $0x28] sm:$0xff]
    %v342 = vld [vmem:[#allocation3 + $0x30] sm:$0xff]
    %v343 = vld [vmem:[#allocation3 + $0x38] sm:$0xff]
    %v344 = vld [vmem:[#allocation3 + $0x40] sm:$0xff]
    %v345 = vld [vmem:[#allocation3 + $0x48] sm:$0xff]
    %v346 = vld [vmem:[#allocation3 + $0x50] sm:$0xff]
    %v347 = vld [vmem:[#allocation3 + $0x58] sm:$0xff]
    %v348 = vld [vmem:[#allocation3 + $0x60] sm:$0xff]
    %v349 = vld [vmem:[#allocation3 + $0x68] sm:$0xff]
    %v350 = vld [vmem:[#allocation3 + $0x70] sm:$0xff]
    %v351 = vld [vmem:[#allocation3 + $0x78] sm:$0xff]
    %v352 = vld [vmem:[#allocation3 + $0x80] sm:$0xff]
    %v353 = vld [vmem:[#allocation3 + $0x88] sm:$0xff]
    %v354 = vld [vmem:[#allocation3 + $0x90] sm:$0xff]
    %v355 = vld [vmem:[#allocation3 + $0x98] sm:$0xff]
    %v356 = vld [vmem:[#allocation3 + $0xa0] sm:$0xff]
    %v357 = vld [vmem:[#allocation3 + $0xa8] sm:$0xff]
    %v358 = vld [vmem:[#allocation3 + $0xb0] sm:$0xff]
    %v359 = vld [vmem:[#allocation3 + $0xb8] sm:$0xff]
    %v360 = vld [vmem:[#allocation3 + $0xc0] sm:$0xff]
    %v361 = vld [vmem:[#allocation3 + $0xc8] sm:$0xff]
    %v362 = vld [vmem:[#allocation3 + $0xd0] sm:$0xff]
    %v363 = vld [vmem:[#allocation3 + $0xd8] sm:$0xff]
    %v364 = vld [vmem:[#allocation3 + $0xe0] sm:$0xff]
    %v365 = vld [vmem:[#allocation3 + $0xe8] sm:$0xff]
    %v366 = vld [vmem:[#allocation3 + $0xf0] sm:$0xff]
    %v367 = vld [vmem:[#allocation3 + $0xf8] sm:$0xff]
    %v368 = vld [vmem:[#allocation3 + $0x100] sm:$0xff]
    %v369 = vld [vmem:[#allocation3 + $0x108] sm:$0xff]
    %v370 = vld [vmem:[#allocation3 + $0x110] sm:$0xff]
    %v371 = vld [vmem:[#allocation3 + $0x118] sm:$0xff]
    %v372 = vld [vmem:[#allocation3 + $0x120] sm:$0xff]
    %v373 = vld [vmem:[#allocation3 + $0x128] sm:$0xff]
    %v374 = vld [vmem:[#allocation3 + $0x130] sm:$0xff]
    %v375 = vld [vmem:[#allocation3 + $0x138] sm:$0xff]
    %v376 = vld [vmem:[#allocation3 + $0x140] sm:$0xff]
    %v377 = vld [vmem:[#allocation3 + $0x148] sm:$0xff]
    %v378 = vld [vmem:[#allocation3 + $0x150] sm:$0xff]
    %v379 = vld [vmem:[#allocation3 + $0x158] sm:$0xff]
    %v380 = vld [vmem:[#allocation3 + $0x160] sm:$0xff]
    %v381 = vld [vmem:[#allocation3 + $0x168] sm:$0xff]
    %v382 = vld [vmem:[#allocation3 + $0x170] sm:$0xff]
    %v383 = vld [vmem:[#allocation3 + $0x178] sm:$0xff]
    %v384 = vld [vmem:[#allocation3 + $0x180] sm:$0xff]
    %v385 = vld [vmem:[#allocation3 + $0x188] sm:$0xff]
    %v386 = vld [vmem:[#allocation3 + $0x190] sm:$0xff]
    %v387 = vld [vmem:[#allocation3 + $0x198] sm:$0xff]
    %v388 = vld [vmem:[#allocation3 + $0x1a0] sm:$0xff]
    %v389 = vld [vmem:[#allocation3 + $0x1a8] sm:$0xff]
    %v390 = vld [vmem:[#allocation3 + $0x1b0] sm:$0xff]
    %v391 = vld [vmem:[#allocation3 + $0x1b8] sm:$0xff]
    %v392 = vld [vmem:[#allocation3 + $0x1c0] sm:$0xff]
    %v393 = vld [vmem:[#allocation3 + $0x1c8] sm:$0xff]
    %v394 = vld [vmem:[#allocation3 + $0x1d0] sm:$0xff]
    %v395 = vld [vmem:[#allocation3 + $0x1d8] sm:$0xff]
    %v396 = vld [vmem:[#allocation3 + $0x1e0] sm:$0xff]
    %v397 = vld [vmem:[#allocation3 + $0x1e8] sm:$0xff]
    %v398 = vld [vmem:[#allocation3 + $0x1f0] sm:$0xff]
    %v399 = vld [vmem:[#allocation3 + $0x1f8] sm:$0xff]
    %v464 = vunpack.c.l.b16 %v336
    %v465 = vunpack.c.h.b16 %v336
    %v466 = vunpack.c.l.b16 %v337
    %v467 = vunpack.c.h.b16 %v337
    %v468 = vunpack.c.l.b16 %v338
    %v469 = vunpack.c.h.b16 %v338
    %v470 = vunpack.c.l.b16 %v339
    %v471 = vunpack.c.h.b16 %v339
    %v472 = vunpack.c.l.b16 %v340
    %v473 = vunpack.c.h.b16 %v340
    %v474 = vunpack.c.l.b16 %v341
    %v475 = vunpack.c.h.b16 %v341
    %v476 = vunpack.c.l.b16 %v342
    %v477 = vunpack.c.h.b16 %v342
    %v478 = vunpack.c.l.b16 %v343
    %v479 = vunpack.c.h.b16 %v343
    %v480 = vunpack.c.l.b16 %v344
    %v481 = vunpack.c.h.b16 %v344
    %v482 = vunpack.c.l.b16 %v345
    %v483 = vunpack.c.h.b16 %v345
    %v484 = vunpack.c.l.b16 %v346
    %v485 = vunpack.c.h.b16 %v346
    %v486 = vunpack.c.l.b16 %v347
    %v487 = vunpack.c.h.b16 %v347
    %v488 = vunpack.c.l.b16 %v348
    %v489 = vunpack.c.h.b16 %v348
    %v490 = vunpack.c.l.b16 %v349
    %v491 = vunpack.c.h.b16 %v349
    %v492 = vunpack.c.l.b16 %v350
    %v493 = vunpack.c.h.b16 %v350
    %v494 = vunpack.c.l.b16 %v351
    %v495 = vunpack.c.h.b16 %v351
    %v496 = vunpack.c.l.b16 %v352
    %v497 = vunpack.c.h.b16 %v352
    %v498 = vunpack.c.l.b16 %v353
    %v499 = vunpack.c.h.b16 %v353
    %v500 = vunpack.c.l.b16 %v354
    %v501 = vunpack.c.h.b16 %v354
    %v502 = vunpack.c.l.b16 %v355
    %v503 = vunpack.c.h.b16 %v355
    %v504 = vunpack.c.l.b16 %v356
    %v505 = vunpack.c.h.b16 %v356
    %v506 = vunpack.c.l.b16 %v357
    %v507 = vunpack.c.h.b16 %v357
    %v508 = vunpack.c.l.b16 %v358
    %v509 = vunpack.c.h.b16 %v358
    %v510 = vunpack.c.l.b16 %v359
    %v511 = vunpack.c.h.b16 %v359
    %v512 = vunpack.c.l.b16 %v360
    %v513 = vunpack.c.h.b16 %v360
    %v514 = vunpack.c.l.b16 %v361
    %v515 = vunpack.c.h.b16 %v361
    %v516 = vunpack.c.l.b16 %v362
    %v517 = vunpack.c.h.b16 %v362
    %v518 = vunpack.c.l.b16 %v363
    %v519 = vunpack.c.h.b16 %v363
    %v520 = vunpack.c.l.b16 %v364
    %v521 = vunpack.c.h.b16 %v364
    %v522 = vunpack.c.l.b16 %v365
    %v523 = vunpack.c.h.b16 %v365
    %v524 = vunpack.c.l.b16 %v366
    %v525 = vunpack.c.h.b16 %v366
    %v526 = vunpack.c.l.b16 %v367
    %v527 = vunpack.c.h.b16 %v367
    %v528 = vunpack.c.l.b16 %v368
    %v529 = vunpack.c.h.b16 %v368
    %v530 = vunpack.c.l.b16 %v369
    %v531 = vunpack.c.h.b16 %v369
    %v532 = vunpack.c.l.b16 %v370
    %v533 = vunpack.c.h.b16 %v370
    %v534 = vunpack.c.l.b16 %v371
    %v535 = vunpack.c.h.b16 %v371
    %v536 = vunpack.c.l.b16 %v372
    %v537 = vunpack.c.h.b16 %v372
    %v538 = vunpack.c.l.b16 %v373
    %v539 = vunpack.c.h.b16 %v373
    %v540 = vunpack.c.l.b16 %v374
    %v541 = vunpack.c.h.b16 %v374
    %v542 = vunpack.c.l.b16 %v375
    %v543 = vunpack.c.h.b16 %v375
    %v544 = vunpack.c.l.b16 %v376
    %v545 = vunpack.c.h.b16 %v376
    %v546 = vunpack.c.l.b16 %v377
    %v547 = vunpack.c.h.b16 %v377
    %v548 = vunpack.c.l.b16 %v378
    %v549 = vunpack.c.h.b16 %v378
    %v550 = vunpack.c.l.b16 %v379
    %v551 = vunpack.c.h.b16 %v379
    %v552 = vunpack.c.l.b16 %v380
    %v553 = vunpack.c.h.b16 %v380
    %v554 = vunpack.c.l.b16 %v381
    %v555 = vunpack.c.h.b16 %v381
    %v556 = vunpack.c.l.b16 %v382
    %v557 = vunpack.c.h.b16 %v382
    %v558 = vunpack.c.l.b16 %v383
    %v559 = vunpack.c.h.b16 %v383
    %v560 = vunpack.c.l.b16 %v384
    %v561 = vunpack.c.h.b16 %v384
    %v562 = vunpack.c.l.b16 %v385
    %v563 = vunpack.c.h.b16 %v385
    %v564 = vunpack.c.l.b16 %v386
    %v565 = vunpack.c.h.b16 %v386
    %v566 = vunpack.c.l.b16 %v387
    %v567 = vunpack.c.h.b16 %v387
    %v568 = vunpack.c.l.b16 %v388
    %v569 = vunpack.c.h.b16 %v388
    %v570 = vunpack.c.l.b16 %v389
    %v571 = vunpack.c.h.b16 %v389
    %v572 = vunpack.c.l.b16 %v390
    %v573 = vunpack.c.h.b16 %v390
    %v574 = vunpack.c.l.b16 %v391
    %v575 = vunpack.c.h.b16 %v391
    %v576 = vunpack.c.l.b16 %v392
    %v577 = vunpack.c.h.b16 %v392
    %v578 = vunpack.c.l.b16 %v393
    %v579 = vunpack.c.h.b16 %v393
    %v580 = vunpack.c.l.b16 %v394
    %v581 = vunpack.c.h.b16 %v394
    %v582 = vunpack.c.l.b16 %v395
    %v583 = vunpack.c.h.b16 %v395
    %v584 = vunpack.c.l.b16 %v396
    %v585 = vunpack.c.h.b16 %v396
    %v586 = vunpack.c.l.b16 %v397
    %v587 = vunpack.c.h.b16 %v397
    %v588 = vunpack.c.l.b16 %v398
    %v589 = vunpack.c.h.b16 %v398
    %v590 = vunpack.c.l.b16 %v399
    %v591 = vunpack.c.h.b16 %v399
    %v592 = vpack.c.b16 %v472, %v464
    %v593 = vpack.c.b16 %v473, %v465
    %v594 = vpack.c.b16 %v474, %v466
    %v595 = vpack.c.b16 %v475, %v467
    %v596 = vpack.c.b16 %v476, %v468
    %v597 = vpack.c.b16 %v477, %v469
    %v598 = vpack.c.b16 %v478, %v470
    %v599 = vpack.c.b16 %v479, %v471
    %v600 = vpack.c.b16 %v488, %v480
    %v601 = vpack.c.b16 %v489, %v481
    %v602 = vpack.c.b16 %v490, %v482
    %v603 = vpack.c.b16 %v491, %v483
    %v604 = vpack.c.b16 %v492, %v484
    %v605 = vpack.c.b16 %v493, %v485
    %v606 = vpack.c.b16 %v494, %v486
    %v607 = vpack.c.b16 %v495, %v487
    %v608 = vpack.c.b16 %v504, %v496
    %v609 = vpack.c.b16 %v505, %v497
    %v610 = vpack.c.b16 %v506, %v498
    %v611 = vpack.c.b16 %v507, %v499
    %v612 = vpack.c.b16 %v508, %v500
    %v613 = vpack.c.b16 %v509, %v501
    %v614 = vpack.c.b16 %v510, %v502
    %v615 = vpack.c.b16 %v511, %v503
    %v616 = vpack.c.b16 %v520, %v512
    %v617 = vpack.c.b16 %v521, %v513
    %v618 = vpack.c.b16 %v522, %v514
    %v619 = vpack.c.b16 %v523, %v515
    %v620 = vpack.c.b16 %v524, %v516
    %v621 = vpack.c.b16 %v525, %v517
    %v622 = vpack.c.b16 %v526, %v518
    %v623 = vpack.c.b16 %v527, %v519
    %v624 = vpack.c.b16 %v536, %v528
    %v625 = vpack.c.b16 %v537, %v529
    %v626 = vpack.c.b16 %v538, %v530
    %v627 = vpack.c.b16 %v539, %v531
    %v628 = vpack.c.b16 %v540, %v532
    %v629 = vpack.c.b16 %v541, %v533
    %v630 = vpack.c.b16 %v542, %v534
    %v631 = vpack.c.b16 %v543, %v535
    %v632 = vpack.c.b16 %v552, %v544
    %v633 = vpack.c.b16 %v553, %v545
    %v634 = vpack.c.b16 %v554, %v546
    %v635 = vpack.c.b16 %v555, %v547
    %v636 = vpack.c.b16 %v556, %v548
    %v637 = vpack.c.b16 %v557, %v549
    %v638 = vpack.c.b16 %v558, %v550
    %v639 = vpack.c.b16 %v559, %v551
    %v640 = vpack.c.b16 %v568, %v560
    %v641 = vpack.c.b16 %v569, %v561
    %v642 = vpack.c.b16 %v570, %v562
    %v643 = vpack.c.b16 %v571, %v563
    %v644 = vpack.c.b16 %v572, %v564
    %v645 = vpack.c.b16 %v573, %v565
    %v646 = vpack.c.b16 %v574, %v566
    %v647 = vpack.c.b16 %v575, %v567
    %v648 = vpack.c.b16 %v584, %v576
    %v649 = vpack.c.b16 %v585, %v577
    %v650 = vpack.c.b16 %v586, %v578
    %v651 = vpack.c.b16 %v587, %v579
    %v652 = vpack.c.b16 %v588, %v580
    %v653 = vpack.c.b16 %v589, %v581
    %v654 = vpack.c.b16 %v590, %v582
    %v655 = vpack.c.b16 %v591, %v583
    %720 = vmatpush.bf16.msra.mxu0 %v648
    %721 = vmatpush.bf16.msra.mxu0 %v640
    %722 = vmatpush.bf16.msra.mxu0 %v632
    %723 = vmatpush.bf16.msra.mxu0 %v624
    %724 = vmatpush.bf16.msra.mxu0 %v616
    %725 = vmatpush.bf16.msra.mxu0 %v608
    %726 = vmatpush.bf16.msra.mxu0 %v600
    %727 = vmatpush.bf16.msra.mxu0 %v592
    %728 = vmatmul.bf16.gmra.mxu0 %v335
    %v729 = vpop.f32.mrf.mxu0
    %v730 = vadd.f32 0.0, %v729
    %v731 = vpop.f32.mrf.mxu0
    %732 = vdwg.mxu0
    %733 = vmatpush.bf16.msra.mxu0 %v649
    %734 = vmatpush.bf16.msra.mxu0 %v641
    %735 = vmatpush.bf16.msra.mxu0 %v633
    %736 = vmatpush.bf16.msra.mxu0 %v625
    %737 = vmatpush.bf16.msra.mxu0 %v617
    %738 = vmatpush.bf16.msra.mxu0 %v609
    %739 = vmatpush.bf16.msra.mxu0 %v601
    %740 = vmatpush.bf16.msra.mxu0 %v593
    %741 = vmatmul.bf16.gmra.mxu0 %v335
    %v742 = vpop.f32.mrf.mxu0
    %v743 = vadd.f32 0.0, %v742
    %v744 = vpop.f32.mrf.mxu0
    %745 = vdwg.mxu0
    %746 = vmatpush.bf16.msra.mxu0 %v650
    %747 = vmatpush.bf16.msra.mxu0 %v642
    %748 = vmatpush.bf16.msra.mxu0 %v634
    %749 = vmatpush.bf16.msra.mxu0 %v626
    %750 = vmatpush.bf16.msra.mxu0 %v618
    %751 = vmatpush.bf16.msra.mxu0 %v610
    %752 = vmatpush.bf16.msra.mxu0 %v602
    %753 = vmatpush.bf16.msra.mxu0 %v594
    %754 = vmatmul.bf16.gmra.mxu0 %v335
    %v755 = vpop.f32.mrf.mxu0
    %v756 = vadd.f32 0.0, %v755
    %v757 = vpop.f32.mrf.mxu0
    %758 = vdwg.mxu0
    %759 = vmatpush.bf16.msra.mxu0 %v651
    %760 = vmatpush.bf16.msra.mxu0 %v643
    %761 = vmatpush.bf16.msra.mxu0 %v635
    %762 = vmatpush.bf16.msra.mxu0 %v627
    %763 = vmatpush.bf16.msra.mxu0 %v619
    %764 = vmatpush.bf16.msra.mxu0 %v611
    %765 = vmatpush.bf16.msra.mxu0 %v603
    %766 = vmatpush.bf16.msra.mxu0 %v595
    %767 = vmatmul.bf16.gmra.mxu0 %v335
    %v768 = vpop.f32.mrf.mxu0
    %v769 = vadd.f32 0.0, %v768
    %v770 = vpop.f32.mrf.mxu0
    %771 = vdwg.mxu0
    %772 = vmatpush.bf16.msra.mxu0 %v652
    %773 = vmatpush.bf16.msra.mxu0 %v644
    %774 = vmatpush.bf16.msra.mxu0 %v636
    %775 = vmatpush.bf16.msra.mxu0 %v628
    %776 = vmatpush.bf16.msra.mxu0 %v620
    %777 = vmatpush.bf16.msra.mxu0 %v612
    %778 = vmatpush.bf16.msra.mxu0 %v604
    %779 = vmatpush.bf16.msra.mxu0 %v596
    %780 = vmatmul.bf16.gmra.mxu0 %v335
    %v781 = vpop.f32.mrf.mxu0
    %v782 = vadd.f32 0.0, %v781
    %v783 = vpop.f32.mrf.mxu0
    %784 = vdwg.mxu0
    %785 = vmatpush.bf16.msra.mxu0 %v653
    %786 = vmatpush.bf16.msra.mxu0 %v645
    %787 = vmatpush.bf16.msra.mxu0 %v637
    %788 = vmatpush.bf16.msra.mxu0 %v629
    %789 = vmatpush.bf16.msra.mxu0 %v621
    %790 = vmatpush.bf16.msra.mxu0 %v613
    %791 = vmatpush.bf16.msra.mxu0 %v605
    %792 = vmatpush.bf16.msra.mxu0 %v597
    %793 = vmatmul.bf16.gmra.mxu0 %v335
    %v794 = vpop.f32.mrf.mxu0
    %v795 = vadd.f32 0.0, %v794
    %v796 = vpop.f32.mrf.mxu0
    %797 = vdwg.mxu0
    %798 = vmatpush.bf16.msra.mxu0 %v654
    %799 = vmatpush.bf16.msra.mxu0 %v646
    %800 = vmatpush.bf16.msra.mxu0 %v638
    %801 = vmatpush.bf16.msra.mxu0 %v630
    %802 = vmatpush.bf16.msra.mxu0 %v622
    %803 = vmatpush.bf16.msra.mxu0 %v614
    %804 = vmatpush.bf16.msra.mxu0 %v606
    %805 = vmatpush.bf16.msra.mxu0 %v598
    %806 = vmatmul.bf16.gmra.mxu0 %v335
    %v807 = vpop.f32.mrf.mxu0
    %v808 = vadd.f32 0.0, %v807
    %v809 = vpop.f32.mrf.mxu0
    %810 = vdwg.mxu0
    %811 = vmatpush.bf16.msra.mxu0 %v655
    %812 = vmatpush.bf16.msra.mxu0 %v647
    %813 = vmatpush.bf16.msra.mxu0 %v639
    %814 = vmatpush.bf16.msra.mxu0 %v631
    %815 = vmatpush.bf16.msra.mxu0 %v623
    %816 = vmatpush.bf16.msra.mxu0 %v615
    %817 = vmatpush.bf16.msra.mxu0 %v607
    %818 = vmatpush.bf16.msra.mxu0 %v599
    %819 = vmatmul.bf16.gmra.mxu0 %v335
    %v820 = vpop.f32.mrf.mxu0
    %v821 = vadd.f32 0.0, %v820
    %v822 = vpop.f32.mrf.mxu0
    %823 = vdwg.mxu0
    %s824 = scalar_lea.vmem [#allocation2], 8
    %v825 = vld [vmem:[%s824] sm:$0xff]
    %827 = vst [vmem:[#allocation1] ss:$4 sm:$0xff] %v825
    %v828 = vld.sshfl [vmem:[#allocation1] sm:$0xff pattern:$0x73625140]
    %v829 = vld.sshfl [vmem:[#allocation1 + $0x8] sm:$0xff pattern:$0x73625140]
    %v830 = vld.sshfl [vmem:[#allocation1 + $0x10] sm:$0xff pattern:$0x73625140]
    %v831 = vld.sshfl [vmem:[#allocation1 + $0x18] sm:$0xff pattern:$0x73625140]
    %v836 = vadd.f32 %v730, %v828
    %v837 = vadd.f32 %v743, %v829
    %v838 = vadd.f32 %v756, %v830
    %v839 = vadd.f32 %v769, %v831
    %v840 = vxor.u32 %v836, 2147483648
    %v841 = vxor.u32 %v837, 2147483648
    %v842 = vxor.u32 %v838, 2147483648
    %v843 = vmul.f32 %v840, 1.442695
    %v844 = vpow.pop %v843
    %v845 = vmul.f32 %v841, 1.442695
    %v846 = vpow.pop %v845
    %v847 = vmul.f32 %v842, 1.442695
    %v848 = vpow.pop %v847
    %v849 = vadd.f32 %v844, 1.0
    %v850 = vadd.f32 %v846, 1.0
    %v851 = vadd.f32 %v848, 1.0
    %v852 = vrcp.pop %v849
    %v853 = vmul.f32 %v849, %v852
    %v854 = vsub.f32 1.0, %v853
    %v855 = vmul.f32 %v852, %v854
    %v856 = vadd.f32 %v852, %v855
    %vm857 = vweird.f32 %v849
    %vm858 = vweird.f32 %v852
    %vm859 = vmor %vm857, %vm858
    %v860 = vsel %vm859, %v852, %v856
    %v861 = vand.u32 2147483647, %v849
    %vm862 = vcmp.eq.f32.partialorder %v861, 8.507059e+37
    %v863 = vand.u32 %v849, 2147483648
    %v864 = vor.u32 1.1754944e-38, %v863
    %v865 = vsel %vm862, %v864, %v860
    %v866 = vmul.f32 1.0, %v865
    %v867 = vrcp.pop %v850
    %v868 = vmul.f32 %v850, %v867
    %v869 = vsub.f32 1.0, %v868
    %v870 = vmul.f32 %v867, %v869
    %v871 = vadd.f32 %v867, %v870
    %vm872 = vweird.f32 %v850
    %vm873 = vweird.f32 %v867
    %vm874 = vmor %vm872, %vm873
    %v875 = vsel %vm874, %v867, %v871
    %v876 = vand.u32 2147483647, %v850
    %vm877 = vcmp.eq.f32.partialorder %v876, 8.507059e+37
    %v878 = vand.u32 %v850, 2147483648
    %v879 = vor.u32 1.1754944e-38, %v878
    %v880 = vsel %vm877, %v879, %v875
    %v881 = vmul.f32 1.0, %v880
    %v882 = vrcp.pop %v851
    %v883 = vmul.f32 %v851, %v882
    %v884 = vsub.f32 1.0, %v883
    %v885 = vmul.f32 %v882, %v884
    %v886 = vadd.f32 %v882, %v885
    %vm887 = vweird.f32 %v851
    %vm888 = vweird.f32 %v882
    %vm889 = vmor %vm887, %vm888
    %v890 = vsel %vm889, %v882, %v886
    %v891 = vand.u32 2147483647, %v851
    %vm892 = vcmp.eq.f32.partialorder %v891, 8.507059e+37
    %v893 = vand.u32 %v851, 2147483648
    %v894 = vor.u32 1.1754944e-38, %v893
    %v895 = vsel %vm892, %v894, %v890
    %v896 = vmul.f32 1.0, %v895
    %v897 = vtanh.pop %v839
    %v898 = vmul.f32 %v881, %v329
    %v899 = vmul.f32 %v866, %v897
    %v900 = vadd.f32 %v898, %v899
    %v901 = vtanh.pop %v900
    %v902 = vmul.f32 %v896, %v901
    %v903 = vadd.f32 %v782, %v292
    %v904 = vadd.f32 %v795, %v293
    %v905 = vadd.f32 %v808, %v294
    %v906 = vadd.f32 %v821, %v295
    %v907 = vxor.u32 %v903, 2147483648
    %v908 = vxor.u32 %v904, 2147483648
    %v909 = vxor.u32 %v905, 2147483648
    %v910 = vmul.f32 %v907, 1.442695
    %v911 = vpow.pop %v910
    %v912 = vmul.f32 %v908, 1.442695
    %v913 = vpow.pop %v912
    %v914 = vmul.f32 %v909, 1.442695
    %v915 = vpow.pop %v914
    %v916 = vadd.f32 %v911, 1.0
    %v917 = vadd.f32 %v913, 1.0
    %v918 = vadd.f32 %v915, 1.0
    %v919 = vrcp.pop %v916
    %v920 = vmul.f32 %v916, %v919
    %v921 = vsub.f32 1.0, %v920
    %v922 = vmul.f32 %v919, %v921
    %v923 = vadd.f32 %v919, %v922
    %vm924 = vweird.f32 %v916
    %vm925 = vweird.f32 %v919
    %vm926 = vmor %vm924, %vm925
    %v927 = vsel %vm926, %v919, %v923
    %v928 = vand.u32 2147483647, %v916
    %vm929 = vcmp.eq.f32.partialorder %v928, 8.507059e+37
    %v930 = vand.u32 %v916, 2147483648
    %v931 = vor.u32 1.1754944e-38, %v930
    %v932 = vsel %vm929, %v931, %v927
    %v933 = vmul.f32 1.0, %v932
    %v934 = vrcp.pop %v917
    %v935 = vmul.f32 %v917, %v934
    %v936 = vsub.f32 1.0, %v935
    %v937 = vmul.f32 %v934, %v936
    %v938 = vadd.f32 %v934, %v937
    %vm939 = vweird.f32 %v917
    %vm940 = vweird.f32 %v934
    %vm941 = vmor %vm939, %vm940
    %v942 = vsel %vm941, %v934, %v938
    %v943 = vand.u32 2147483647, %v917
    %vm944 = vcmp.eq.f32.partialorder %v943, 8.507059e+37
    %v945 = vand.u32 %v917, 2147483648
    %v946 = vor.u32 1.1754944e-38, %v945
    %v947 = vsel %vm944, %v946, %v942
    %v948 = vmul.f32 1.0, %v947
    %v949 = vrcp.pop %v918
    %v950 = vmul.f32 %v918, %v949
    %v951 = vsub.f32 1.0, %v950
    %v952 = vmul.f32 %v949, %v951
    %v953 = vadd.f32 %v949, %v952
    %vm954 = vweird.f32 %v918
    %vm955 = vweird.f32 %v949
    %vm956 = vmor %vm954, %vm955
    %v957 = vsel %vm956, %v949, %v953
    %v958 = vand.u32 2147483647, %v918
    %vm959 = vcmp.eq.f32.partialorder %v958, 8.507059e+37
    %v960 = vand.u32 %v918, 2147483648
    %v961 = vor.u32 1.1754944e-38, %v960
    %v962 = vsel %vm959, %v961, %v957
    %v963 = vmul.f32 1.0, %v962
    %v964 = vtanh.pop %v906
    %v965 = vmul.f32 %v948, 0.0
    %v966 = vmul.f32 %v933, %v964
    %v967 = vadd.f32 %v965, %v966
    %v968 = vtanh.pop %v967
    %v969 = vmul.f32 %v963, %v968
    %v970 = vadd.f32 %v902, %v969
    %v971 = vpack.c.bf16 %v970, %v970
    %972 = vmatpush.bf16.msra.mxu0 %v648
    %973 = vmatpush.bf16.msra.mxu0 %v640
    %974 = vmatpush.bf16.msra.mxu0 %v632
    %975 = vmatpush.bf16.msra.mxu0 %v624
    %976 = vmatpush.bf16.msra.mxu0 %v616
    %977 = vmatpush.bf16.msra.mxu0 %v608
    %978 = vmatpush.bf16.msra.mxu0 %v600
    %979 = vmatpush.bf16.msra.mxu0 %v592
    %980 = vmatmul.bf16.gmra.mxu0 %v971
    %v981 = vpop.f32.mrf.mxu0
    %v982 = vadd.f32 0.0, %v981
    %v983 = vpop.f32.mrf.mxu0
    %984 = vdwg.mxu0
    %985 = vmatpush.bf16.msra.mxu0 %v649
    %986 = vmatpush.bf16.msra.mxu0 %v641
    %987 = vmatpush.bf16.msra.mxu0 %v633
    %988 = vmatpush.bf16.msra.mxu0 %v625
    %989 = vmatpush.bf16.msra.mxu0 %v617
    %990 = vmatpush.bf16.msra.mxu0 %v609
    %991 = vmatpush.bf16.msra.mxu0 %v601
    %992 = vmatpush.bf16.msra.mxu0 %v593
    %993 = vmatmul.bf16.gmra.mxu0 %v971
    %v994 = vpop.f32.mrf.mxu0
    %v995 = vadd.f32 0.0, %v994
    %v996 = vpop.f32.mrf.mxu0
    %997 = vdwg.mxu0
    %998 = vmatpush.bf16.msra.mxu0 %v650
    %999 = vmatpush.bf16.msra.mxu0 %v642
    %1000 = vmatpush.bf16.msra.mxu0 %v634
    %1001 = vmatpush.bf16.msra.mxu0 %v626
    %1002 = vmatpush.bf16.msra.mxu0 %v618
    %1003 = vmatpush.bf16.msra.mxu0 %v610
    %1004 = vmatpush.bf16.msra.mxu0 %v602
    %1005 = vmatpush.bf16.msra.mxu0 %v594
    %1006 = vmatmul.bf16.gmra.mxu0 %v971
    %v1007 = vpop.f32.mrf.mxu0
    %v1008 = vadd.f32 0.0, %v1007
    %v1009 = vpop.f32.mrf.mxu0
    %1010 = vdwg.mxu0
    %1011 = vmatpush.bf16.msra.mxu0 %v651
    %1012 = vmatpush.bf16.msra.mxu0 %v643
    %1013 = vmatpush.bf16.msra.mxu0 %v635
    %1014 = vmatpush.bf16.msra.mxu0 %v627
    %1015 = vmatpush.bf16.msra.mxu0 %v619
    %1016 = vmatpush.bf16.msra.mxu0 %v611
    %1017 = vmatpush.bf16.msra.mxu0 %v603
    %1018 = vmatpush.bf16.msra.mxu0 %v595
    %1019 = vmatmul.bf16.gmra.mxu0 %v971
    %v1020 = vpop.f32.mrf.mxu0
    %v1021 = vadd.f32 0.0, %v1020
    %v1022 = vpop.f32.mrf.mxu0
    %1023 = vdwg.mxu0
    %1024 = vmatpush.bf16.msra.mxu0 %v652
    %1025 = vmatpush.bf16.msra.mxu0 %v644
    %1026 = vmatpush.bf16.msra.mxu0 %v636
    %1027 = vmatpush.bf16.msra.mxu0 %v628
    %1028 = vmatpush.bf16.msra.mxu0 %v620
    %1029 = vmatpush.bf16.msra.mxu0 %v612
    %1030 = vmatpush.bf16.msra.mxu0 %v604
    %1031 = vmatpush.bf16.msra.mxu0 %v596
    %1032 = vmatmul.bf16.gmra.mxu0 %v971
    %v1033 = vpop.f32.mrf.mxu0
    %v1034 = vadd.f32 0.0, %v1033
    %v1035 = vpop.f32.mrf.mxu0
    %1036 = vdwg.mxu0
    %1037 = vmatpush.bf16.msra.mxu0 %v653
    %1038 = vmatpush.bf16.msra.mxu0 %v645
    %1039 = vmatpush.bf16.msra.mxu0 %v637
    %1040 = vmatpush.bf16.msra.mxu0 %v629
    %1041 = vmatpush.bf16.msra.mxu0 %v621
    %1042 = vmatpush.bf16.msra.mxu0 %v613
    %1043 = vmatpush.bf16.msra.mxu0 %v605
    %1044 = vmatpush.bf16.msra.mxu0 %v597
    %1045 = vmatmul.bf16.gmra.mxu0 %v971
    %v1046 = vpop.f32.mrf.mxu0
    %v1047 = vadd.f32 0.0, %v1046
    %v1048 = vpop.f32.mrf.mxu0
    %1049 = vdwg.mxu0
    %1050 = vmatpush.bf16.msra.mxu0 %v654
    %1051 = vmatpush.bf16.msra.mxu0 %v646
    %1052 = vmatpush.bf16.msra.mxu0 %v638
    %1053 = vmatpush.bf16.msra.mxu0 %v630
    %1054 = vmatpush.bf16.msra.mxu0 %v622
    %1055 = vmatpush.bf16.msra.mxu0 %v614
    %1056 = vmatpush.bf16.msra.mxu0 %v606
    %1057 = vmatpush.bf16.msra.mxu0 %v598
    %1058 = vmatmul.bf16.gmra.mxu0 %v971
    %v1059 = vpop.f32.mrf.mxu0
    %v1060 = vadd.f32 0.0, %v1059
    %v1061 = vpop.f32.mrf.mxu0
    %1062 = vdwg.mxu0
    %1063 = vmatpush.bf16.msra.mxu0 %v655
    %1064 = vmatpush.bf16.msra.mxu0 %v647
    %1065 = vmatpush.bf16.msra.mxu0 %v639
    %1066 = vmatpush.bf16.msra.mxu0 %v631
    %1067 = vmatpush.bf16.msra.mxu0 %v623
    %1068 = vmatpush.bf16.msra.mxu0 %v615
    %1069 = vmatpush.bf16.msra.mxu0 %v607
    %1070 = vmatpush.bf16.msra.mxu0 %v599
    %1071 = vmatmul.bf16.gmra.mxu0 %v971
    %v1072 = vpop.f32.mrf.mxu0
    %v1073 = vadd.f32 0.0, %v1072
    %v1074 = vpop.f32.mrf.mxu0
    %1075 = vdwg.mxu0
    %s1076 = scalar_lea.vmem [#allocation2], 16
    %v1077 = vld [vmem:[%s1076] sm:$0xff]
    %1079 = vst [vmem:[#allocation1] ss:$4 sm:$0xff] %v1077
    %v1080 = vld.sshfl [vmem:[#allocation1] sm:$0xff pattern:$0x73625140]
    %v1081 = vld.sshfl [vmem:[#allocation1 + $0x8] sm:$0xff pattern:$0x73625140]
    %v1082 = vld.sshfl [vmem:[#allocation1 + $0x10] sm:$0xff pattern:$0x73625140]
    %v1083 = vld.sshfl [vmem:[#allocation1 + $0x18] sm:$0xff pattern:$0x73625140]
    %v1088 = vadd.f32 %v982, %v1080
    %v1089 = vadd.f32 %v995, %v1081
    %v1090 = vadd.f32 %v1008, %v1082
    %v1091 = vadd.f32 %v1021, %v1083
    %v1092 = vxor.u32 %v1088, 2147483648
    %v1093 = vxor.u32 %v1089, 2147483648
    %v1094 = vxor.u32 %v1090, 2147483648
    %v1095 = vmul.f32 %v1092, 1.442695
    %v1096 = vpow.pop %v1095
    %v1097 = vmul.f32 %v1093, 1.442695
    %v1098 = vpow.pop %v1097
    %v1099 = vmul.f32 %v1094, 1.442695
    %v1100 = vpow.pop %v1099
    %v1101 = vadd.f32 %v1096, 1.0
    %v1102 = vadd.f32 %v1098, 1.0
    %v1103 = vadd.f32 %v1100, 1.0
    %v1104 = vrcp.pop %v1101
    %v1105 = vmul.f32 %v1101, %v1104
    %v1106 = vsub.f32 1.0, %v1105
    %v1107 = vmul.f32 %v1104, %v1106
    %v1108 = vadd.f32 %v1104, %v1107
    %vm1109 = vweird.f32 %v1101
    %vm1110 = vweird.f32 %v1104
    %vm1111 = vmor %vm1109, %vm1110
    %v1112 = vsel %vm1111, %v1104, %v1108
    %v1113 = vand.u32 2147483647, %v1101
    %vm1114 = vcmp.eq.f32.partialorder %v1113, 8.507059e+37
    %v1115 = vand.u32 %v1101, 2147483648
    %v1116 = vor.u32 1.1754944e-38, %v1115
    %v1117 = vsel %vm1114, %v1116, %v1112
    %v1118 = vmul.f32 1.0, %v1117
    %v1119 = vrcp.pop %v1102
    %v1120 = vmul.f32 %v1102, %v1119
    %v1121 = vsub.f32 1.0, %v1120
    %v1122 = vmul.f32 %v1119, %v1121
    %v1123 = vadd.f32 %v1119, %v1122
    %vm1124 = vweird.f32 %v1102
    %vm1125 = vweird.f32 %v1119
    %vm1126 = vmor %vm1124, %vm1125
    %v1127 = vsel %vm1126, %v1119, %v1123
    %v1128 = vand.u32 2147483647, %v1102
    %vm1129 = vcmp.eq.f32.partialorder %v1128, 8.507059e+37
    %v1130 = vand.u32 %v1102, 2147483648
    %v1131 = vor.u32 1.1754944e-38, %v1130
    %v1132 = vsel %vm1129, %v1131, %v1127
    %v1133 = vmul.f32 1.0, %v1132
    %v1134 = vrcp.pop %v1103
    %v1135 = vmul.f32 %v1103, %v1134
    %v1136 = vsub.f32 1.0, %v1135
    %v1137 = vmul.f32 %v1134, %v1136
    %v1138 = vadd.f32 %v1134, %v1137
    %vm1139 = vweird.f32 %v1103
    %vm1140 = vweird.f32 %v1134
    %vm1141 = vmor %vm1139, %vm1140
    %v1142 = vsel %vm1141, %v1134, %v1138
    %v1143 = vand.u32 2147483647, %v1103
    %vm1144 = vcmp.eq.f32.partialorder %v1143, 8.507059e+37
    %v1145 = vand.u32 %v1103, 2147483648
    %v1146 = vor.u32 1.1754944e-38, %v1145
    %v1147 = vsel %vm1144, %v1146, %v1142
    %v1148 = vmul.f32 1.0, %v1147
    %v1149 = vtanh.pop %v1091
    %v1150 = vmul.f32 %v1133, %v900
    %v1151 = vmul.f32 %v1118, %v1149
    %v1152 = vadd.f32 %v1150, %v1151
    %v1153 = vtanh.pop %v1152
    %v1154 = vmul.f32 %v1148, %v1153
    %v1155 = vadd.f32 %v1034, %v292
    %v1156 = vadd.f32 %v1047, %v293
    %v1157 = vadd.f32 %v1060, %v294
    %v1158 = vadd.f32 %v1073, %v295
    %v1159 = vxor.u32 %v1155, 2147483648
    %v1160 = vxor.u32 %v1156, 2147483648
    %v1161 = vxor.u32 %v1157, 2147483648
    %v1162 = vmul.f32 %v1159, 1.442695
    %v1163 = vpow.pop %v1162
    %v1164 = vmul.f32 %v1160, 1.442695
    %v1165 = vpow.pop %v1164
    %v1166 = vmul.f32 %v1161, 1.442695
    %v1167 = vpow.pop %v1166
    %v1168 = vadd.f32 %v1163, 1.0
    %v1169 = vadd.f32 %v1165, 1.0
    %v1170 = vadd.f32 %v1167, 1.0
    %v1171 = vrcp.pop %v1168
    %v1172 = vmul.f32 %v1168, %v1171
    %v1173 = vsub.f32 1.0, %v1172
    %v1174 = vmul.f32 %v1171, %v1173
    %v1175 = vadd.f32 %v1171, %v1174
    %vm1176 = vweird.f32 %v1168
    %vm1177 = vweird.f32 %v1171
    %vm1178 = vmor %vm1176, %vm1177
    %v1179 = vsel %vm1178, %v1171, %v1175
    %v1180 = vand.u32 2147483647, %v1168
    %vm1181 = vcmp.eq.f32.partialorder %v1180, 8.507059e+37
    %v1182 = vand.u32 %v1168, 2147483648
    %v1183 = vor.u32 1.1754944e-38, %v1182
    %v1184 = vsel %vm1181, %v1183, %v1179
    %v1185 = vmul.f32 1.0, %v1184
    %v1186 = vrcp.pop %v1169
    %v1187 = vmul.f32 %v1169, %v1186
    %v1188 = vsub.f32 1.0, %v1187
    %v1189 = vmul.f32 %v1186, %v1188
    %v1190 = vadd.f32 %v1186, %v1189
    %vm1191 = vweird.f32 %v1169
    %vm1192 = vweird.f32 %v1186
    %vm1193 = vmor %vm1191, %vm1192
    %v1194 = vsel %vm1193, %v1186, %v1190
    %v1195 = vand.u32 2147483647, %v1169
    %vm1196 = vcmp.eq.f32.partialorder %v1195, 8.507059e+37
    %v1197 = vand.u32 %v1169, 2147483648
    %v1198 = vor.u32 1.1754944e-38, %v1197
    %v1199 = vsel %vm1196, %v1198, %v1194
    %v1200 = vmul.f32 1.0, %v1199
    %v1201 = vrcp.pop %v1170
    %v1202 = vmul.f32 %v1170, %v1201
    %v1203 = vsub.f32 1.0, %v1202
    %v1204 = vmul.f32 %v1201, %v1203
    %v1205 = vadd.f32 %v1201, %v1204
    %vm1206 = vweird.f32 %v1170
    %vm1207 = vweird.f32 %v1201
    %vm1208 = vmor %vm1206, %vm1207
    %v1209 = vsel %vm1208, %v1201, %v1205
    %v1210 = vand.u32 2147483647, %v1170
    %vm1211 = vcmp.eq.f32.partialorder %v1210, 8.507059e+37
    %v1212 = vand.u32 %v1170, 2147483648
    %v1213 = vor.u32 1.1754944e-38, %v1212
    %v1214 = vsel %vm1211, %v1213, %v1209
    %v1215 = vmul.f32 1.0, %v1214
    %v1216 = vtanh.pop %v1158
    %v1217 = vmul.f32 %v1200, %v967
    %v1218 = vmul.f32 %v1185, %v1216
    %v1219 = vadd.f32 %v1217, %v1218
    %v1220 = vtanh.pop %v1219
    %v1221 = vmul.f32 %v1215, %v1220
    %v1222 = vadd.f32 %v1154, %v1221
    %v1223 = vpack.c.bf16 %v1222, %v1222
    %1224 = vmatpush.bf16.msra.mxu0 %v648
    %1225 = vmatpush.bf16.msra.mxu0 %v640
    %1226 = vmatpush.bf16.msra.mxu0 %v632
    %1227 = vmatpush.bf16.msra.mxu0 %v624
    %1228 = vmatpush.bf16.msra.mxu0 %v616
    %1229 = vmatpush.bf16.msra.mxu0 %v608
    %1230 = vmatpush.bf16.msra.mxu0 %v600
    %1231 = vmatpush.bf16.msra.mxu0 %v592
    %1232 = vmatmul.bf16.gmra.mxu0 %v1223
    %v1233 = vpop.f32.mrf.mxu0
    %v1234 = vadd.f32 0.0, %v1233
    %v1235 = vpop.f32.mrf.mxu0
    %1236 = vdwg.mxu0
    %1237 = vmatpush.bf16.msra.mxu0 %v649
    %1238 = vmatpush.bf16.msra.mxu0 %v641
    %1239 = vmatpush.bf16.msra.mxu0 %v633
    %1240 = vmatpush.bf16.msra.mxu0 %v625
    %1241 = vmatpush.bf16.msra.mxu0 %v617
    %1242 = vmatpush.bf16.msra.mxu0 %v609
    %1243 = vmatpush.bf16.msra.mxu0 %v601
    %1244 = vmatpush.bf16.msra.mxu0 %v593
    %1245 = vmatmul.bf16.gmra.mxu0 %v1223
    %v1246 = vpop.f32.mrf.mxu0
    %v1247 = vadd.f32 0.0, %v1246
    %v1248 = vpop.f32.mrf.mxu0
    %1249 = vdwg.mxu0
    %1250 = vmatpush.bf16.msra.mxu0 %v650
    %1251 = vmatpush.bf16.msra.mxu0 %v642
    %1252 = vmatpush.bf16.msra.mxu0 %v634
    %1253 = vmatpush.bf16.msra.mxu0 %v626
    %1254 = vmatpush.bf16.msra.mxu0 %v618
    %1255 = vmatpush.bf16.msra.mxu0 %v610
    %1256 = vmatpush.bf16.msra.mxu0 %v602
    %1257 = vmatpush.bf16.msra.mxu0 %v594
    %1258 = vmatmul.bf16.gmra.mxu0 %v1223
    %v1259 = vpop.f32.mrf.mxu0
    %v1260 = vadd.f32 0.0, %v1259
    %v1261 = vpop.f32.mrf.mxu0
    %1262 = vdwg.mxu0
    %1263 = vmatpush.bf16.msra.mxu0 %v651
    %1264 = vmatpush.bf16.msra.mxu0 %v643
    %1265 = vmatpush.bf16.msra.mxu0 %v635
    %1266 = vmatpush.bf16.msra.mxu0 %v627
    %1267 = vmatpush.bf16.msra.mxu0 %v619
    %1268 = vmatpush.bf16.msra.mxu0 %v611
    %1269 = vmatpush.bf16.msra.mxu0 %v603
    %1270 = vmatpush.bf16.msra.mxu0 %v595
    %1271 = vmatmul.bf16.gmra.mxu0 %v1223
    %v1272 = vpop.f32.mrf.mxu0
    %v1273 = vadd.f32 0.0, %v1272
    %v1274 = vpop.f32.mrf.mxu0
    %1275 = vdwg.mxu0
    %1276 = vmatpush.bf16.msra.mxu0 %v652
    %1277 = vmatpush.bf16.msra.mxu0 %v644
    %1278 = vmatpush.bf16.msra.mxu0 %v636
    %1279 = vmatpush.bf16.msra.mxu0 %v628
    %1280 = vmatpush.bf16.msra.mxu0 %v620
    %1281 = vmatpush.bf16.msra.mxu0 %v612
    %1282 = vmatpush.bf16.msra.mxu0 %v604
    %1283 = vmatpush.bf16.msra.mxu0 %v596
    %1284 = vmatmul.bf16.gmra.mxu0 %v1223
    %v1285 = vpop.f32.mrf.mxu0
    %v1286 = vadd.f32 0.0, %v1285
    %v1287 = vpop.f32.mrf.mxu0
    %1288 = vdwg.mxu0
    %1289 = vmatpush.bf16.msra.mxu0 %v653
    %1290 = vmatpush.bf16.msra.mxu0 %v645
    %1291 = vmatpush.bf16.msra.mxu0 %v637
    %1292 = vmatpush.bf16.msra.mxu0 %v629
    %1293 = vmatpush.bf16.msra.mxu0 %v621
    %1294 = vmatpush.bf16.msra.mxu0 %v613
    %1295 = vmatpush.bf16.msra.mxu0 %v605
    %1296 = vmatpush.bf16.msra.mxu0 %v597
    %1297 = vmatmul.bf16.gmra.mxu0 %v1223
    %v1298 = vpop.f32.mrf.mxu0
    %v1299 = vadd.f32 0.0, %v1298
    %v1300 = vpop.f32.mrf.mxu0
    %1301 = vdwg.mxu0
    %1302 = vmatpush.bf16.msra.mxu0 %v654
    %1303 = vmatpush.bf16.msra.mxu0 %v646
    %1304 = vmatpush.bf16.msra.mxu0 %v638
    %1305 = vmatpush.bf16.msra.mxu0 %v630
    %1306 = vmatpush.bf16.msra.mxu0 %v622
    %1307 = vmatpush.bf16.msra.mxu0 %v614
    %1308 = vmatpush.bf16.msra.mxu0 %v606
    %1309 = vmatpush.bf16.msra.mxu0 %v598
    %1310 = vmatmul.bf16.gmra.mxu0 %v1223
    %v1311 = vpop.f32.mrf.mxu0
    %v1312 = vadd.f32 0.0, %v1311
    %v1313 = vpop.f32.mrf.mxu0
    %1314 = vdwg.mxu0
    %1315 = vmatpush.bf16.msra.mxu0 %v655
    %1316 = vmatpush.bf16.msra.mxu0 %v647
    %1317 = vmatpush.bf16.msra.mxu0 %v639
    %1318 = vmatpush.bf16.msra.mxu0 %v631
    %1319 = vmatpush.bf16.msra.mxu0 %v623
    %1320 = vmatpush.bf16.msra.mxu0 %v615
    %1321 = vmatpush.bf16.msra.mxu0 %v607
    %1322 = vmatpush.bf16.msra.mxu0 %v599
    %1323 = vmatmul.bf16.gmra.mxu0 %v1223
    %v1324 = vpop.f32.mrf.mxu0
    %v1325 = vadd.f32 0.0, %v1324
    %v1326 = vpop.f32.mrf.mxu0
    %1327 = vdwg.mxu0
    %s1328 = scalar_lea.vmem [#allocation2], 24
    %v1329 = vld [vmem:[%s1328] sm:$0xff]
    %1331 = vst [vmem:[#allocation1] ss:$4 sm:$0xff] %v1329
    %v1332 = vld.sshfl [vmem:[#allocation1] sm:$0xff pattern:$0x73625140]
    %v1333 = vld.sshfl [vmem:[#allocation1 + $0x8] sm:$0xff pattern:$0x73625140]
    %v1334 = vld.sshfl [vmem:[#allocation1 + $0x10] sm:$0xff pattern:$0x73625140]
    %v1335 = vld.sshfl [vmem:[#allocation1 + $0x18] sm:$0xff pattern:$0x73625140]
    %v1340 = vadd.f32 %v1234, %v1332
    %v1341 = vadd.f32 %v1247, %v1333
    %v1342 = vadd.f32 %v1260, %v1334
    %v1343 = vadd.f32 %v1273, %v1335
    %v1344 = vxor.u32 %v1340, 2147483648
    %v1345 = vxor.u32 %v1341, 2147483648
    %v1346 = vxor.u32 %v1342, 2147483648
    %v1347 = vmul.f32 %v1344, 1.442695
    %v1348 = vpow.pop %v1347
    %v1349 = vmul.f32 %v1345, 1.442695
    %v1350 = vpow.pop %v1349
    %v1351 = vmul.f32 %v1346, 1.442695
    %v1352 = vpow.pop %v1351
    %v1353 = vadd.f32 %v1348, 1.0
    %v1354 = vadd.f32 %v1350, 1.0
    %v1355 = vadd.f32 %v1352, 1.0
    %v1356 = vrcp.pop %v1353
    %v1357 = vmul.f32 %v1353, %v1356
    %v1358 = vsub.f32 1.0, %v1357
    %v1359 = vmul.f32 %v1356, %v1358
    %v1360 = vadd.f32 %v1356, %v1359
    %vm1361 = vweird.f32 %v1353
    %vm1362 = vweird.f32 %v1356
    %vm1363 = vmor %vm1361, %vm1362
    %v1364 = vsel %vm1363, %v1356, %v1360
    %v1365 = vand.u32 2147483647, %v1353
    %vm1366 = vcmp.eq.f32.partialorder %v1365, 8.507059e+37
    %v1367 = vand.u32 %v1353, 2147483648
    %v1368 = vor.u32 1.1754944e-38, %v1367
    %v1369 = vsel %vm1366, %v1368, %v1364
    %v1370 = vmul.f32 1.0, %v1369
    %v1371 = vrcp.pop %v1354
    %v1372 = vmul.f32 %v1354, %v1371
    %v1373 = vsub.f32 1.0, %v1372
    %v1374 = vmul.f32 %v1371, %v1373
    %v1375 = vadd.f32 %v1371, %v1374
    %vm1376 = vweird.f32 %v1354
    %vm1377 = vweird.f32 %v1371
    %vm1378 = vmor %vm1376, %vm1377
    %v1379 = vsel %vm1378, %v1371, %v1375
    %v1380 = vand.u32 2147483647, %v1354
    %vm1381 = vcmp.eq.f32.partialorder %v1380, 8.507059e+37
    %v1382 = vand.u32 %v1354, 2147483648
    %v1383 = vor.u32 1.1754944e-38, %v1382
    %v1384 = vsel %vm1381, %v1383, %v1379
    %v1385 = vmul.f32 1.0, %v1384
    %v1386 = vrcp.pop %v1355
    %v1387 = vmul.f32 %v1355, %v1386
    %v1388 = vsub.f32 1.0, %v1387
    %v1389 = vmul.f32 %v1386, %v1388
    %v1390 = vadd.f32 %v1386, %v1389
    %vm1391 = vweird.f32 %v1355
    %vm1392 = vweird.f32 %v1386
    %vm1393 = vmor %vm1391, %vm1392
    %v1394 = vsel %vm1393, %v1386, %v1390
    %v1395 = vand.u32 2147483647, %v1355
    %vm1396 = vcmp.eq.f32.partialorder %v1395, 8.507059e+37
    %v1397 = vand.u32 %v1355, 2147483648
    %v1398 = vor.u32 1.1754944e-38, %v1397
    %v1399 = vsel %vm1396, %v1398, %v1394
    %v1400 = vmul.f32 1.0, %v1399
    %v1401 = vtanh.pop %v1343
    %v1402 = vmul.f32 %v1385, %v1152
    %v1403 = vmul.f32 %v1370, %v1401
    %v1404 = vadd.f32 %v1402, %v1403
    %v1405 = vtanh.pop %v1404
    %v1406 = vmul.f32 %v1400, %v1405
    %v1407 = vadd.f32 %v1286, %v292
    %v1408 = vadd.f32 %v1299, %v293
    %v1409 = vadd.f32 %v1312, %v294
    %v1410 = vadd.f32 %v1325, %v295
    %v1411 = vxor.u32 %v1407, 2147483648
    %v1412 = vxor.u32 %v1408, 2147483648
    %v1413 = vxor.u32 %v1409, 2147483648
    %v1414 = vmul.f32 %v1411, 1.442695
    %v1415 = vpow.pop %v1414
    %v1416 = vmul.f32 %v1412, 1.442695
    %v1417 = vpow.pop %v1416
    %v1418 = vmul.f32 %v1413, 1.442695
    %v1419 = vpow.pop %v1418
    %v1420 = vadd.f32 %v1415, 1.0
    %v1421 = vadd.f32 %v1417, 1.0
    %v1422 = vadd.f32 %v1419, 1.0
    %v1423 = vrcp.pop %v1420
    %v1424 = vmul.f32 %v1420, %v1423
    %v1425 = vsub.f32 1.0, %v1424
    %v1426 = vmul.f32 %v1423, %v1425
    %v1427 = vadd.f32 %v1423, %v1426
    %vm1428 = vweird.f32 %v1420
    %vm1429 = vweird.f32 %v1423
    %vm1430 = vmor %vm1428, %vm1429
    %v1431 = vsel %vm1430, %v1423, %v1427
    %v1432 = vand.u32 2147483647, %v1420
    %vm1433 = vcmp.eq.f32.partialorder %v1432, 8.507059e+37
    %v1434 = vand.u32 %v1420, 2147483648
    %v1435 = vor.u32 1.1754944e-38, %v1434
    %v1436 = vsel %vm1433, %v1435, %v1431
    %v1437 = vmul.f32 1.0, %v1436
    %v1438 = vrcp.pop %v1421
    %v1439 = vmul.f32 %v1421, %v1438
    %v1440 = vsub.f32 1.0, %v1439
    %v1441 = vmul.f32 %v1438, %v1440
    %v1442 = vadd.f32 %v1438, %v1441
    %vm1443 = vweird.f32 %v1421
    %vm1444 = vweird.f32 %v1438
    %vm1445 = vmor %vm1443, %vm1444
    %v1446 = vsel %vm1445, %v1438, %v1442
    %v1447 = vand.u32 2147483647, %v1421
    %vm1448 = vcmp.eq.f32.partialorder %v1447, 8.507059e+37
    %v1449 = vand.u32 %v1421, 2147483648
    %v1450 = vor.u32 1.1754944e-38, %v1449
    %v1451 = vsel %vm1448, %v1450, %v1446
    %v1452 = vmul.f32 1.0, %v1451
    %v1453 = vrcp.pop %v1422
    %v1454 = vmul.f32 %v1422, %v1453
    %v1455 = vsub.f32 1.0, %v1454
    %v1456 = vmul.f32 %v1453, %v1455
    %v1457 = vadd.f32 %v1453, %v1456
    %vm1458 = vweird.f32 %v1422
    %vm1459 = vweird.f32 %v1453
    %vm1460 = vmor %vm1458, %vm1459
    %v1461 = vsel %vm1460, %v1453, %v1457
    %v1462 = vand.u32 2147483647, %v1422
    %vm1463 = vcmp.eq.f32.partialorder %v1462, 8.507059e+37
    %v1464 = vand.u32 %v1422, 2147483648
    %v1465 = vor.u32 1.1754944e-38, %v1464
    %v1466 = vsel %vm1463, %v1465, %v1461
    %v1467 = vmul.f32 1.0, %v1466
    %v1468 = vtanh.pop %v1410
    %v1469 = vmul.f32 %v1452, %v1219
    %v1470 = vmul.f32 %v1437, %v1468
    %v1471 = vadd.f32 %v1469, %v1470
    %v1472 = vtanh.pop %v1471
    %v1473 = vmul.f32 %v1467, %v1472
    %v1474 = vadd.f32 %v1406, %v1473
    %v1475 = vpack.c.bf16 %v1474, %v1474
    %1476 = vmatpush.bf16.msra.mxu0 %v648
    %1477 = vmatpush.bf16.msra.mxu0 %v640
    %1478 = vmatpush.bf16.msra.mxu0 %v632
    %1479 = vmatpush.bf16.msra.mxu0 %v624
    %1480 = vmatpush.bf16.msra.mxu0 %v616
    %1481 = vmatpush.bf16.msra.mxu0 %v608
    %1482 = vmatpush.bf16.msra.mxu0 %v600
    %1483 = vmatpush.bf16.msra.mxu0 %v592
    %1484 = vmatmul.bf16.gmra.mxu0 %v1475
    %v1485 = vpop.f32.mrf.mxu0
    %v1486 = vadd.f32 0.0, %v1485
    %v1487 = vpop.f32.mrf.mxu0
    %1488 = vdwg.mxu0
    %1489 = vmatpush.bf16.msra.mxu0 %v649
    %1490 = vmatpush.bf16.msra.mxu0 %v641
    %1491 = vmatpush.bf16.msra.mxu0 %v633
    %1492 = vmatpush.bf16.msra.mxu0 %v625
    %1493 = vmatpush.bf16.msra.mxu0 %v617
    %1494 = vmatpush.bf16.msra.mxu0 %v609
    %1495 = vmatpush.bf16.msra.mxu0 %v601
    %1496 = vmatpush.bf16.msra.mxu0 %v593
    %1497 = vmatmul.bf16.gmra.mxu0 %v1475
    %v1498 = vpop.f32.mrf.mxu0
    %v1499 = vadd.f32 0.0, %v1498
    %v1500 = vpop.f32.mrf.mxu0
    %1501 = vdwg.mxu0
    %1502 = vmatpush.bf16.msra.mxu0 %v650
    %1503 = vmatpush.bf16.msra.mxu0 %v642
    %1504 = vmatpush.bf16.msra.mxu0 %v634
    %1505 = vmatpush.bf16.msra.mxu0 %v626
    %1506 = vmatpush.bf16.msra.mxu0 %v618
    %1507 = vmatpush.bf16.msra.mxu0 %v610
    %1508 = vmatpush.bf16.msra.mxu0 %v602
    %1509 = vmatpush.bf16.msra.mxu0 %v594
    %1510 = vmatmul.bf16.gmra.mxu0 %v1475
    %v1511 = vpop.f32.mrf.mxu0
    %v1512 = vadd.f32 0.0, %v1511
    %v1513 = vpop.f32.mrf.mxu0
    %1514 = vdwg.mxu0
    %1515 = vmatpush.bf16.msra.mxu0 %v651
    %1516 = vmatpush.bf16.msra.mxu0 %v643
    %1517 = vmatpush.bf16.msra.mxu0 %v635
    %1518 = vmatpush.bf16.msra.mxu0 %v627
    %1519 = vmatpush.bf16.msra.mxu0 %v619
    %1520 = vmatpush.bf16.msra.mxu0 %v611
    %1521 = vmatpush.bf16.msra.mxu0 %v603
    %1522 = vmatpush.bf16.msra.mxu0 %v595
    %1523 = vmatmul.bf16.gmra.mxu0 %v1475
    %v1524 = vpop.f32.mrf.mxu0
    %v1525 = vadd.f32 0.0, %v1524
    %v1526 = vpop.f32.mrf.mxu0
    %1527 = vdwg.mxu0
    %1528 = vmatpush.bf16.msra.mxu0 %v652
    %1529 = vmatpush.bf16.msra.mxu0 %v644
    %1530 = vmatpush.bf16.msra.mxu0 %v636
    %1531 = vmatpush.bf16.msra.mxu0 %v628
    %1532 = vmatpush.bf16.msra.mxu0 %v620
    %1533 = vmatpush.bf16.msra.mxu0 %v612
    %1534 = vmatpush.bf16.msra.mxu0 %v604
    %1535 = vmatpush.bf16.msra.mxu0 %v596
    %1536 = vmatmul.bf16.gmra.mxu0 %v1475
    %v1537 = vpop.f32.mrf.mxu0
    %v1538 = vadd.f32 0.0, %v1537
    %v1539 = vpop.f32.mrf.mxu0
    %1540 = vdwg.mxu0
    %1541 = vmatpush.bf16.msra.mxu0 %v653
    %1542 = vmatpush.bf16.msra.mxu0 %v645
    %1543 = vmatpush.bf16.msra.mxu0 %v637
    %1544 = vmatpush.bf16.msra.mxu0 %v629
    %1545 = vmatpush.bf16.msra.mxu0 %v621
    %1546 = vmatpush.bf16.msra.mxu0 %v613
    %1547 = vmatpush.bf16.msra.mxu0 %v605
    %1548 = vmatpush.bf16.msra.mxu0 %v597
    %1549 = vmatmul.bf16.gmra.mxu0 %v1475
    %v1550 = vpop.f32.mrf.mxu0
    %v1551 = vadd.f32 0.0, %v1550
    %v1552 = vpop.f32.mrf.mxu0
    %1553 = vdwg.mxu0
    %1554 = vmatpush.bf16.msra.mxu0 %v654
    %1555 = vmatpush.bf16.msra.mxu0 %v646
    %1556 = vmatpush.bf16.msra.mxu0 %v638
    %1557 = vmatpush.bf16.msra.mxu0 %v630
    %1558 = vmatpush.bf16.msra.mxu0 %v622
    %1559 = vmatpush.bf16.msra.mxu0 %v614
    %1560 = vmatpush.bf16.msra.mxu0 %v606
    %1561 = vmatpush.bf16.msra.mxu0 %v598
    %1562 = vmatmul.bf16.gmra.mxu0 %v1475
    %v1563 = vpop.f32.mrf.mxu0
    %v1564 = vadd.f32 0.0, %v1563
    %v1565 = vpop.f32.mrf.mxu0
    %1566 = vdwg.mxu0
    %1567 = vmatpush.bf16.msra.mxu0 %v655
    %1568 = vmatpush.bf16.msra.mxu0 %v647
    %1569 = vmatpush.bf16.msra.mxu0 %v639
    %1570 = vmatpush.bf16.msra.mxu0 %v631
    %1571 = vmatpush.bf16.msra.mxu0 %v623
    %1572 = vmatpush.bf16.msra.mxu0 %v615
    %1573 = vmatpush.bf16.msra.mxu0 %v607
    %1574 = vmatpush.bf16.msra.mxu0 %v599
    %1575 = vmatmul.bf16.gmra.mxu0 %v1475
    %v1576 = vpop.f32.mrf.mxu0
    %v1577 = vadd.f32 0.0, %v1576
    %v1578 = vpop.f32.mrf.mxu0
    %1579 = vdwg.mxu0
    %s1580 = scalar_lea.vmem [#allocation2], 32
    %v1581 = vld [vmem:[%s1580] sm:$0xff]
    %1583 = vst [vmem:[#allocation1] ss:$4 sm:$0xff] %v1581
    %v1584 = vld.sshfl [vmem:[#allocation1] sm:$0xff pattern:$0x73625140]
    %v1585 = vld.sshfl [vmem:[#allocation1 + $0x8] sm:$0xff pattern:$0x73625140]
    %v1586 = vld.sshfl [vmem:[#allocation1 + $0x10] sm:$0xff pattern:$0x73625140]
    %v1587 = vld.sshfl [vmem:[#allocation1 + $0x18] sm:$0xff pattern:$0x73625140]
    %v1592 = vadd.f32 %v1486, %v1584
    %v1593 = vadd.f32 %v1499, %v1585
    %v1594 = vadd.f32 %v1512, %v1586
    %v1595 = vadd.f32 %v1525, %v1587
    %v1596 = vxor.u32 %v1592, 2147483648
    %v1597 = vxor.u32 %v1593, 2147483648
    %v1598 = vxor.u32 %v1594, 2147483648
    %v1599 = vmul.f32 %v1596, 1.442695
    %v1600 = vpow.pop %v1599
    %v1601 = vmul.f32 %v1597, 1.442695
    %v1602 = vpow.pop %v1601
    %v1603 = vmul.f32 %v1598, 1.442695
    %v1604 = vpow.pop %v1603
    %v1605 = vadd.f32 %v1600, 1.0
    %v1606 = vadd.f32 %v1602, 1.0
    %v1607 = vadd.f32 %v1604, 1.0
    %v1608 = vrcp.pop %v1605
    %v1609 = vmul.f32 %v1605, %v1608
    %v1610 = vsub.f32 1.0, %v1609
    %v1611 = vmul.f32 %v1608, %v1610
    %v1612 = vadd.f32 %v1608, %v1611
    %vm1613 = vweird.f32 %v1605
    %vm1614 = vweird.f32 %v1608
    %vm1615 = vmor %vm1613, %vm1614
    %v1616 = vsel %vm1615, %v1608, %v1612
    %v1617 = vand.u32 2147483647, %v1605
    %vm1618 = vcmp.eq.f32.partialorder %v1617, 8.507059e+37
    %v1619 = vand.u32 %v1605, 2147483648
    %v1620 = vor.u32 1.1754944e-38, %v1619
    %v1621 = vsel %vm1618, %v1620, %v1616
    %v1622 = vmul.f32 1.0, %v1621
    %v1623 = vrcp.pop %v1606
    %v1624 = vmul.f32 %v1606, %v1623
    %v1625 = vsub.f32 1.0, %v1624
    %v1626 = vmul.f32 %v1623, %v1625
    %v1627 = vadd.f32 %v1623, %v1626
    %vm1628 = vweird.f32 %v1606
    %vm1629 = vweird.f32 %v1623
    %vm1630 = vmor %vm1628, %vm1629
    %v1631 = vsel %vm1630, %v1623, %v1627
    %v1632 = vand.u32 2147483647, %v1606
    %vm1633 = vcmp.eq.f32.partialorder %v1632, 8.507059e+37
    %v1634 = vand.u32 %v1606, 2147483648
    %v1635 = vor.u32 1.1754944e-38, %v1634
    %v1636 = vsel %vm1633, %v1635, %v1631
    %v1637 = vmul.f32 1.0, %v1636
    %v1638 = vrcp.pop %v1607
    %v1639 = vmul.f32 %v1607, %v1638
    %v1640 = vsub.f32 1.0, %v1639
    %v1641 = vmul.f32 %v1638, %v1640
    %v1642 = vadd.f32 %v1638, %v1641
    %vm1643 = vweird.f32 %v1607
    %vm1644 = vweird.f32 %v1638
    %vm1645 = vmor %vm1643, %vm1644
    %v1646 = vsel %vm1645, %v1638, %v1642
    %v1647 = vand.u32 2147483647, %v1607
    %vm1648 = vcmp.eq.f32.partialorder %v1647, 8.507059e+37
    %v1649 = vand.u32 %v1607, 2147483648
    %v1650 = vor.u32 1.1754944e-38, %v1649
    %v1651 = vsel %vm1648, %v1650, %v1646
    %v1652 = vmul.f32 1.0, %v1651
    %v1653 = vtanh.pop %v1595
    %v1654 = vmul.f32 %v1637, %v1404
    %v1655 = vmul.f32 %v1622, %v1653
    %v1656 = vadd.f32 %v1654, %v1655
    %v1657 = vtanh.pop %v1656
    %v1658 = vmul.f32 %v1652, %v1657
    %v1659 = vadd.f32 %v1538, %v292
    %v1660 = vadd.f32 %v1551, %v293
    %v1661 = vadd.f32 %v1564, %v294
    %v1662 = vadd.f32 %v1577, %v295
    %v1663 = vxor.u32 %v1659, 2147483648
    %v1664 = vxor.u32 %v1660, 2147483648
    %v1665 = vxor.u32 %v1661, 2147483648
    %v1666 = vmul.f32 %v1663, 1.442695
    %v1667 = vpow.pop %v1666
    %v1668 = vmul.f32 %v1664, 1.442695
    %v1669 = vpow.pop %v1668
    %v1670 = vmul.f32 %v1665, 1.442695
    %v1671 = vpow.pop %v1670
    %v1672 = vadd.f32 %v1667, 1.0
    %v1673 = vadd.f32 %v1669, 1.0
    %v1674 = vadd.f32 %v1671, 1.0
    %v1675 = vrcp.pop %v1672
    %v1676 = vmul.f32 %v1672, %v1675
    %v1677 = vsub.f32 1.0, %v1676
    %v1678 = vmul.f32 %v1675, %v1677
    %v1679 = vadd.f32 %v1675, %v1678
    %vm1680 = vweird.f32 %v1672
    %vm1681 = vweird.f32 %v1675
    %vm1682 = vmor %vm1680, %vm1681
    %v1683 = vsel %vm1682, %v1675, %v1679
    %v1684 = vand.u32 2147483647, %v1672
    %vm1685 = vcmp.eq.f32.partialorder %v1684, 8.507059e+37
    %v1686 = vand.u32 %v1672, 2147483648
    %v1687 = vor.u32 1.1754944e-38, %v1686
    %v1688 = vsel %vm1685, %v1687, %v1683
    %v1689 = vmul.f32 1.0, %v1688
    %v1690 = vrcp.pop %v1673
    %v1691 = vmul.f32 %v1673, %v1690
    %v1692 = vsub.f32 1.0, %v1691
    %v1693 = vmul.f32 %v1690, %v1692
    %v1694 = vadd.f32 %v1690, %v1693
    %vm1695 = vweird.f32 %v1673
    %vm1696 = vweird.f32 %v1690
    %vm1697 = vmor %vm1695, %vm1696
    %v1698 = vsel %vm1697, %v1690, %v1694
    %v1699 = vand.u32 2147483647, %v1673
    %vm1700 = vcmp.eq.f32.partialorder %v1699, 8.507059e+37
    %v1701 = vand.u32 %v1673, 2147483648
    %v1702 = vor.u32 1.1754944e-38, %v1701
    %v1703 = vsel %vm1700, %v1702, %v1698
    %v1704 = vmul.f32 1.0, %v1703
    %v1705 = vrcp.pop %v1674
    %v1706 = vmul.f32 %v1674, %v1705
    %v1707 = vsub.f32 1.0, %v1706
    %v1708 = vmul.f32 %v1705, %v1707
    %v1709 = vadd.f32 %v1705, %v1708
    %vm1710 = vweird.f32 %v1674
    %vm1711 = vweird.f32 %v1705
    %vm1712 = vmor %vm1710, %vm1711
    %v1713 = vsel %vm1712, %v1705, %v1709
    %v1714 = vand.u32 2147483647, %v1674
    %vm1715 = vcmp.eq.f32.partialorder %v1714, 8.507059e+37
    %v1716 = vand.u32 %v1674, 2147483648
    %v1717 = vor.u32 1.1754944e-38, %v1716
    %v1718 = vsel %vm1715, %v1717, %v1713
    %v1719 = vmul.f32 1.0, %v1718
    %v1720 = vtanh.pop %v1662
    %v1721 = vmul.f32 %v1704, %v1471
    %v1722 = vmul.f32 %v1689, %v1720
    %v1723 = vadd.f32 %v1721, %v1722
    %v1724 = vtanh.pop %v1723
    %v1725 = vmul.f32 %v1719, %v1724
    %v1726 = vadd.f32 %v1658, %v1725
    %v1727 = vpack.c.bf16 %v1726, %v1726
    %1728 = vmatpush.bf16.msra.mxu0 %v648
    %1729 = vmatpush.bf16.msra.mxu0 %v640
    %1730 = vmatpush.bf16.msra.mxu0 %v632
    %1731 = vmatpush.bf16.msra.mxu0 %v624
    %1732 = vmatpush.bf16.msra.mxu0 %v616
    %1733 = vmatpush.bf16.msra.mxu0 %v608
    %1734 = vmatpush.bf16.msra.mxu0 %v600
    %1735 = vmatpush.bf16.msra.mxu0 %v592
    %1736 = vmatmul.bf16.gmra.mxu0 %v1727
    %v1737 = vpop.f32.mrf.mxu0
    %v1738 = vadd.f32 0.0, %v1737
    %v1739 = vpop.f32.mrf.mxu0
    %1740 = vdwg.mxu0
    %1741 = vmatpush.bf16.msra.mxu0 %v649
    %1742 = vmatpush.bf16.msra.mxu0 %v641
    %1743 = vmatpush.bf16.msra.mxu0 %v633
    %1744 = vmatpush.bf16.msra.mxu0 %v625
    %1745 = vmatpush.bf16.msra.mxu0 %v617
    %1746 = vmatpush.bf16.msra.mxu0 %v609
    %1747 = vmatpush.bf16.msra.mxu0 %v601
    %1748 = vmatpush.bf16.msra.mxu0 %v593
    %1749 = vmatmul.bf16.gmra.mxu0 %v1727
    %v1750 = vpop.f32.mrf.mxu0
    %v1751 = vadd.f32 0.0, %v1750
    %v1752 = vpop.f32.mrf.mxu0
    %1753 = vdwg.mxu0
    %1754 = vmatpush.bf16.msra.mxu0 %v650
    %1755 = vmatpush.bf16.msra.mxu0 %v642
    %1756 = vmatpush.bf16.msra.mxu0 %v634
    %1757 = vmatpush.bf16.msra.mxu0 %v626
    %1758 = vmatpush.bf16.msra.mxu0 %v618
    %1759 = vmatpush.bf16.msra.mxu0 %v610
    %1760 = vmatpush.bf16.msra.mxu0 %v602
    %1761 = vmatpush.bf16.msra.mxu0 %v594
    %1762 = vmatmul.bf16.gmra.mxu0 %v1727
    %v1763 = vpop.f32.mrf.mxu0
    %v1764 = vadd.f32 0.0, %v1763
    %v1765 = vpop.f32.mrf.mxu0
    %1766 = vdwg.mxu0
    %1767 = vmatpush.bf16.msra.mxu0 %v651
    %1768 = vmatpush.bf16.msra.mxu0 %v643
    %1769 = vmatpush.bf16.msra.mxu0 %v635
    %1770 = vmatpush.bf16.msra.mxu0 %v627
    %1771 = vmatpush.bf16.msra.mxu0 %v619
    %1772 = vmatpush.bf16.msra.mxu0 %v611
    %1773 = vmatpush.bf16.msra.mxu0 %v603
    %1774 = vmatpush.bf16.msra.mxu0 %v595
    %1775 = vmatmul.bf16.gmra.mxu0 %v1727
    %v1776 = vpop.f32.mrf.mxu0
    %v1777 = vadd.f32 0.0, %v1776
    %v1778 = vpop.f32.mrf.mxu0
    %1779 = vdwg.mxu0
    %1780 = vmatpush.bf16.msra.mxu0 %v652
    %1781 = vmatpush.bf16.msra.mxu0 %v644
    %1782 = vmatpush.bf16.msra.mxu0 %v636
    %1783 = vmatpush.bf16.msra.mxu0 %v628
    %1784 = vmatpush.bf16.msra.mxu0 %v620
    %1785 = vmatpush.bf16.msra.mxu0 %v612
    %1786 = vmatpush.bf16.msra.mxu0 %v604
    %1787 = vmatpush.bf16.msra.mxu0 %v596
    %1788 = vmatmul.bf16.gmra.mxu0 %v1727
    %v1789 = vpop.f32.mrf.mxu0
    %v1790 = vadd.f32 0.0, %v1789
    %v1791 = vpop.f32.mrf.mxu0
    %1792 = vdwg.mxu0
    %1793 = vmatpush.bf16.msra.mxu0 %v653
    %1794 = vmatpush.bf16.msra.mxu0 %v645
    %1795 = vmatpush.bf16.msra.mxu0 %v637
    %1796 = vmatpush.bf16.msra.mxu0 %v629
    %1797 = vmatpush.bf16.msra.mxu0 %v621
    %1798 = vmatpush.bf16.msra.mxu0 %v613
    %1799 = vmatpush.bf16.msra.mxu0 %v605
    %1800 = vmatpush.bf16.msra.mxu0 %v597
    %1801 = vmatmul.bf16.gmra.mxu0 %v1727
    %v1802 = vpop.f32.mrf.mxu0
    %v1803 = vadd.f32 0.0, %v1802
    %v1804 = vpop.f32.mrf.mxu0
    %1805 = vdwg.mxu0
    %1806 = vmatpush.bf16.msra.mxu0 %v654
    %1807 = vmatpush.bf16.msra.mxu0 %v646
    %1808 = vmatpush.bf16.msra.mxu0 %v638
    %1809 = vmatpush.bf16.msra.mxu0 %v630
    %1810 = vmatpush.bf16.msra.mxu0 %v622
    %1811 = vmatpush.bf16.msra.mxu0 %v614
    %1812 = vmatpush.bf16.msra.mxu0 %v606
    %1813 = vmatpush.bf16.msra.mxu0 %v598
    %1814 = vmatmul.bf16.gmra.mxu0 %v1727
    %v1815 = vpop.f32.mrf.mxu0
    %v1816 = vadd.f32 0.0, %v1815
    %v1817 = vpop.f32.mrf.mxu0
    %1818 = vdwg.mxu0
    %1819 = vmatpush.bf16.msra.mxu0 %v655
    %1820 = vmatpush.bf16.msra.mxu0 %v647
    %1821 = vmatpush.bf16.msra.mxu0 %v639
    %1822 = vmatpush.bf16.msra.mxu0 %v631
    %1823 = vmatpush.bf16.msra.mxu0 %v623
    %1824 = vmatpush.bf16.msra.mxu0 %v615
    %1825 = vmatpush.bf16.msra.mxu0 %v607
    %1826 = vmatpush.bf16.msra.mxu0 %v599
    %1827 = vmatmul.bf16.gmra.mxu0 %v1727
    %v1828 = vpop.f32.mrf.mxu0
    %v1829 = vadd.f32 0.0, %v1828
    %v1830 = vpop.f32.mrf.mxu0
    %1831 = vdwg.mxu0
    %s1832 = scalar_lea.vmem [#allocation2], 40
    %v1833 = vld [vmem:[%s1832] sm:$0xff]
    %1835 = vst [vmem:[#allocation1] ss:$4 sm:$0xff] %v1833
    %v1836 = vld.sshfl [vmem:[#allocation1] sm:$0xff pattern:$0x73625140]
    %v1837 = vld.sshfl [vmem:[#allocation1 + $0x8] sm:$0xff pattern:$0x73625140]
    %v1838 = vld.sshfl [vmem:[#allocation1 + $0x10] sm:$0xff pattern:$0x73625140]
    %v1839 = vld.sshfl [vmem:[#allocation1 + $0x18] sm:$0xff pattern:$0x73625140]
    %v1844 = vadd.f32 %v1738, %v1836
    %v1845 = vadd.f32 %v1751, %v1837
    %v1846 = vadd.f32 %v1764, %v1838
    %v1847 = vadd.f32 %v1777, %v1839
    %v1848 = vxor.u32 %v1844, 2147483648
    %v1849 = vxor.u32 %v1845, 2147483648
    %v1850 = vxor.u32 %v1846, 2147483648
    %v1851 = vmul.f32 %v1848, 1.442695
    %v1852 = vpow.pop %v1851
    %v1853 = vmul.f32 %v1849, 1.442695
    %v1854 = vpow.pop %v1853
    %v1855 = vmul.f32 %v1850, 1.442695
    %v1856 = vpow.pop %v1855
    %v1857 = vadd.f32 %v1852, 1.0
    %v1858 = vadd.f32 %v1854, 1.0
    %v1859 = vadd.f32 %v1856, 1.0
    %v1860 = vrcp.pop %v1857
    %v1861 = vmul.f32 %v1857, %v1860
    %v1862 = vsub.f32 1.0, %v1861
    %v1863 = vmul.f32 %v1860, %v1862
    %v1864 = vadd.f32 %v1860, %v1863
    %vm1865 = vweird.f32 %v1857
    %vm1866 = vweird.f32 %v1860
    %vm1867 = vmor %vm1865, %vm1866
    %v1868 = vsel %vm1867, %v1860, %v1864
    %v1869 = vand.u32 2147483647, %v1857
    %vm1870 = vcmp.eq.f32.partialorder %v1869, 8.507059e+37
    %v1871 = vand.u32 %v1857, 2147483648
    %v1872 = vor.u32 1.1754944e-38, %v1871
    %v1873 = vsel %vm1870, %v1872, %v1868
    %v1874 = vmul.f32 1.0, %v1873
    %v1875 = vrcp.pop %v1858
    %v1876 = vmul.f32 %v1858, %v1875
    %v1877 = vsub.f32 1.0, %v1876
    %v1878 = vmul.f32 %v1875, %v1877
    %v1879 = vadd.f32 %v1875, %v1878
    %vm1880 = vweird.f32 %v1858
    %vm1881 = vweird.f32 %v1875
    %vm1882 = vmor %vm1880, %vm1881
    %v1883 = vsel %vm1882, %v1875, %v1879
    %v1884 = vand.u32 2147483647, %v1858
    %vm1885 = vcmp.eq.f32.partialorder %v1884, 8.507059e+37
    %v1886 = vand.u32 %v1858, 2147483648
    %v1887 = vor.u32 1.1754944e-38, %v1886
    %v1888 = vsel %vm1885, %v1887, %v1883
    %v1889 = vmul.f32 1.0, %v1888
    %v1890 = vrcp.pop %v1859
    %v1891 = vmul.f32 %v1859, %v1890
    %v1892 = vsub.f32 1.0, %v1891
    %v1893 = vmul.f32 %v1890, %v1892
    %v1894 = vadd.f32 %v1890, %v1893
    %vm1895 = vweird.f32 %v1859
    %vm1896 = vweird.f32 %v1890
    %vm1897 = vmor %vm1895, %vm1896
    %v1898 = vsel %vm1897, %v1890, %v1894
    %v1899 = vand.u32 2147483647, %v1859
    %vm1900 = vcmp.eq.f32.partialorder %v1899, 8.507059e+37
    %v1901 = vand.u32 %v1859, 2147483648
    %v1902 = vor.u32 1.1754944e-38, %v1901
    %v1903 = vsel %vm1900, %v1902, %v1898
    %v1904 = vmul.f32 1.0, %v1903
    %v1905 = vtanh.pop %v1847
    %v1906 = vmul.f32 %v1889, %v1656
    %v1907 = vmul.f32 %v1874, %v1905
    %v1908 = vadd.f32 %v1906, %v1907
    %v1909 = vtanh.pop %v1908
    %v1910 = vmul.f32 %v1904, %v1909
    %v1911 = vadd.f32 %v1790, %v292
    %v1912 = vadd.f32 %v1803, %v293
    %v1913 = vadd.f32 %v1816, %v294
    %v1914 = vadd.f32 %v1829, %v295
    %v1915 = vxor.u32 %v1911, 2147483648
    %v1916 = vxor.u32 %v1912, 2147483648
    %v1917 = vxor.u32 %v1913, 2147483648
    %v1918 = vmul.f32 %v1915, 1.442695
    %v1919 = vpow.pop %v1918
    %v1920 = vmul.f32 %v1916, 1.442695
    %v1921 = vpow.pop %v1920
    %v1922 = vmul.f32 %v1917, 1.442695
    %v1923 = vpow.pop %v1922
    %v1924 = vadd.f32 %v1919, 1.0
    %v1925 = vadd.f32 %v1921, 1.0
    %v1926 = vadd.f32 %v1923, 1.0
    %v1927 = vrcp.pop %v1924
    %v1928 = vmul.f32 %v1924, %v1927
    %v1929 = vsub.f32 1.0, %v1928
    %v1930 = vmul.f32 %v1927, %v1929
    %v1931 = vadd.f32 %v1927, %v1930
    %vm1932 = vweird.f32 %v1924
    %vm1933 = vweird.f32 %v1927
    %vm1934 = vmor %vm1932, %vm1933
    %v1935 = vsel %vm1934, %v1927, %v1931
    %v1936 = vand.u32 2147483647, %v1924
    %vm1937 = vcmp.eq.f32.partialorder %v1936, 8.507059e+37
    %v1938 = vand.u32 %v1924, 2147483648
    %v1939 = vor.u32 1.1754944e-38, %v1938
    %v1940 = vsel %vm1937, %v1939, %v1935
    %v1941 = vmul.f32 1.0, %v1940
    %v1942 = vrcp.pop %v1925
    %v1943 = vmul.f32 %v1925, %v1942
    %v1944 = vsub.f32 1.0, %v1943
    %v1945 = vmul.f32 %v1942, %v1944
    %v1946 = vadd.f32 %v1942, %v1945
    %vm1947 = vweird.f32 %v1925
    %vm1948 = vweird.f32 %v1942
    %vm1949 = vmor %vm1947, %vm1948
    %v1950 = vsel %vm1949, %v1942, %v1946
    %v1951 = vand.u32 2147483647, %v1925
    %vm1952 = vcmp.eq.f32.partialorder %v1951, 8.507059e+37
    %v1953 = vand.u32 %v1925, 2147483648
    %v1954 = vor.u32 1.1754944e-38, %v1953
    %v1955 = vsel %vm1952, %v1954, %v1950
    %v1956 = vmul.f32 1.0, %v1955
    %v1957 = vrcp.pop %v1926
    %v1958 = vmul.f32 %v1926, %v1957
    %v1959 = vsub.f32 1.0, %v1958
    %v1960 = vmul.f32 %v1957, %v1959
    %v1961 = vadd.f32 %v1957, %v1960
    %vm1962 = vweird.f32 %v1926
    %vm1963 = vweird.f32 %v1957
    %vm1964 = vmor %vm1962, %vm1963
    %v1965 = vsel %vm1964, %v1957, %v1961
    %v1966 = vand.u32 2147483647, %v1926
    %vm1967 = vcmp.eq.f32.partialorder %v1966, 8.507059e+37
    %v1968 = vand.u32 %v1926, 2147483648
    %v1969 = vor.u32 1.1754944e-38, %v1968
    %v1970 = vsel %vm1967, %v1969, %v1965
    %v1971 = vmul.f32 1.0, %v1970
    %v1972 = vtanh.pop %v1914
    %v1973 = vmul.f32 %v1956, %v1723
    %v1974 = vmul.f32 %v1941, %v1972
    %v1975 = vadd.f32 %v1973, %v1974
    %v1976 = vtanh.pop %v1975
    %v1977 = vmul.f32 %v1971, %v1976
    %v1978 = vadd.f32 %v1910, %v1977
    %v1979 = vpack.c.bf16 %v1978, %v1978
    %1980 = vmatpush.bf16.msra.mxu0 %v648
    %1981 = vmatpush.bf16.msra.mxu0 %v640
    %1982 = vmatpush.bf16.msra.mxu0 %v632
    %1983 = vmatpush.bf16.msra.mxu0 %v624
    %1984 = vmatpush.bf16.msra.mxu0 %v616
    %1985 = vmatpush.bf16.msra.mxu0 %v608
    %1986 = vmatpush.bf16.msra.mxu0 %v600
    %1987 = vmatpush.bf16.msra.mxu0 %v592
    %1988 = vmatmul.bf16.gmra.mxu0 %v1979
    %v1989 = vpop.f32.mrf.mxu0
    %v1990 = vadd.f32 0.0, %v1989
    %v1991 = vpop.f32.mrf.mxu0
    %1992 = vdwg.mxu0
    %1993 = vmatpush.bf16.msra.mxu0 %v649
    %1994 = vmatpush.bf16.msra.mxu0 %v641
    %1995 = vmatpush.bf16.msra.mxu0 %v633
    %1996 = vmatpush.bf16.msra.mxu0 %v625
    %1997 = vmatpush.bf16.msra.mxu0 %v617
    %1998 = vmatpush.bf16.msra.mxu0 %v609
    %1999 = vmatpush.bf16.msra.mxu0 %v601
    %2000 = vmatpush.bf16.msra.mxu0 %v593
    %2001 = vmatmul.bf16.gmra.mxu0 %v1979
    %v2002 = vpop.f32.mrf.mxu0
    %v2003 = vadd.f32 0.0, %v2002
    %v2004 = vpop.f32.mrf.mxu0
    %2005 = vdwg.mxu0
    %2006 = vmatpush.bf16.msra.mxu0 %v650
    %2007 = vmatpush.bf16.msra.mxu0 %v642
    %2008 = vmatpush.bf16.msra.mxu0 %v634
    %2009 = vmatpush.bf16.msra.mxu0 %v626
    %2010 = vmatpush.bf16.msra.mxu0 %v618
    %2011 = vmatpush.bf16.msra.mxu0 %v610
    %2012 = vmatpush.bf16.msra.mxu0 %v602
    %2013 = vmatpush.bf16.msra.mxu0 %v594
    %2014 = vmatmul.bf16.gmra.mxu0 %v1979
    %v2015 = vpop.f32.mrf.mxu0
    %v2016 = vadd.f32 0.0, %v2015
    %v2017 = vpop.f32.mrf.mxu0
    %2018 = vdwg.mxu0
    %2019 = vmatpush.bf16.msra.mxu0 %v651
    %2020 = vmatpush.bf16.msra.mxu0 %v643
    %2021 = vmatpush.bf16.msra.mxu0 %v635
    %2022 = vmatpush.bf16.msra.mxu0 %v627
    %2023 = vmatpush.bf16.msra.mxu0 %v619
    %2024 = vmatpush.bf16.msra.mxu0 %v611
    %2025 = vmatpush.bf16.msra.mxu0 %v603
    %2026 = vmatpush.bf16.msra.mxu0 %v595
    %2027 = vmatmul.bf16.gmra.mxu0 %v1979
    %v2028 = vpop.f32.mrf.mxu0
    %v2029 = vadd.f32 0.0, %v2028
    %v2030 = vpop.f32.mrf.mxu0
    %2031 = vdwg.mxu0
    %2032 = vmatpush.bf16.msra.mxu0 %v652
    %2033 = vmatpush.bf16.msra.mxu0 %v644
    %2034 = vmatpush.bf16.msra.mxu0 %v636
    %2035 = vmatpush.bf16.msra.mxu0 %v628
    %2036 = vmatpush.bf16.msra.mxu0 %v620
    %2037 = vmatpush.bf16.msra.mxu0 %v612
    %2038 = vmatpush.bf16.msra.mxu0 %v604
    %2039 = vmatpush.bf16.msra.mxu0 %v596
    %2040 = vmatmul.bf16.gmra.mxu0 %v1979
    %v2041 = vpop.f32.mrf.mxu0
    %v2042 = vadd.f32 0.0, %v2041
    %v2043 = vpop.f32.mrf.mxu0
    %2044 = vdwg.mxu0
    %2045 = vmatpush.bf16.msra.mxu0 %v653
    %2046 = vmatpush.bf16.msra.mxu0 %v645
    %2047 = vmatpush.bf16.msra.mxu0 %v637
    %2048 = vmatpush.bf16.msra.mxu0 %v629
    %2049 = vmatpush.bf16.msra.mxu0 %v621
    %2050 = vmatpush.bf16.msra.mxu0 %v613
    %2051 = vmatpush.bf16.msra.mxu0 %v605
    %2052 = vmatpush.bf16.msra.mxu0 %v597
    %2053 = vmatmul.bf16.gmra.mxu0 %v1979
    %v2054 = vpop.f32.mrf.mxu0
    %v2055 = vadd.f32 0.0, %v2054
    %v2056 = vpop.f32.mrf.mxu0
    %2057 = vdwg.mxu0
    %2058 = vmatpush.bf16.msra.mxu0 %v654
    %2059 = vmatpush.bf16.msra.mxu0 %v646
    %2060 = vmatpush.bf16.msra.mxu0 %v638
    %2061 = vmatpush.bf16.msra.mxu0 %v630
    %2062 = vmatpush.bf16.msra.mxu0 %v622
    %2063 = vmatpush.bf16.msra.mxu0 %v614
    %2064 = vmatpush.bf16.msra.mxu0 %v606
    %2065 = vmatpush.bf16.msra.mxu0 %v598
    %2066 = vmatmul.bf16.gmra.mxu0 %v1979
    %v2067 = vpop.f32.mrf.mxu0
    %v2068 = vadd.f32 0.0, %v2067
    %v2069 = vpop.f32.mrf.mxu0
    %2070 = vdwg.mxu0
    %2071 = vmatpush.bf16.msra.mxu0 %v655
    %2072 = vmatpush.bf16.msra.mxu0 %v647
    %2073 = vmatpush.bf16.msra.mxu0 %v639
    %2074 = vmatpush.bf16.msra.mxu0 %v631
    %2075 = vmatpush.bf16.msra.mxu0 %v623
    %2076 = vmatpush.bf16.msra.mxu0 %v615
    %2077 = vmatpush.bf16.msra.mxu0 %v607
    %2078 = vmatpush.bf16.msra.mxu0 %v599
    %2079 = vmatmul.bf16.gmra.mxu0 %v1979
    %v2080 = vpop.f32.mrf.mxu0
    %v2081 = vadd.f32 0.0, %v2080
    %v2082 = vpop.f32.mrf.mxu0
    %2083 = vdwg.mxu0
    %s2084 = scalar_lea.vmem [#allocation2], 48
    %v2085 = vld [vmem:[%s2084] sm:$0xff]
    %2087 = vst [vmem:[#allocation1] ss:$4 sm:$0xff] %v2085
    %v2088 = vld.sshfl [vmem:[#allocation1] sm:$0xff pattern:$0x73625140]
    %v2089 = vld.sshfl [vmem:[#allocation1 + $0x8] sm:$0xff pattern:$0x73625140]
    %v2090 = vld.sshfl [vmem:[#allocation1 + $0x10] sm:$0xff pattern:$0x73625140]
    %v2091 = vld.sshfl [vmem:[#allocation1 + $0x18] sm:$0xff pattern:$0x73625140]
    %v2096 = vadd.f32 %v1990, %v2088
    %v2097 = vadd.f32 %v2003, %v2089
    %v2098 = vadd.f32 %v2016, %v2090
    %v2099 = vadd.f32 %v2029, %v2091
    %v2100 = vxor.u32 %v2096, 2147483648
    %v2101 = vxor.u32 %v2097, 2147483648
    %v2102 = vxor.u32 %v2098, 2147483648
    %v2103 = vmul.f32 %v2100, 1.442695
    %v2104 = vpow.pop %v2103
    %v2105 = vmul.f32 %v2101, 1.442695
    %v2106 = vpow.pop %v2105
    %v2107 = vmul.f32 %v2102, 1.442695
    %v2108 = vpow.pop %v2107
    %v2109 = vadd.f32 %v2104, 1.0
    %v2110 = vadd.f32 %v2106, 1.0
    %v2111 = vadd.f32 %v2108, 1.0
    %v2112 = vrcp.pop %v2109
    %v2113 = vmul.f32 %v2109, %v2112
    %v2114 = vsub.f32 1.0, %v2113
    %v2115 = vmul.f32 %v2112, %v2114
    %v2116 = vadd.f32 %v2112, %v2115
    %vm2117 = vweird.f32 %v2109
    %vm2118 = vweird.f32 %v2112
    %vm2119 = vmor %vm2117, %vm2118
    %v2120 = vsel %vm2119, %v2112, %v2116
    %v2121 = vand.u32 2147483647, %v2109
    %vm2122 = vcmp.eq.f32.partialorder %v2121, 8.507059e+37
    %v2123 = vand.u32 %v2109, 2147483648
    %v2124 = vor.u32 1.1754944e-38, %v2123
    %v2125 = vsel %vm2122, %v2124, %v2120
    %v2126 = vmul.f32 1.0, %v2125
    %v2127 = vrcp.pop %v2110
    %v2128 = vmul.f32 %v2110, %v2127
    %v2129 = vsub.f32 1.0, %v2128
    %v2130 = vmul.f32 %v2127, %v2129
    %v2131 = vadd.f32 %v2127, %v2130
    %vm2132 = vweird.f32 %v2110
    %vm2133 = vweird.f32 %v2127
    %vm2134 = vmor %vm2132, %vm2133
    %v2135 = vsel %vm2134, %v2127, %v2131
    %v2136 = vand.u32 2147483647, %v2110
    %vm2137 = vcmp.eq.f32.partialorder %v2136, 8.507059e+37
    %v2138 = vand.u32 %v2110, 2147483648
    %v2139 = vor.u32 1.1754944e-38, %v2138
    %v2140 = vsel %vm2137, %v2139, %v2135
    %v2141 = vmul.f32 1.0, %v2140
    %v2142 = vrcp.pop %v2111
    %v2143 = vmul.f32 %v2111, %v2142
    %v2144 = vsub.f32 1.0, %v2143
    %v2145 = vmul.f32 %v2142, %v2144
    %v2146 = vadd.f32 %v2142, %v2145
    %vm2147 = vweird.f32 %v2111
    %vm2148 = vweird.f32 %v2142
    %vm2149 = vmor %vm2147, %vm2148
    %v2150 = vsel %vm2149, %v2142, %v2146
    %v2151 = vand.u32 2147483647, %v2111
    %vm2152 = vcmp.eq.f32.partialorder %v2151, 8.507059e+37
    %v2153 = vand.u32 %v2111, 2147483648
    %v2154 = vor.u32 1.1754944e-38, %v2153
    %v2155 = vsel %vm2152, %v2154, %v2150
    %v2156 = vmul.f32 1.0, %v2155
    %v2157 = vtanh.pop %v2099
    %v2158 = vmul.f32 %v2141, %v1908
    %v2159 = vmul.f32 %v2126, %v2157
    %v2160 = vadd.f32 %v2158, %v2159
    %v2161 = vtanh.pop %v2160
    %v2162 = vmul.f32 %v2156, %v2161
    %v2163 = vadd.f32 %v2042, %v292
    %v2164 = vadd.f32 %v2055, %v293
    %v2165 = vadd.f32 %v2068, %v294
    %v2166 = vadd.f32 %v2081, %v295
    %v2167 = vxor.u32 %v2163, 2147483648
    %v2168 = vxor.u32 %v2164, 2147483648
    %v2169 = vxor.u32 %v2165, 2147483648
    %v2170 = vmul.f32 %v2167, 1.442695
    %v2171 = vpow.pop %v2170
    %v2172 = vmul.f32 %v2168, 1.442695
    %v2173 = vpow.pop %v2172
    %v2174 = vmul.f32 %v2169, 1.442695
    %v2175 = vpow.pop %v2174
    %v2176 = vadd.f32 %v2171, 1.0
    %v2177 = vadd.f32 %v2173, 1.0
    %v2178 = vadd.f32 %v2175, 1.0
    %v2179 = vrcp.pop %v2176
    %v2180 = vmul.f32 %v2176, %v2179
    %v2181 = vsub.f32 1.0, %v2180
    %v2182 = vmul.f32 %v2179, %v2181
    %v2183 = vadd.f32 %v2179, %v2182
    %vm2184 = vweird.f32 %v2176
    %vm2185 = vweird.f32 %v2179
    %vm2186 = vmor %vm2184, %vm2185
    %v2187 = vsel %vm2186, %v2179, %v2183
    %v2188 = vand.u32 2147483647, %v2176
    %vm2189 = vcmp.eq.f32.partialorder %v2188, 8.507059e+37
    %v2190 = vand.u32 %v2176, 2147483648
    %v2191 = vor.u32 1.1754944e-38, %v2190
    %v2192 = vsel %vm2189, %v2191, %v2187
    %v2193 = vmul.f32 1.0, %v2192
    %v2194 = vrcp.pop %v2177
    %v2195 = vmul.f32 %v2177, %v2194
    %v2196 = vsub.f32 1.0, %v2195
    %v2197 = vmul.f32 %v2194, %v2196
    %v2198 = vadd.f32 %v2194, %v2197
    %vm2199 = vweird.f32 %v2177
    %vm2200 = vweird.f32 %v2194
    %vm2201 = vmor %vm2199, %vm2200
    %v2202 = vsel %vm2201, %v2194, %v2198
    %v2203 = vand.u32 2147483647, %v2177
    %vm2204 = vcmp.eq.f32.partialorder %v2203, 8.507059e+37
    %v2205 = vand.u32 %v2177, 2147483648
    %v2206 = vor.u32 1.1754944e-38, %v2205
    %v2207 = vsel %vm2204, %v2206, %v2202
    %v2208 = vmul.f32 1.0, %v2207
    %v2209 = vrcp.pop %v2178
    %v2210 = vmul.f32 %v2178, %v2209
    %v2211 = vsub.f32 1.0, %v2210
    %v2212 = vmul.f32 %v2209, %v2211
    %v2213 = vadd.f32 %v2209, %v2212
    %vm2214 = vweird.f32 %v2178
    %vm2215 = vweird.f32 %v2209
    %vm2216 = vmor %vm2214, %vm2215
    %v2217 = vsel %vm2216, %v2209, %v2213
    %v2218 = vand.u32 2147483647, %v2178
    %vm2219 = vcmp.eq.f32.partialorder %v2218, 8.507059e+37
    %v2220 = vand.u32 %v2178, 2147483648
    %v2221 = vor.u32 1.1754944e-38, %v2220
    %v2222 = vsel %vm2219, %v2221, %v2217
    %v2223 = vmul.f32 1.0, %v2222
    %v2224 = vtanh.pop %v2166
    %v2225 = vmul.f32 %v2208, %v1975
    %v2226 = vmul.f32 %v2193, %v2224
    %v2227 = vadd.f32 %v2225, %v2226
    %v2228 = vtanh.pop %v2227
    %v2229 = vmul.f32 %v2223, %v2228
    %v2230 = vadd.f32 %v2162, %v2229
    %v2231 = vpack.c.bf16 %v2230, %v2230
    %2232 = vmatpush.bf16.msra.mxu0 %v648
    %2233 = vmatpush.bf16.msra.mxu0 %v640
    %2234 = vmatpush.bf16.msra.mxu0 %v632
    %2235 = vmatpush.bf16.msra.mxu0 %v624
    %2236 = vmatpush.bf16.msra.mxu0 %v616
    %2237 = vmatpush.bf16.msra.mxu0 %v608
    %2238 = vmatpush.bf16.msra.mxu0 %v600
    %2239 = vmatpush.bf16.msra.mxu0 %v592
    %2240 = vmatmul.bf16.gmra.mxu0 %v2231
    %v2241 = vpop.f32.mrf.mxu0
    %v2242 = vadd.f32 0.0, %v2241
    %v2243 = vpop.f32.mrf.mxu0
    %2244 = vdwg.mxu0
    %2245 = vmatpush.bf16.msra.mxu0 %v649
    %2246 = vmatpush.bf16.msra.mxu0 %v641
    %2247 = vmatpush.bf16.msra.mxu0 %v633
    %2248 = vmatpush.bf16.msra.mxu0 %v625
    %2249 = vmatpush.bf16.msra.mxu0 %v617
    %2250 = vmatpush.bf16.msra.mxu0 %v609
    %2251 = vmatpush.bf16.msra.mxu0 %v601
    %2252 = vmatpush.bf16.msra.mxu0 %v593
    %2253 = vmatmul.bf16.gmra.mxu0 %v2231
    %v2254 = vpop.f32.mrf.mxu0
    %v2255 = vadd.f32 0.0, %v2254
    %v2256 = vpop.f32.mrf.mxu0
    %2257 = vdwg.mxu0
    %2258 = vmatpush.bf16.msra.mxu0 %v650
    %2259 = vmatpush.bf16.msra.mxu0 %v642
    %2260 = vmatpush.bf16.msra.mxu0 %v634
    %2261 = vmatpush.bf16.msra.mxu0 %v626
    %2262 = vmatpush.bf16.msra.mxu0 %v618
    %2263 = vmatpush.bf16.msra.mxu0 %v610
    %2264 = vmatpush.bf16.msra.mxu0 %v602
    %2265 = vmatpush.bf16.msra.mxu0 %v594
    %2266 = vmatmul.bf16.gmra.mxu0 %v2231
    %v2267 = vpop.f32.mrf.mxu0
    %v2268 = vadd.f32 0.0, %v2267
    %v2269 = vpop.f32.mrf.mxu0
    %2270 = vdwg.mxu0
    %2271 = vmatpush.bf16.msra.mxu0 %v651
    %2272 = vmatpush.bf16.msra.mxu0 %v643
    %2273 = vmatpush.bf16.msra.mxu0 %v635
    %2274 = vmatpush.bf16.msra.mxu0 %v627
    %2275 = vmatpush.bf16.msra.mxu0 %v619
    %2276 = vmatpush.bf16.msra.mxu0 %v611
    %2277 = vmatpush.bf16.msra.mxu0 %v603
    %2278 = vmatpush.bf16.msra.mxu0 %v595
    %2279 = vmatmul.bf16.gmra.mxu0 %v2231
    %v2280 = vpop.f32.mrf.mxu0
    %v2281 = vadd.f32 0.0, %v2280
    %v2282 = vpop.f32.mrf.mxu0
    %2283 = vdwg.mxu0
    %2284 = vmatpush.bf16.msra.mxu0 %v652
    %2285 = vmatpush.bf16.msra.mxu0 %v644
    %2286 = vmatpush.bf16.msra.mxu0 %v636
    %2287 = vmatpush.bf16.msra.mxu0 %v628
    %2288 = vmatpush.bf16.msra.mxu0 %v620
    %2289 = vmatpush.bf16.msra.mxu0 %v612
    %2290 = vmatpush.bf16.msra.mxu0 %v604
    %2291 = vmatpush.bf16.msra.mxu0 %v596
    %2292 = vmatmul.bf16.gmra.mxu0 %v2231
    %v2293 = vpop.f32.mrf.mxu0
    %v2294 = vadd.f32 0.0, %v2293
    %v2295 = vpop.f32.mrf.mxu0
    %2296 = vdwg.mxu0
    %2297 = vmatpush.bf16.msra.mxu0 %v653
    %2298 = vmatpush.bf16.msra.mxu0 %v645
    %2299 = vmatpush.bf16.msra.mxu0 %v637
    %2300 = vmatpush.bf16.msra.mxu0 %v629
    %2301 = vmatpush.bf16.msra.mxu0 %v621
    %2302 = vmatpush.bf16.msra.mxu0 %v613
    %2303 = vmatpush.bf16.msra.mxu0 %v605
    %2304 = vmatpush.bf16.msra.mxu0 %v597
    %2305 = vmatmul.bf16.gmra.mxu0 %v2231
    %v2306 = vpop.f32.mrf.mxu0
    %v2307 = vadd.f32 0.0, %v2306
    %v2308 = vpop.f32.mrf.mxu0
    %2309 = vdwg.mxu0
    %2310 = vmatpush.bf16.msra.mxu0 %v654
    %2311 = vmatpush.bf16.msra.mxu0 %v646
    %2312 = vmatpush.bf16.msra.mxu0 %v638
    %2313 = vmatpush.bf16.msra.mxu0 %v630
    %2314 = vmatpush.bf16.msra.mxu0 %v622
    %2315 = vmatpush.bf16.msra.mxu0 %v614
    %2316 = vmatpush.bf16.msra.mxu0 %v606
    %2317 = vmatpush.bf16.msra.mxu0 %v598
    %2318 = vmatmul.bf16.gmra.mxu0 %v2231
    %v2319 = vpop.f32.mrf.mxu0
    %v2320 = vadd.f32 0.0, %v2319
    %v2321 = vpop.f32.mrf.mxu0
    %2322 = vdwg.mxu0
    %2323 = vmatpush.bf16.msra.mxu0 %v655
    %2324 = vmatpush.bf16.msra.mxu0 %v647
    %2325 = vmatpush.bf16.msra.mxu0 %v639
    %2326 = vmatpush.bf16.msra.mxu0 %v631
    %2327 = vmatpush.bf16.msra.mxu0 %v623
    %2328 = vmatpush.bf16.msra.mxu0 %v615
    %2329 = vmatpush.bf16.msra.mxu0 %v607
    %2330 = vmatpush.bf16.msra.mxu0 %v599
    %2331 = vmatmul.bf16.gmra.mxu0 %v2231
    %v2332 = vpop.f32.mrf.mxu0
    %v2333 = vadd.f32 0.0, %v2332
    %v2334 = vpop.f32.mrf.mxu0
    %2335 = vdwg.mxu0
    %s2336 = scalar_lea.vmem [#allocation2], 56
    %v2337 = vld [vmem:[%s2336] sm:$0xff]
    %2339 = vst [vmem:[#allocation1] ss:$4 sm:$0xff] %v2337
    %v2340 = vld.sshfl [vmem:[#allocation1] sm:$0xff pattern:$0x73625140]
    %v2341 = vld.sshfl [vmem:[#allocation1 + $0x8] sm:$0xff pattern:$0x73625140]
    %v2342 = vld.sshfl [vmem:[#allocation1 + $0x10] sm:$0xff pattern:$0x73625140]
    %v2343 = vld.sshfl [vmem:[#allocation1 + $0x18] sm:$0xff pattern:$0x73625140]
    %v2348 = vadd.f32 %v2242, %v2340
    %v2349 = vadd.f32 %v2255, %v2341
    %v2350 = vadd.f32 %v2268, %v2342
    %v2351 = vadd.f32 %v2281, %v2343
    %v2352 = vxor.u32 %v2348, 2147483648
    %v2353 = vxor.u32 %v2349, 2147483648
    %v2354 = vxor.u32 %v2350, 2147483648
    %v2355 = vmul.f32 %v2352, 1.442695
    %v2356 = vpow.pop %v2355
    %v2357 = vmul.f32 %v2353, 1.442695
    %v2358 = vpow.pop %v2357
    %v2359 = vmul.f32 %v2354, 1.442695
    %v2360 = vpow.pop %v2359
    %v2361 = vadd.f32 %v2356, 1.0
    %v2362 = vadd.f32 %v2358, 1.0
    %v2363 = vadd.f32 %v2360, 1.0
    %v2364 = vrcp.pop %v2361
    %v2365 = vmul.f32 %v2361, %v2364
    %v2366 = vsub.f32 1.0, %v2365
    %v2367 = vmul.f32 %v2364, %v2366
    %v2368 = vadd.f32 %v2364, %v2367
    %vm2369 = vweird.f32 %v2361
    %vm2370 = vweird.f32 %v2364
    %vm2371 = vmor %vm2369, %vm2370
    %v2372 = vsel %vm2371, %v2364, %v2368
    %v2373 = vand.u32 2147483647, %v2361
    %vm2374 = vcmp.eq.f32.partialorder %v2373, 8.507059e+37
    %v2375 = vand.u32 %v2361, 2147483648
    %v2376 = vor.u32 1.1754944e-38, %v2375
    %v2377 = vsel %vm2374, %v2376, %v2372
    %v2378 = vmul.f32 1.0, %v2377
    %v2379 = vrcp.pop %v2362
    %v2380 = vmul.f32 %v2362, %v2379
    %v2381 = vsub.f32 1.0, %v2380
    %v2382 = vmul.f32 %v2379, %v2381
    %v2383 = vadd.f32 %v2379, %v2382
    %vm2384 = vweird.f32 %v2362
    %vm2385 = vweird.f32 %v2379
    %vm2386 = vmor %vm2384, %vm2385
    %v2387 = vsel %vm2386, %v2379, %v2383
    %v2388 = vand.u32 2147483647, %v2362
    %vm2389 = vcmp.eq.f32.partialorder %v2388, 8.507059e+37
    %v2390 = vand.u32 %v2362, 2147483648
    %v2391 = vor.u32 1.1754944e-38, %v2390
    %v2392 = vsel %vm2389, %v2391, %v2387
    %v2393 = vmul.f32 1.0, %v2392
    %v2394 = vrcp.pop %v2363
    %v2395 = vmul.f32 %v2363, %v2394
    %v2396 = vsub.f32 1.0, %v2395
    %v2397 = vmul.f32 %v2394, %v2396
    %v2398 = vadd.f32 %v2394, %v2397
    %vm2399 = vweird.f32 %v2363
    %vm2400 = vweird.f32 %v2394
    %vm2401 = vmor %vm2399, %vm2400
    %v2402 = vsel %vm2401, %v2394, %v2398
    %v2403 = vand.u32 2147483647, %v2363
    %vm2404 = vcmp.eq.f32.partialorder %v2403, 8.507059e+37
    %v2405 = vand.u32 %v2363, 2147483648
    %v2406 = vor.u32 1.1754944e-38, %v2405
    %v2407 = vsel %vm2404, %v2406, %v2402
    %v2408 = vmul.f32 1.0, %v2407
    %v2409 = vtanh.pop %v2351
    %v2410 = vmul.f32 %v2393, %v2160
    %v2411 = vmul.f32 %v2378, %v2409
    %v2412 = vadd.f32 %v2410, %v2411
    %v2413 = vtanh.pop %v2412
    %v2414 = vmul.f32 %v2408, %v2413
    %v2415 = vadd.f32 %v2294, %v292
    %v2416 = vadd.f32 %v2307, %v293
    %v2417 = vadd.f32 %v2320, %v294
    %v2418 = vadd.f32 %v2333, %v295
    %v2419 = vxor.u32 %v2415, 2147483648
    %v2420 = vxor.u32 %v2416, 2147483648
    %v2421 = vxor.u32 %v2417, 2147483648
    %v2422 = vmul.f32 %v2419, 1.442695
    %v2423 = vpow.pop %v2422
    %v2424 = vmul.f32 %v2420, 1.442695
    %v2425 = vpow.pop %v2424
    %v2426 = vmul.f32 %v2421, 1.442695
    %v2427 = vpow.pop %v2426
    %v2428 = vadd.f32 %v2423, 1.0
    %v2429 = vadd.f32 %v2425, 1.0
    %v2430 = vadd.f32 %v2427, 1.0
    %v2431 = vrcp.pop %v2428
    %v2432 = vmul.f32 %v2428, %v2431
    %v2433 = vsub.f32 1.0, %v2432
    %v2434 = vmul.f32 %v2431, %v2433
    %v2435 = vadd.f32 %v2431, %v2434
    %vm2436 = vweird.f32 %v2428
    %vm2437 = vweird.f32 %v2431
    %vm2438 = vmor %vm2436, %vm2437
    %v2439 = vsel %vm2438, %v2431, %v2435
    %v2440 = vand.u32 2147483647, %v2428
    %vm2441 = vcmp.eq.f32.partialorder %v2440, 8.507059e+37
    %v2442 = vand.u32 %v2428, 2147483648
    %v2443 = vor.u32 1.1754944e-38, %v2442
    %v2444 = vsel %vm2441, %v2443, %v2439
    %v2445 = vmul.f32 1.0, %v2444
    %v2446 = vrcp.pop %v2429
    %v2447 = vmul.f32 %v2429, %v2446
    %v2448 = vsub.f32 1.0, %v2447
    %v2449 = vmul.f32 %v2446, %v2448
    %v2450 = vadd.f32 %v2446, %v2449
    %vm2451 = vweird.f32 %v2429
    %vm2452 = vweird.f32 %v2446
    %vm2453 = vmor %vm2451, %vm2452
    %v2454 = vsel %vm2453, %v2446, %v2450
    %v2455 = vand.u32 2147483647, %v2429
    %vm2456 = vcmp.eq.f32.partialorder %v2455, 8.507059e+37
    %v2457 = vand.u32 %v2429, 2147483648
    %v2458 = vor.u32 1.1754944e-38, %v2457
    %v2459 = vsel %vm2456, %v2458, %v2454
    %v2460 = vmul.f32 1.0, %v2459
    %v2461 = vrcp.pop %v2430
    %v2462 = vmul.f32 %v2430, %v2461
    %v2463 = vsub.f32 1.0, %v2462
    %v2464 = vmul.f32 %v2461, %v2463
    %v2465 = vadd.f32 %v2461, %v2464
    %vm2466 = vweird.f32 %v2430
    %vm2467 = vweird.f32 %v2461
    %vm2468 = vmor %vm2466, %vm2467
    %v2469 = vsel %vm2468, %v2461, %v2465
    %v2470 = vand.u32 2147483647, %v2430
    %vm2471 = vcmp.eq.f32.partialorder %v2470, 8.507059e+37
    %v2472 = vand.u32 %v2430, 2147483648
    %v2473 = vor.u32 1.1754944e-38, %v2472
    %v2474 = vsel %vm2471, %v2473, %v2469
    %v2475 = vmul.f32 1.0, %v2474
    %v2476 = vtanh.pop %v2418
    %v2477 = vmul.f32 %v2460, %v2227
    %v2478 = vmul.f32 %v2445, %v2476
    %v2479 = vadd.f32 %v2477, %v2478
    %v2480 = vtanh.pop %v2479
    %v2481 = vmul.f32 %v2475, %v2480
    %v2482 = vadd.f32 %v2414, %v2481
    %v2483 = vpack.c.bf16 %v2482, %v2482
    %2484 = vmatpush.bf16.msra.mxu0 %v652
    %2485 = vmatpush.bf16.msra.mxu0 %v644
    %2486 = vmatpush.bf16.msra.mxu0 %v636
    %2487 = vmatpush.bf16.msra.mxu0 %v628
    %2488 = vmatpush.bf16.msra.mxu0 %v620
    %2489 = vmatpush.bf16.msra.mxu0 %v612
    %2490 = vmatpush.bf16.msra.mxu0 %v604
    %2491 = vmatpush.bf16.msra.mxu0 %v596
    %2492 = vmatmul.bf16.gmra.mxu0 %v2483
    %v2493 = vpop.f32.mrf.mxu0
    %v2494 = vadd.f32 0.0, %v2493
    %v2495 = vpop.f32.mrf.mxu0
    %2496 = vdwg.mxu0
    %2497 = vmatpush.bf16.msra.mxu0 %v653
    %2498 = vmatpush.bf16.msra.mxu0 %v645
    %2499 = vmatpush.bf16.msra.mxu0 %v637
    %2500 = vmatpush.bf16.msra.mxu0 %v629
    %2501 = vmatpush.bf16.msra.mxu0 %v621
    %2502 = vmatpush.bf16.msra.mxu0 %v613
    %2503 = vmatpush.bf16.msra.mxu0 %v605
    %2504 = vmatpush.bf16.msra.mxu0 %v597
    %2505 = vmatmul.bf16.gmra.mxu0 %v2483
    %v2506 = vpop.f32.mrf.mxu0
    %v2507 = vadd.f32 0.0, %v2506
    %v2508 = vpop.f32.mrf.mxu0
    %2509 = vdwg.mxu0
    %2510 = vmatpush.bf16.msra.mxu0 %v654
    %2511 = vmatpush.bf16.msra.mxu0 %v646
    %2512 = vmatpush.bf16.msra.mxu0 %v638
    %2513 = vmatpush.bf16.msra.mxu0 %v630
    %2514 = vmatpush.bf16.msra.mxu0 %v622
    %2515 = vmatpush.bf16.msra.mxu0 %v614
    %2516 = vmatpush.bf16.msra.mxu0 %v606
    %2517 = vmatpush.bf16.msra.mxu0 %v598
    %2518 = vmatmul.bf16.gmra.mxu0 %v2483
    %v2519 = vpop.f32.mrf.mxu0
    %v2520 = vadd.f32 0.0, %v2519
    %v2521 = vpop.f32.mrf.mxu0
    %2522 = vdwg.mxu0
    %2523 = vmatpush.bf16.msra.mxu0 %v655
    %2524 = vmatpush.bf16.msra.mxu0 %v647
    %2525 = vmatpush.bf16.msra.mxu0 %v639
    %2526 = vmatpush.bf16.msra.mxu0 %v631
    %2527 = vmatpush.bf16.msra.mxu0 %v623
    %2528 = vmatpush.bf16.msra.mxu0 %v615
    %2529 = vmatpush.bf16.msra.mxu0 %v607
    %2530 = vmatpush.bf16.msra.mxu0 %v599
    %2531 = vmatmul.bf16.gmra.mxu0 %v2483
    %v2532 = vpop.f32.mrf.mxu0
    %v2533 = vadd.f32 0.0, %v2532
    %v2534 = vpop.f32.mrf.mxu0
    %2535 = vdwg.mxu0
    %v2536 = vadd.f32 %v2494, %v292
    %v2537 = vadd.f32 %v2507, %v293
    %v2538 = vadd.f32 %v2520, %v294
    %v2539 = vadd.f32 %v2533, %v295
    %v2540 = vxor.u32 %v2536, 2147483648
    %v2541 = vxor.u32 %v2537, 2147483648
    %v2542 = vxor.u32 %v2538, 2147483648
    %v2543 = vmul.f32 %v2540, 1.442695
    %v2544 = vpow.pop %v2543
    %v2545 = vmul.f32 %v2541, 1.442695
    %v2546 = vpow.pop %v2545
    %v2547 = vmul.f32 %v2542, 1.442695
    %v2548 = vpow.pop %v2547
    %v2549 = vadd.f32 %v2544, 1.0
    %v2550 = vadd.f32 %v2546, 1.0
    %v2551 = vadd.f32 %v2548, 1.0
    %v2552 = vrcp.pop %v2549
    %v2553 = vmul.f32 %v2549, %v2552
    %v2554 = vsub.f32 1.0, %v2553
    %v2555 = vmul.f32 %v2552, %v2554
    %v2556 = vadd.f32 %v2552, %v2555
    %vm2557 = vweird.f32 %v2549
    %vm2558 = vweird.f32 %v2552
    %vm2559 = vmor %vm2557, %vm2558
    %v2560 = vsel %vm2559, %v2552, %v2556
    %v2561 = vand.u32 2147483647, %v2549
    %vm2562 = vcmp.eq.f32.partialorder %v2561, 8.507059e+37
    %v2563 = vand.u32 %v2549, 2147483648
    %v2564 = vor.u32 1.1754944e-38, %v2563
    %v2565 = vsel %vm2562, %v2564, %v2560
    %v2566 = vmul.f32 1.0, %v2565
    %v2567 = vrcp.pop %v2550
    %v2568 = vmul.f32 %v2550, %v2567
    %v2569 = vsub.f32 1.0, %v2568
    %v2570 = vmul.f32 %v2567, %v2569
    %v2571 = vadd.f32 %v2567, %v2570
    %vm2572 = vweird.f32 %v2550
    %vm2573 = vweird.f32 %v2567
    %vm2574 = vmor %vm2572, %vm2573
    %v2575 = vsel %vm2574, %v2567, %v2571
    %v2576 = vand.u32 2147483647, %v2550
    %vm2577 = vcmp.eq.f32.partialorder %v2576, 8.507059e+37
    %v2578 = vand.u32 %v2550, 2147483648
    %v2579 = vor.u32 1.1754944e-38, %v2578
    %v2580 = vsel %vm2577, %v2579, %v2575
    %v2581 = vmul.f32 1.0, %v2580
    %v2582 = vrcp.pop %v2551
    %v2583 = vmul.f32 %v2551, %v2582
    %v2584 = vsub.f32 1.0, %v2583
    %v2585 = vmul.f32 %v2582, %v2584
    %v2586 = vadd.f32 %v2582, %v2585
    %vm2587 = vweird.f32 %v2551
    %vm2588 = vweird.f32 %v2582
    %vm2589 = vmor %vm2587, %vm2588
    %v2590 = vsel %vm2589, %v2582, %v2586
    %v2591 = vand.u32 2147483647, %v2551
    %vm2592 = vcmp.eq.f32.partialorder %v2591, 8.507059e+37
    %v2593 = vand.u32 %v2551, 2147483648
    %v2594 = vor.u32 1.1754944e-38, %v2593
    %v2595 = vsel %vm2592, %v2594, %v2590
    %v2596 = vmul.f32 1.0, %v2595
    %v2597 = vtanh.pop %v2539
    %v2598 = vmul.f32 %v2581, %v2479
    %v2599 = vmul.f32 %v2566, %v2597
    %v2600 = vadd.f32 %v2598, %v2599
    %v2601 = vtanh.pop %v2600
    %v2602 = vmul.f32 %v2596, %v2601
    %v2603 = vpack.c.bf16 %v2602, %v2602
    %v2604 = vld [vmem:[#allocation6] sm:$0xff]
    %v2605 = vld [vmem:[#allocation6 + $0x8] sm:$0xff]
    %v2606 = vld [vmem:[#allocation6 + $0x10] sm:$0xff]
    %v2607 = vld [vmem:[#allocation6 + $0x18] sm:$0xff]
    %v2608 = vld [vmem:[#allocation6 + $0x20] sm:$0xff]
    %v2609 = vld [vmem:[#allocation6 + $0x28] sm:$0xff]
    %v2610 = vld [vmem:[#allocation6 + $0x30] sm:$0xff]
    %v2611 = vld [vmem:[#allocation6 + $0x38] sm:$0xff]
    %v2612 = vld [vmem:[#allocation6 + $0x40] sm:$0xff]
    %v2613 = vld [vmem:[#allocation6 + $0x48] sm:$0xff]
    %v2614 = vld [vmem:[#allocation6 + $0x50] sm:$0xff]
    %v2615 = vld [vmem:[#allocation6 + $0x58] sm:$0xff]
    %v2616 = vld [vmem:[#allocation6 + $0x60] sm:$0xff]
    %v2617 = vld [vmem:[#allocation6 + $0x68] sm:$0xff]
    %v2618 = vld [vmem:[#allocation6 + $0x70] sm:$0xff]
    %v2619 = vld [vmem:[#allocation6 + $0x78] sm:$0xff]
    %v2620 = vld [vmem:[#allocation6 + $0x80] sm:$0xff]
    %v2621 = vld [vmem:[#allocation6 + $0x88] sm:$0xff]
    %v2622 = vld [vmem:[#allocation6 + $0x90] sm:$0xff]
    %v2623 = vld [vmem:[#allocation6 + $0x98] sm:$0xff]
    %v2624 = vld [vmem:[#allocation6 + $0xa0] sm:$0xff]
    %v2625 = vld [vmem:[#allocation6 + $0xa8] sm:$0xff]
    %v2626 = vld [vmem:[#allocation6 + $0xb0] sm:$0xff]
    %v2627 = vld [vmem:[#allocation6 + $0xb8] sm:$0xff]
    %v2628 = vld [vmem:[#allocation6 + $0xc0] sm:$0xff]
    %v2629 = vld [vmem:[#allocation6 + $0xc8] sm:$0xff]
    %v2630 = vld [vmem:[#allocation6 + $0xd0] sm:$0xff]
    %v2631 = vld [vmem:[#allocation6 + $0xd8] sm:$0xff]
    %v2632 = vld [vmem:[#allocation6 + $0xe0] sm:$0xff]
    %v2633 = vld [vmem:[#allocation6 + $0xe8] sm:$0xff]
    %v2634 = vld [vmem:[#allocation6 + $0xf0] sm:$0xff]
    %v2635 = vld [vmem:[#allocation6 + $0xf8] sm:$0xff]
    %v2636 = vld [vmem:[%s6] sm:$0xf]
    %v2638 = vperm.slane %v2636, 0
    %v2639 = vperm.slane %v2636, 1
    %v2640 = vperm.slane %v2636, 2
    %v2641 = vperm.slane %v2636, 3
    %v2678 = vunpack.c.l.b16 %v2604
    %v2679 = vunpack.c.h.b16 %v2604
    %v2680 = vunpack.c.l.b16 %v2605
    %v2681 = vunpack.c.h.b16 %v2605
    %v2682 = vunpack.c.l.b16 %v2606
    %v2683 = vunpack.c.h.b16 %v2606
    %v2684 = vunpack.c.l.b16 %v2607
    %v2685 = vunpack.c.h.b16 %v2607
    %v2686 = vunpack.c.l.b16 %v2608
    %v2687 = vunpack.c.h.b16 %v2608
    %v2688 = vunpack.c.l.b16 %v2609
    %v2689 = vunpack.c.h.b16 %v2609
    %v2690 = vunpack.c.l.b16 %v2610
    %v2691 = vunpack.c.h.b16 %v2610
    %v2692 = vunpack.c.l.b16 %v2611
    %v2693 = vunpack.c.h.b16 %v2611
    %v2694 = vunpack.c.l.b16 %v2612
    %v2695 = vunpack.c.h.b16 %v2612
    %v2696 = vunpack.c.l.b16 %v2613
    %v2697 = vunpack.c.h.b16 %v2613
    %v2698 = vunpack.c.l.b16 %v2614
    %v2699 = vunpack.c.h.b16 %v2614
    %v2700 = vunpack.c.l.b16 %v2615
    %v2701 = vunpack.c.h.b16 %v2615
    %v2702 = vunpack.c.l.b16 %v2616
    %v2703 = vunpack.c.h.b16 %v2616
    %v2704 = vunpack.c.l.b16 %v2617
    %v2705 = vunpack.c.h.b16 %v2617
    %v2706 = vunpack.c.l.b16 %v2618
    %v2707 = vunpack.c.h.b16 %v2618
    %v2708 = vunpack.c.l.b16 %v2619
    %v2709 = vunpack.c.h.b16 %v2619
    %v2710 = vunpack.c.l.b16 %v2620
    %v2711 = vunpack.c.h.b16 %v2620
    %v2712 = vunpack.c.l.b16 %v2621
    %v2713 = vunpack.c.h.b16 %v2621
    %v2714 = vunpack.c.l.b16 %v2622
    %v2715 = vunpack.c.h.b16 %v2622
    %v2716 = vunpack.c.l.b16 %v2623
    %v2717 = vunpack.c.h.b16 %v2623
    %v2718 = vunpack.c.l.b16 %v2624
    %v2719 = vunpack.c.h.b16 %v2624
    %v2720 = vunpack.c.l.b16 %v2625
    %v2721 = vunpack.c.h.b16 %v2625
    %v2722 = vunpack.c.l.b16 %v2626
    %v2723 = vunpack.c.h.b16 %v2626
    %v2724 = vunpack.c.l.b16 %v2627
    %v2725 = vunpack.c.h.b16 %v2627
    %v2726 = vunpack.c.l.b16 %v2628
    %v2727 = vunpack.c.h.b16 %v2628
    %v2728 = vunpack.c.l.b16 %v2629
    %v2729 = vunpack.c.h.b16 %v2629
    %v2730 = vunpack.c.l.b16 %v2630
    %v2731 = vunpack.c.h.b16 %v2630
    %v2732 = vunpack.c.l.b16 %v2631
    %v2733 = vunpack.c.h.b16 %v2631
    %v2734 = vunpack.c.l.b16 %v2632
    %v2735 = vunpack.c.h.b16 %v2632
    %v2736 = vunpack.c.l.b16 %v2633
    %v2737 = vunpack.c.h.b16 %v2633
    %v2738 = vunpack.c.l.b16 %v2634
    %v2739 = vunpack.c.h.b16 %v2634
    %v2740 = vunpack.c.l.b16 %v2635
    %v2741 = vunpack.c.h.b16 %v2635
    %v2742 = vpack.c.b16 %v2682, %v2678
    %v2743 = vpack.c.b16 %v2683, %v2679
    %v2744 = vpack.c.b16 %v2684, %v2680
    %v2745 = vpack.c.b16 %v2685, %v2681
    %v2746 = vpack.c.b16 %v2690, %v2686
    %v2747 = vpack.c.b16 %v2691, %v2687
    %v2748 = vpack.c.b16 %v2692, %v2688
    %v2749 = vpack.c.b16 %v2693, %v2689
    %v2750 = vpack.c.b16 %v2698, %v2694
    %v2751 = vpack.c.b16 %v2699, %v2695
    %v2752 = vpack.c.b16 %v2700, %v2696
    %v2753 = vpack.c.b16 %v2701, %v2697
    %v2754 = vpack.c.b16 %v2706, %v2702
    %v2755 = vpack.c.b16 %v2707, %v2703
    %v2756 = vpack.c.b16 %v2708, %v2704
    %v2757 = vpack.c.b16 %v2709, %v2705
    %v2758 = vpack.c.b16 %v2714, %v2710
    %v2759 = vpack.c.b16 %v2715, %v2711
    %v2760 = vpack.c.b16 %v2716, %v2712
    %v2761 = vpack.c.b16 %v2717, %v2713
    %v2762 = vpack.c.b16 %v2722, %v2718
    %v2763 = vpack.c.b16 %v2723, %v2719
    %v2764 = vpack.c.b16 %v2724, %v2720
    %v2765 = vpack.c.b16 %v2725, %v2721
    %v2766 = vpack.c.b16 %v2730, %v2726
    %v2767 = vpack.c.b16 %v2731, %v2727
    %v2768 = vpack.c.b16 %v2732, %v2728
    %v2769 = vpack.c.b16 %v2733, %v2729
    %v2770 = vpack.c.b16 %v2738, %v2734
    %v2771 = vpack.c.b16 %v2739, %v2735
    %v2772 = vpack.c.b16 %v2740, %v2736
    %v2773 = vpack.c.b16 %v2741, %v2737
    %2806 = vmatpush.bf16.msra.mxu0 %v2770
    %2807 = vmatpush.bf16.msra.mxu0 %v2766
    %2808 = vmatpush.bf16.msra.mxu0 %v2762
    %2809 = vmatpush.bf16.msra.mxu0 %v2758
    %2810 = vmatpush.bf16.msra.mxu0 %v2754
    %2811 = vmatpush.bf16.msra.mxu0 %v2750
    %2812 = vmatpush.bf16.msra.mxu0 %v2746
    %2813 = vmatpush.bf16.msra.mxu0 %v2742
    %2814 = vmatmul.bf16.gmra.mxu0 %v2603
    %v2815 = vpop.f32.mrf.mxu0
    %v2816 = vadd.f32 %v2638, %v2815
    %v2817 = vpop.f32.mrf.mxu0
    %2818 = vdwg.mxu0
    %2819 = vmatpush.bf16.msra.mxu0 %v2771
    %2820 = vmatpush.bf16.msra.mxu0 %v2767
    %2821 = vmatpush.bf16.msra.mxu0 %v2763
    %2822 = vmatpush.bf16.msra.mxu0 %v2759
    %2823 = vmatpush.bf16.msra.mxu0 %v2755
    %2824 = vmatpush.bf16.msra.mxu0 %v2751
    %2825 = vmatpush.bf16.msra.mxu0 %v2747
    %2826 = vmatpush.bf16.msra.mxu0 %v2743
    %2827 = vmatmul.bf16.gmra.mxu0 %v2603
    %v2828 = vpop.f32.mrf.mxu0
    %v2829 = vadd.f32 %v2639, %v2828
    %v2830 = vpop.f32.mrf.mxu0
    %2831 = vdwg.mxu0
    %2832 = vmatpush.bf16.msra.mxu0 %v2772
    %2833 = vmatpush.bf16.msra.mxu0 %v2768
    %2834 = vmatpush.bf16.msra.mxu0 %v2764
    %2835 = vmatpush.bf16.msra.mxu0 %v2760
    %2836 = vmatpush.bf16.msra.mxu0 %v2756
    %2837 = vmatpush.bf16.msra.mxu0 %v2752
    %2838 = vmatpush.bf16.msra.mxu0 %v2748
    %2839 = vmatpush.bf16.msra.mxu0 %v2744
    %2840 = vmatmul.bf16.gmra.mxu0 %v2603
    %v2841 = vpop.f32.mrf.mxu0
    %v2842 = vadd.f32 %v2640, %v2841
    %v2843 = vpop.f32.mrf.mxu0
    %2844 = vdwg.mxu0
    %2845 = vmatpush.bf16.msra.mxu0 %v2773
    %2846 = vmatpush.bf16.msra.mxu0 %v2769
    %2847 = vmatpush.bf16.msra.mxu0 %v2765
    %2848 = vmatpush.bf16.msra.mxu0 %v2761
    %2849 = vmatpush.bf16.msra.mxu0 %v2757
    %2850 = vmatpush.bf16.msra.mxu0 %v2753
    %2851 = vmatpush.bf16.msra.mxu0 %v2749
    %2852 = vmatpush.bf16.msra.mxu0 %v2745
    %2853 = vmatmul.bf16.gmra.mxu0 %v2603
    %v2854 = vpop.f32.mrf.mxu0
    %v2855 = vadd.f32 %v2641, %v2854
    %v2856 = vpop.f32.mrf.mxu0
    %2857 = vdwg.mxu0
    %v2862 = vrot.slane %v2829, 6
    %v2863 = vrot.slane %v2842, 4
    %v2864 = vrot.slane %v2855, 2
    %v2865 = vsel %vm247, %v2816, %v2862
    %v2866 = vsel %vm249, %v2863, %v2864
    %v2867 = vsel %vm251, %v2865, %v2866
    %2869 = vst [vmem:[#allocation8] sm:$0xff] %v2867
    // Predicated region
    $region38: #{tpu_custom_call.1} parent=1 // pred_check
      _
    $region39: #{tpu_custom_call.1} parent=1 // pred_check_branch
      %2871 = sbr.rel (0) target = $region41
    $region40: #{tpu_custom_call.1} parent=1 // pred_region
      %2873 = vsyncadd [#allocation5], 0
      %s2875 = sshll.u32 [#allocation8], 4
      %s2876 = int_to_ptr.vmem [resolvable:$true] %s2875
      %s2877 = sshll.u32 %s7, 4
      %s2878 = int_to_ptr.hbm [resolvable:$true] %s2877
      %2880 = dma.vmem_to_hbm [thread:$0]  %s2876, 128, %s2878, [#allocation5]
    $region41: #{tpu_custom_call.1} parent=1 // pred_fallthru
      _
    // Predicated region
    $region42: #{tpu_custom_call.1} parent=1 // pred_check
      _
    $region43: #{tpu_custom_call.1} parent=1 // pred_check_branch
      %2882 = sbr.rel (0) target = $region45
    $region44: #{tpu_custom_call.1} parent=1 // pred_region
      %2884 = dma.done [#allocation5], 128
    $region45: #{tpu_custom_call.1} parent=1 // pred_fallthru
      _
    %2885 = vsyncpa [#allocation4], 1
    %2886 = vsyncpa [#allocation7], 1
    %2887 = vsyncpa [#allocation5], 1

</llo_original>
